<compile_context>
chip_gen: v7x
topology: tpu7x:2x2x1
jax: 0.10.0
libtpu: 0.0.40
codegen_flags: <defaults>
</compile_context>

<pallas_src>
import functools

import jax
import jax.numpy as jnp
from jax.experimental import pallas as pl
from jax.experimental.pallas import tpu as pltpu


# ---------------------------------------------------------------------------
# Pallas kernel: fused matmul (bf16 MXU, f32 acc) + bias (folded BN) + SiLU
# ---------------------------------------------------------------------------
def _fused_matmul_kernel(x_ref, w_ref, b_ref, o_ref):
    acc = jnp.dot(x_ref[...], w_ref[...], preferred_element_type=jnp.float32)
    y = acc + b_ref[...]                                   # folded BatchNorm bias
    o_ref[...] = (y * jax.nn.sigmoid(y)).astype(o_ref.dtype)   # SiLU (f32 epilogue)


def _round_up(x, m):
    return (x + m - 1) // m * m


def fused_matmul_bias_silu(col, wp, bp, n_out):
    """col: (M, K) any float dtype; wp: (K, N_pad) bf16; bp: (1, N_pad) f32."""
    m, k = col.shape
    k_w, n_pad = wp.shape
    assert k == k_w, (k, k_w)

    # M only needs sublane alignment; keep late (tiny) layers small.
    m_pad = _round_up(m, 16) if m <= 128 else _round_up(m, 128)
    tm = min(128, m_pad)

    colb = col.astype(jnp.bfloat16)
    if m_pad != m:
        colb = jnp.pad(colb, ((0, m_pad - m), (0, 0)))

    out = pl.pallas_call(
        _fused_matmul_kernel,
        out_shape=jax.ShapeDtypeStruct((m_pad, n_pad), jnp.float32),
        grid=(m_pad // tm,),
        in_specs=[
            pl.BlockSpec((tm, k), lambda i: (i, 0)),       # activations (row tiles)
            pl.BlockSpec((k, n_pad), lambda i: (0, 0)),    # weights, resident
            pl.BlockSpec((1, n_pad), lambda i: (0, 0)),    # bias, resident
        ],
        out_specs=pl.BlockSpec((tm, n_pad), lambda i: (i, 0)),
        compiler_params=pltpu.CompilerParams(dimension_semantics=("parallel",)),
    )(colb, wp, bp)
    return out[:m, :n_out]


# ---------------------------------------------------------------------------
# im2col for k>1 convs (NHWC). Column order = (kh, kw, cin), matching the
# weight reshape below. K is padded to a multiple of 128 for free inside the
# same concatenate (weights are pre-padded identically at init).
# ---------------------------------------------------------------------------
def _im2col_nhwc(x, kh, kw, stride, pad):
    x = x.astype(jnp.bfloat16)
    n, h, w, c = x.shape
    if pad:
        x = jnp.pad(x, ((0, 0), (pad, pad), (pad, pad), (0, 0)))
    oh = (h + 2 * pad - kh) // stride + 1
    ow = (w + 2 * pad - kw) // stride + 1
    cols = [x[:, i:i + stride * oh:stride, j:j + stride * ow:stride, :]
            for i in range(kh) for j in range(kw)]
    k_true = kh * kw * c
    k_pad = _round_up(k_true, 128)
    if k_pad != k_true:
        cols.append(jnp.zeros((n, oh, ow, k_pad - k_true), jnp.bfloat16))
    col = jnp.concatenate(cols, axis=-1)                  # (n, oh, ow, k_pad)
    return col.reshape(n * oh * ow, k_pad), oh, ow


# ---------------------------------------------------------------------------
# Parameter construction: fold BN into weights, pre-pad, pre-cast to bf16
# ---------------------------------------------------------------------------
def _autopad(k, p=None):
    return k // 2 if p is None else p


def _init_conv_raw(key, c1, c2, k):
    k1, k2, k3, k4, k5 = jax.random.split(key, 5)
    w = 0.1 * jax.random.normal(k1, (c2, c1, k, k), jnp.float32)
    gamma = 1.0 + 0.1 * jax.random.normal(k2, (c2,), jnp.float32)
    beta = 0.1 * jax.random.normal(k3, (c2,), jnp.float32)
    mean = 0.1 * jax.random.normal(k4, (c2,), jnp.float32)
    var = 1.0 + 0.1 * jax.random.uniform(k5, (c2,), jnp.float32)
    scale = gamma / jnp.sqrt(var + 1e-3)                  # BN eps=1e-3 (YOLOv5)
    bias = beta - mean * scale
    # fold BN scale into the conv weight, matmul layout (kh*kw*c1, c2)
    w_mat = (w * scale[:, None, None, None]).transpose(2, 3, 1, 0).reshape(k * k * c1, c2)
    return {"w_mat": w_mat, "bias": bias}


def _pad_weight(w_mat, bias, k_pad=None):
    k, n = w_mat.shape
    k_pad = k if k_pad is None else k_pad
    n_pad = _round_up(n, 128)
    wp = jnp.zeros((k_pad, n_pad), jnp.bfloat16).at[:k, :n].set(w_mat.astype(jnp.bfloat16))
    bp = jnp.zeros((1, n_pad), jnp.float32).at[0, :n].set(bias.astype(jnp.float32))
    return wp, bp


def init_conv(key, c1, c2, k=1, s=1, p=None, g=1, act=True):
    # TODO(synk): grouped conv (g>1) not implemented; this config only uses g=1.
    del g, act
    pad = _autopad(k, p)
    direct = (k == 1 and s == 1 and pad == 0)             # plain matmul, no im2col
    raw = _init_conv_raw(key, c1, c2, k)
    k_pad = c1 if direct else _round_up(k * k * c1, 128)
    wp, bp = _pad_weight(raw["w_mat"], raw["bias"], k_pad)
    return {"wp": wp, "bp": bp, "k": k, "s": s, "p": pad, "c2": c2, "direct": direct}


def conv_forward(p, x):                                   # x: NHWC f32
    n, h, w, c = x.shape
    if p["direct"]:
        col, oh, ow = x.reshape(n * h * w, c), h, w
    else:
        col, oh, ow = _im2col_nhwc(x, p["k"], p["k"], p["s"], p["p"])
    y = fused_matmul_bias_silu(col, p["wp"], p["bp"], p["c2"])
    return y.reshape(n, oh, ow, p["c2"])


def init_bottleneck(key, c1, c2, shortcut=True, g=1, e=0.5):
    c_ = int(c2 * e)
    k1, k2 = jax.random.split(key)
    return {"cv1": init_conv(k1, c1, c_, 1, 1),
            "cv2": init_conv(k2, c_, c2, 3, 1, g=g),
            "add": bool(shortcut and c1 == c2)}


def bottleneck_forward(p, x):
    y = conv_forward(p["cv2"], conv_forward(p["cv1"], x))
    return x + y if p["add"] else y


def init_c3(key, c1, c2, n=1, shortcut=True, g=1, e=0.5):
    c_ = int(c2 * e)
    keys = jax.random.split(key, 3 + n)
    cv1 = _init_conv_raw(keys[0], c1, c_, 1)
    cv2 = _init_conv_raw(keys[1], c1, c_, 1)
    cv3 = _init_conv_raw(keys[2], 2 * c_, c2, 1)
    # cv1 and cv2 share the same input -> fuse into one wider matmul.
    wp12, bp12 = _pad_weight(jnp.concatenate([cv1["w_mat"], cv2["w_mat"]], axis=1),
                             jnp.concatenate([cv1["bias"], cv2["bias"]], axis=0))
    wp3, bp3 = _pad_weight(cv3["w_mat"], cv3["bias"])
    return {"wp12": wp12, "bp12": bp12, "wp3": wp3, "bp3": bp3,
            "m": [init_bottleneck(keys[3 + i], c_, c_, shortcut, g, 1.0)
                  for i in range(n)],
            "c_": c_, "c2": c2}


def c3_forward(p, x):
    n, h, w, c = x.shape
    c_, c2 = p["c_"], p["c2"]
    col = x.reshape(n * h * w, c)
    y12 = fused_matmul_bias_silu(col, p["wp12"], p["bp12"], 2 * c_)   # cv1|cv2 fused
    y1 = y12[:, :c_].reshape(n, h, w, c_)
    y2 = y12[:, c_:]                                      # stays flat (M, c_)
    for b in p["m"]:
        y1 = bottleneck_forward(b, y1)
    ycat = jnp.concatenate([y1.reshape(n * h * w, c_), y2], axis=-1)
    y = fused_matmul_bias_silu(ycat, p["wp3"], p["bp3"], c2)
    return y.reshape(n, h, w, c2)


def init_classify_fused(keys, head_args):
    # TODO(synk): mirrors the previous implementation's head (avg-pool ->
    # Conv+BN+SiLU -> flatten); verify against the repo's Classify definition.
    raws = [_init_conv_raw(k, c1, c2, 1) for k, (c1, c2) in zip(keys, head_args)]
    wp, bp = _pad_weight(jnp.concatenate([r["w_mat"] for r in raws], axis=1),
                         jnp.concatenate([r["bias"] for r in raws], axis=0))
    return {"wp": wp, "bp": bp, "splits": tuple(c2 for _, c2 in head_args)}


def classify_forward(p, x):                               # x: NHWC
    z = jnp.mean(x, axis=(1, 2))                          # AdaptiveAvgPool2d(1) -> (N, C)
    y = fused_matmul_bias_silu(z, p["wp"], p["bp"], int(sum(p["splits"])))
    outs, off = [], 0
    for n_i in p["splits"]:
        outs.append(y[:, off:off + n_i])
        off += n_i
    return outs


# ---------------------------------------------------------------------------
# yolov5_cls_sm_dp ('s' variant): feature_ + three Classify heads
# ---------------------------------------------------------------------------
CFG = {
    "feature_map": [
        [[1], [3, 8, 6, 2, 2]],     # Conv(3, 8, k=6, s=2, p=2)
        [[1], [8, 16, 3, 2]],       # Conv(8, 16, k=3, s=2)
        [[1], [16, 16, 1]],         # C3(16, 16, n=1) x1
        [[1], [16, 32, 3, 2]],      # Conv
        [[1], [32, 32, 1]],         # C3 x1
        [[1], [32, 64, 3, 2]],      # Conv
        [[1], [64, 64, 1]],         # C3 x1
        [[1], [64, 64, 3, 2]],      # Conv
        [[1], [64, 64, 1]],         # C3 x1
    ],
    "classify": {"1": [64, 5], "2": [64, 5], "3": [64, 5]},
}


def init_model(key, cfg):
    fm = cfg["feature_map"]
    keys = jax.random.split(key, 12)
    feature = [("conv", init_conv(keys[0], *fm[0][1])),
               ("conv", init_conv(keys[1], *fm[1][1]))]
    c3_a = init_c3(keys[2], *fm[2][1])
    feature.extend([("c3", c3_a)] * fm[2][0][0])          # [module]*n -> shared weights
    feature.append(("conv", init_conv(keys[3], *fm[3][1])))
    c3_b = init_c3(keys[4], *fm[4][1])
    feature.extend([("c3", c3_b)] * fm[4][0][0])
    feature.append(("conv", init_conv(keys[5], *fm[5][1])))
    c3_c = init_c3(keys[6], *fm[6][1])
    feature.extend([("c3", c3_c)] * fm[6][0][0])
    feature.append(("conv", init_conv(keys[7], *fm[7][1])))
    c3_d = init_c3(keys[8], *fm[8][1])
    feature.extend([("c3", c3_d)] * fm[8][0][0])
    cls = init_classify_fused([keys[9], keys[10], keys[11]],
                              [cfg["classify"][i] for i in ("1", "2", "3")])
    return {"feature": feature, "cls": cls}


def forward(params, x):
    x = jnp.transpose(x, (0, 2, 3, 1))                    # NCHW -> NHWC once
    for kind, p in params["feature"]:
        x = conv_forward(p, x) if kind == "conv" else c3_forward(p, x)
    return classify_forward(params["cls"], x)             # [out1, out2, out3]


if __name__ == "__main__":
    key = jax.random.PRNGKey(0)
    pkey, xkey = jax.random.split(key)
    params = init_model(pkey, CFG)
    x = jax.random.normal(xkey, (2, 3, 32, 32), jnp.float32)   # NCHW, like PyTorch

    fwd = jax.jit(functools.partial(forward, params))
    outs = jax.block_until_ready(fwd(x))

    assert len(outs) == 3
    for o in outs:
        assert o.shape == (2, 5) and o.dtype == jnp.float32
    print("KERNEL_OK")
</pallas_src>

<mosaic_0001>
module attributes {stable_mosaic.version = 11 : i64} {
  func.func @_fused_matmul_kernel(%arg0: i32, %arg1: memref<128x128xbf16, #tpu.memory_space<vmem>>, %arg2: memref<128x128xbf16, #tpu.memory_space<vmem>>, %arg3: memref<1x128xf32, #tpu.memory_space<vmem>>, %arg4: memref<128x128xf32, #tpu.memory_space<vmem>>) attributes {dimension_semantics = [#tpu.dimension_semantics<parallel>], iteration_bounds = array<i64: 4>, scalar_prefetch = 0 : i64, scratch_operands = 0 : i64, tpu.core_type = #tpu.core_type<tc>, window_params = [{transform_indices = @transform_0, window_bounds = array<i64: 128, 128>}, {pipeline_mode = #tpu.pipeline_mode<synchronous>, transform_indices = @transform_1, window_bounds = array<i64: 128, 128>}, {pipeline_mode = #tpu.pipeline_mode<synchronous>, transform_indices = @transform_2, window_bounds = array<i64: 1, 128>}, {transform_indices = @transform_3, window_bounds = array<i64: 128, 128>}]} {
    %c0 = arith.constant 0 : index
    %c0_0 = arith.constant 0 : index
    %0 = vector.load %arg1[%c0, %c0_0] : memref<128x128xbf16, #tpu.memory_space<vmem>>, vector<128x128xbf16>
    %c0_1 = arith.constant 0 : index
    %c0_2 = arith.constant 0 : index
    %1 = vector.load %arg2[%c0_1, %c0_2] : memref<128x128xbf16, #tpu.memory_space<vmem>>, vector<128x128xbf16>
    %cst = arith.constant dense<0.000000e+00> : vector<128x128xf32>
    %2 = tpu.matmul %0, %1, %cst {dimension_numbers = #tpu.dot_dimension_numbers<[1], [0], [0], [1], [0, 0, 1, 1], [], []>} : vector<128x128xbf16>, vector<128x128xbf16>, vector<128x128xf32> -> vector<128x128xf32>
    %c0_3 = arith.constant 0 : index
    %c0_4 = arith.constant 0 : index
    %3 = vector.load %arg3[%c0_3, %c0_4] : memref<1x128xf32, #tpu.memory_space<vmem>>, vector<1x128xf32>
    %4 = vector.broadcast %3 : vector<1x128xf32> to vector<128x128xf32>
    %5 = arith.addf %2, %4 : vector<128x128xf32>
    %6 = arith.negf %5 : vector<128x128xf32>
    %7 = math.exp %6 : vector<128x128xf32>
    %cst_5 = arith.constant 1.000000e+00 : f32
    %8 = vector.broadcast %cst_5 : f32 to vector<128x128xf32>
    %9 = arith.addf %8, %7 : vector<128x128xf32>
    %10 = arith.divf %8, %9 : vector<128x128xf32>
    %11 = arith.mulf %5, %10 : vector<128x128xf32>
    %c0_6 = arith.constant 0 : index
    %c0_7 = arith.constant 0 : index
    %12 = vector.load %arg4[%c0_6, %c0_7] : memref<128x128xf32, #tpu.memory_space<vmem>>, vector<128x128xf32>
    tpu.vector_store %arg4[%c0_6, %c0_7], %11 {strides = array<i32>} : memref<128x128xf32, #tpu.memory_space<vmem>>, vector<128x128xf32>,
    return
  }
  func.func @transform_0(%arg0: i32) -> (i32, i32) {
    %c0_i32 = arith.constant 0 : i32
    %c0_i32_0 = arith.constant 0 : i32
    return %arg0, %c0_i32 : i32, i32
  }
  func.func @transform_1(%arg0: i32) -> (i32, i32) {
    %c0_i32 = arith.constant 0 : i32
    %c0_i32_0 = arith.constant 0 : i32
    %c0_i32_1 = arith.constant 0 : i32
    return %c0_i32, %c0_i32_0 : i32, i32
  }
  func.func @transform_2(%arg0: i32) -> (i32, i32) {
    %c0_i32 = arith.constant 0 : i32
    %c0_i32_0 = arith.constant 0 : i32
    %c0_i32_1 = arith.constant 0 : i32
    return %c0_i32, %c0_i32_0 : i32, i32
  }
  func.func @transform_3(%arg0: i32) -> (i32, i32) {
    %c0_i32 = arith.constant 0 : i32
    %c0_i32_0 = arith.constant 0 : i32
    return %arg0, %c0_i32 : i32, i32
  }
}

module attributes {stable_mosaic.version = 11 : i64} {
  func.func @_fused_matmul_kernel(%arg0: i32, %arg1: memref<128x16xbf16, #tpu.memory_space<vmem>>, %arg2: memref<16x128xbf16, #tpu.memory_space<vmem>>, %arg3: memref<1x128xf32, #tpu.memory_space<vmem>>, %arg4: memref<128x128xf32, #tpu.memory_space<vmem>>) attributes {dimension_semantics = [#tpu.dimension_semantics<parallel>], iteration_bounds = array<i64: 1>, scalar_prefetch = 0 : i64, scratch_operands = 0 : i64, tpu.core_type = #tpu.core_type<tc>, window_params = [{transform_indices = @transform_0, window_bounds = array<i64: 128, 16>}, {pipeline_mode = #tpu.pipeline_mode<synchronous>, transform_indices = @transform_1, window_bounds = array<i64: 16, 128>}, {pipeline_mode = #tpu.pipeline_mode<synchronous>, transform_indices = @transform_2, window_bounds = array<i64: 1, 128>}, {transform_indices = @transform_3, window_bounds = array<i64: 128, 128>}]} {
    %c0 = arith.constant 0 : index
    %c0_0 = arith.constant 0 : index
    %0 = vector.load %arg1[%c0, %c0_0] : memref<128x16xbf16, #tpu.memory_space<vmem>>, vector<128x16xbf16>
    %c0_1 = arith.constant 0 : index
    %c0_2 = arith.constant 0 : index
    %1 = vector.load %arg2[%c0_1, %c0_2] : memref<16x128xbf16, #tpu.memory_space<vmem>>, vector<16x128xbf16>
    %cst = arith.constant dense<0.000000e+00> : vector<128x128xf32>
    %2 = tpu.matmul %0, %1, %cst {dimension_numbers = #tpu.dot_dimension_numbers<[1], [0], [0], [1], [0, 0, 1, 1], [], []>} : vector<128x16xbf16>, vector<16x128xbf16>, vector<128x128xf32> -> vector<128x128xf32>
    %c0_3 = arith.constant 0 : index
    %c0_4 = arith.constant 0 : index
    %3 = vector.load %arg3[%c0_3, %c0_4] : memref<1x128xf32, #tpu.memory_space<vmem>>, vector<1x128xf32>
    %4 = vector.broadcast %3 : vector<1x128xf32> to vector<128x128xf32>
    %5 = arith.addf %2, %4 : vector<128x128xf32>
    %6 = arith.negf %5 : vector<128x128xf32>
    %7 = math.exp %6 : vector<128x128xf32>
    %cst_5 = arith.constant 1.000000e+00 : f32
    %8 = vector.broadcast %cst_5 : f32 to vector<128x128xf32>
    %9 = arith.addf %8, %7 : vector<128x128xf32>
    %10 = arith.divf %8, %9 : vector<128x128xf32>
    %11 = arith.mulf %5, %10 : vector<128x128xf32>
    %c0_6 = arith.constant 0 : index
    %c0_7 = arith.constant 0 : index
    %12 = vector.load %arg4[%c0_6, %c0_7] : memref<128x128xf32, #tpu.memory_space<vmem>>, vector<128x128xf32>
    tpu.vector_store %arg4[%c0_6, %c0_7], %11 {strides = array<i32>} : memref<128x128xf32, #tpu.memory_space<vmem>>, vector<128x128xf32>,
    return
  }
  func.func @transform_0(%arg0: i32) -> (i32, i32) {
    %c0_i32 = arith.constant 0 : i32
    %c0_i32_0 = arith.constant 0 : i32
    return %arg0, %c0_i32 : i32, i32
  }
  func.func @transform_1(%arg0: i32) -> (i32, i32) {
    %c0_i32 = arith.constant 0 : i32
    %c0_i32_0 = arith.constant 0 : i32
    %c0_i32_1 = arith.constant 0 : i32
    return %c0_i32, %c0_i32_0 : i32, i32
  }
  func.func @transform_2(%arg0: i32) -> (i32, i32) {
    %c0_i32 = arith.constant 0 : i32
    %c0_i32_0 = arith.constant 0 : i32
    %c0_i32_1 = arith.constant 0 : i32
    return %c0_i32, %c0_i32_0 : i32, i32
  }
  func.func @transform_3(%arg0: i32) -> (i32, i32) {
    %c0_i32 = arith.constant 0 : i32
    %c0_i32_0 = arith.constant 0 : i32
    return %arg0, %c0_i32 : i32, i32
  }
}

module attributes {stable_mosaic.version = 11 : i64} {
  func.func @_fused_matmul_kernel(%arg0: i32, %arg1: memref<128x128xbf16, #tpu.memory_space<vmem>>, %arg2: memref<128x128xbf16, #tpu.memory_space<vmem>>, %arg3: memref<1x128xf32, #tpu.memory_space<vmem>>, %arg4: memref<128x128xf32, #tpu.memory_space<vmem>>) attributes {dimension_semantics = [#tpu.dimension_semantics<parallel>], iteration_bounds = array<i64: 1>, scalar_prefetch = 0 : i64, scratch_operands = 0 : i64, tpu.core_type = #tpu.core_type<tc>, window_params = [{transform_indices = @transform_0, window_bounds = array<i64: 128, 128>}, {pipeline_mode = #tpu.pipeline_mode<synchronous>, transform_indices = @transform_1, window_bounds = array<i64: 128, 128>}, {pipeline_mode = #tpu.pipeline_mode<synchronous>, transform_indices = @transform_2, window_bounds = array<i64: 1, 128>}, {transform_indices = @transform_3, window_bounds = array<i64: 128, 128>}]} {
    %c0 = arith.constant 0 : index
    %c0_0 = arith.constant 0 : index
    %0 = vector.load %arg1[%c0, %c0_0] : memref<128x128xbf16, #tpu.memory_space<vmem>>, vector<128x128xbf16>
    %c0_1 = arith.constant 0 : index
    %c0_2 = arith.constant 0 : index
    %1 = vector.load %arg2[%c0_1, %c0_2] : memref<128x128xbf16, #tpu.memory_space<vmem>>, vector<128x128xbf16>
    %cst = arith.constant dense<0.000000e+00> : vector<128x128xf32>
    %2 = tpu.matmul %0, %1, %cst {dimension_numbers = #tpu.dot_dimension_numbers<[1], [0], [0], [1], [0, 0, 1, 1], [], []>} : vector<128x128xbf16>, vector<128x128xbf16>, vector<128x128xf32> -> vector<128x128xf32>
    %c0_3 = arith.constant 0 : index
    %c0_4 = arith.constant 0 : index
    %3 = vector.load %arg3[%c0_3, %c0_4] : memref<1x128xf32, #tpu.memory_space<vmem>>, vector<1x128xf32>
    %4 = vector.broadcast %3 : vector<1x128xf32> to vector<128x128xf32>
    %5 = arith.addf %2, %4 : vector<128x128xf32>
    %6 = arith.negf %5 : vector<128x128xf32>
    %7 = math.exp %6 : vector<128x128xf32>
    %cst_5 = arith.constant 1.000000e+00 : f32
    %8 = vector.broadcast %cst_5 : f32 to vector<128x128xf32>
    %9 = arith.addf %8, %7 : vector<128x128xf32>
    %10 = arith.divf %8, %9 : vector<128x128xf32>
    %11 = arith.mulf %5, %10 : vector<128x128xf32>
    %c0_6 = arith.constant 0 : index
    %c0_7 = arith.constant 0 : index
    %12 = vector.load %arg4[%c0_6, %c0_7] : memref<128x128xf32, #tpu.memory_space<vmem>>, vector<128x128xf32>
    tpu.vector_store %arg4[%c0_6, %c0_7], %11 {strides = array<i32>} : memref<128x128xf32, #tpu.memory_space<vmem>>, vector<128x128xf32>,
    return
  }
  func.func @transform_0(%arg0: i32) -> (i32, i32) {
    %c0_i32 = arith.constant 0 : i32
    %c0_i32_0 = arith.constant 0 : i32
    return %arg0, %c0_i32 : i32, i32
  }
  func.func @transform_1(%arg0: i32) -> (i32, i32) {
    %c0_i32 = arith.constant 0 : i32
    %c0_i32_0 = arith.constant 0 : i32
    %c0_i32_1 = arith.constant 0 : i32
    return %c0_i32, %c0_i32_0 : i32, i32
  }
  func.func @transform_2(%arg0: i32) -> (i32, i32) {
    %c0_i32 = arith.constant 0 : i32
    %c0_i32_0 = arith.constant 0 : i32
    %c0_i32_1 = arith.constant 0 : i32
    return %c0_i32, %c0_i32_0 : i32, i32
  }
  func.func @transform_3(%arg0: i32) -> (i32, i32) {
    %c0_i32 = arith.constant 0 : i32
    %c0_i32_0 = arith.constant 0 : i32
    return %arg0, %c0_i32 : i32, i32
  }
}

module attributes {stable_mosaic.version = 11 : i64} {
  func.func @_fused_matmul_kernel(%arg0: i32, %arg1: memref<128x8xbf16, #tpu.memory_space<vmem>>, %arg2: memref<8x128xbf16, #tpu.memory_space<vmem>>, %arg3: memref<1x128xf32, #tpu.memory_space<vmem>>, %arg4: memref<128x128xf32, #tpu.memory_space<vmem>>) attributes {dimension_semantics = [#tpu.dimension_semantics<parallel>], iteration_bounds = array<i64: 1>, scalar_prefetch = 0 : i64, scratch_operands = 0 : i64, tpu.core_type = #tpu.core_type<tc>, window_params = [{transform_indices = @transform_0, window_bounds = array<i64: 128, 8>}, {pipeline_mode = #tpu.pipeline_mode<synchronous>, transform_indices = @transform_1, window_bounds = array<i64: 8, 128>}, {pipeline_mode = #tpu.pipeline_mode<synchronous>, transform_indices = @transform_2, window_bounds = array<i64: 1, 128>}, {transform_indices = @transform_3, window_bounds = array<i64: 128, 128>}]} {
    %c0 = arith.constant 0 : index
    %c0_0 = arith.constant 0 : index
    %0 = vector.load %arg1[%c0, %c0_0] : memref<128x8xbf16, #tpu.memory_space<vmem>>, vector<128x8xbf16>
    %c0_1 = arith.constant 0 : index
    %c0_2 = arith.constant 0 : index
    %1 = vector.load %arg2[%c0_1, %c0_2] : memref<8x128xbf16, #tpu.memory_space<vmem>>, vector<8x128xbf16>
    %cst = arith.constant dense<0.000000e+00> : vector<128x128xf32>
    %2 = tpu.matmul %0, %1, %cst {dimension_numbers = #tpu.dot_dimension_numbers<[1], [0], [0], [1], [0, 0, 1, 1], [], []>} : vector<128x8xbf16>, vector<8x128xbf16>, vector<128x128xf32> -> vector<128x128xf32>
    %c0_3 = arith.constant 0 : index
    %c0_4 = arith.constant 0 : index
    %3 = vector.load %arg3[%c0_3, %c0_4] : memref<1x128xf32, #tpu.memory_space<vmem>>, vector<1x128xf32>
    %4 = vector.broadcast %3 : vector<1x128xf32> to vector<128x128xf32>
    %5 = arith.addf %2, %4 : vector<128x128xf32>
    %6 = arith.negf %5 : vector<128x128xf32>
    %7 = math.exp %6 : vector<128x128xf32>
    %cst_5 = arith.constant 1.000000e+00 : f32
    %8 = vector.broadcast %cst_5 : f32 to vector<128x128xf32>
    %9 = arith.addf %8, %7 : vector<128x128xf32>
    %10 = arith.divf %8, %9 : vector<128x128xf32>
    %11 = arith.mulf %5, %10 : vector<128x128xf32>
    %c0_6 = arith.constant 0 : index
    %c0_7 = arith.constant 0 : index
    %12 = vector.load %arg4[%c0_6, %c0_7] : memref<128x128xf32, #tpu.memory_space<vmem>>, vector<128x128xf32>
    tpu.vector_store %arg4[%c0_6, %c0_7], %11 {strides = array<i32>} : memref<128x128xf32, #tpu.memory_space<vmem>>, vector<128x128xf32>,
    return
  }
  func.func @transform_0(%arg0: i32) -> (i32, i32) {
    %c0_i32 = arith.constant 0 : i32
    %c0_i32_0 = arith.constant 0 : i32
    return %arg0, %c0_i32 : i32, i32
  }
  func.func @transform_1(%arg0: i32) -> (i32, i32) {
    %c0_i32 = arith.constant 0 : i32
    %c0_i32_0 = arith.constant 0 : i32
    %c0_i32_1 = arith.constant 0 : i32
    return %c0_i32, %c0_i32_0 : i32, i32
  }
  func.func @transform_2(%arg0: i32) -> (i32, i32) {
    %c0_i32 = arith.constant 0 : i32
    %c0_i32_0 = arith.constant 0 : i32
    %c0_i32_1 = arith.constant 0 : i32
    return %c0_i32, %c0_i32_0 : i32, i32
  }
  func.func @transform_3(%arg0: i32) -> (i32, i32) {
    %c0_i32 = arith.constant 0 : i32
    %c0_i32_0 = arith.constant 0 : i32
    return %arg0, %c0_i32 : i32, i32
  }
}

module attributes {stable_mosaic.version = 11 : i64} {
  func.func @_fused_matmul_kernel(%arg0: i32, %arg1: memref<32x256xbf16, #tpu.memory_space<vmem>>, %arg2: memref<256x128xbf16, #tpu.memory_space<vmem>>, %arg3: memref<1x128xf32, #tpu.memory_space<vmem>>, %arg4: memref<32x128xf32, #tpu.memory_space<vmem>>) attributes {dimension_semantics = [#tpu.dimension_semantics<parallel>], iteration_bounds = array<i64: 1>, scalar_prefetch = 0 : i64, scratch_operands = 0 : i64, tpu.core_type = #tpu.core_type<tc>, window_params = [{transform_indices = @transform_0, window_bounds = array<i64: 32, 256>}, {pipeline_mode = #tpu.pipeline_mode<synchronous>, transform_indices = @transform_1, window_bounds = array<i64: 256, 128>}, {pipeline_mode = #tpu.pipeline_mode<synchronous>, transform_indices = @transform_2, window_bounds = array<i64: 1, 128>}, {transform_indices = @transform_3, window_bounds = array<i64: 32, 128>}]} {
    %c0 = arith.constant 0 : index
    %c0_0 = arith.constant 0 : index
    %0 = vector.load %arg1[%c0, %c0_0] : memref<32x256xbf16, #tpu.memory_space<vmem>>, vector<32x256xbf16>
    %c0_1 = arith.constant 0 : index
    %c0_2 = arith.constant 0 : index
    %1 = vector.load %arg2[%c0_1, %c0_2] : memref<256x128xbf16, #tpu.memory_space<vmem>>, vector<256x128xbf16>
    %cst = arith.constant dense<0.000000e+00> : vector<32x128xf32>
    %2 = tpu.matmul %0, %1, %cst {dimension_numbers = #tpu.dot_dimension_numbers<[1], [0], [0], [1], [0, 0, 1, 1], [], []>} : vector<32x256xbf16>, vector<256x128xbf16>, vector<32x128xf32> -> vector<32x128xf32>
    %c0_3 = arith.constant 0 : index
    %c0_4 = arith.constant 0 : index
    %3 = vector.load %arg3[%c0_3, %c0_4] : memref<1x128xf32, #tpu.memory_space<vmem>>, vector<1x128xf32>
    %4 = vector.broadcast %3 : vector<1x128xf32> to vector<32x128xf32>
    %5 = arith.addf %2, %4 : vector<32x128xf32>
    %6 = arith.negf %5 : vector<32x128xf32>
    %7 = math.exp %6 : vector<32x128xf32>
    %cst_5 = arith.constant 1.000000e+00 : f32
    %8 = vector.broadcast %cst_5 : f32 to vector<32x128xf32>
    %9 = arith.addf %8, %7 : vector<32x128xf32>
    %10 = arith.divf %8, %9 : vector<32x128xf32>
    %11 = arith.mulf %5, %10 : vector<32x128xf32>
    %c0_6 = arith.constant 0 : index
    %c0_7 = arith.constant 0 : index
    %12 = vector.load %arg4[%c0_6, %c0_7] : memref<32x128xf32, #tpu.memory_space<vmem>>, vector<32x128xf32>
    tpu.vector_store %arg4[%c0_6, %c0_7], %11 {strides = array<i32>} : memref<32x128xf32, #tpu.memory_space<vmem>>, vector<32x128xf32>,
    return
  }
  func.func @transform_0(%arg0: i32) -> (i32, i32) {
    %c0_i32 = arith.constant 0 : i32
    %c0_i32_0 = arith.constant 0 : i32
    return %arg0, %c0_i32 : i32, i32
  }
  func.func @transform_1(%arg0: i32) -> (i32, i32) {
    %c0_i32 = arith.constant 0 : i32
    %c0_i32_0 = arith.constant 0 : i32
    %c0_i32_1 = arith.constant 0 : i32
    return %c0_i32, %c0_i32_0 : i32, i32
  }
  func.func @transform_2(%arg0: i32) -> (i32, i32) {
    %c0_i32 = arith.constant 0 : i32
    %c0_i32_0 = arith.constant 0 : i32
    %c0_i32_1 = arith.constant 0 : i32
    return %c0_i32, %c0_i32_0 : i32, i32
  }
  func.func @transform_3(%arg0: i32) -> (i32, i32) {
    %c0_i32 = arith.constant 0 : i32
    %c0_i32_0 = arith.constant 0 : i32
    return %arg0, %c0_i32 : i32, i32
  }
}

module attributes {stable_mosaic.version = 11 : i64} {
  func.func @_fused_matmul_kernel(%arg0: i32, %arg1: memref<32x32xbf16, #tpu.memory_space<vmem>>, %arg2: memref<32x128xbf16, #tpu.memory_space<vmem>>, %arg3: memref<1x128xf32, #tpu.memory_space<vmem>>, %arg4: memref<32x128xf32, #tpu.memory_space<vmem>>) attributes {dimension_semantics = [#tpu.dimension_semantics<parallel>], iteration_bounds = array<i64: 1>, scalar_prefetch = 0 : i64, scratch_operands = 0 : i64, tpu.core_type = #tpu.core_type<tc>, window_params = [{transform_indices = @transform_0, window_bounds = array<i64: 32, 32>}, {pipeline_mode = #tpu.pipeline_mode<synchronous>, transform_indices = @transform_1, window_bounds = array<i64: 32, 128>}, {pipeline_mode = #tpu.pipeline_mode<synchronous>, transform_indices = @transform_2, window_bounds = array<i64: 1, 128>}, {transform_indices = @transform_3, window_bounds = array<i64: 32, 128>}]} {
    %c0 = arith.constant 0 : index
    %c0_0 = arith.constant 0 : index
    %0 = vector.load %arg1[%c0, %c0_0] : memref<32x32xbf16, #tpu.memory_space<vmem>>, vector<32x32xbf16>
    %c0_1 = arith.constant 0 : index
    %c0_2 = arith.constant 0 : index
    %1 = vector.load %arg2[%c0_1, %c0_2] : memref<32x128xbf16, #tpu.memory_space<vmem>>, vector<32x128xbf16>
    %cst = arith.constant dense<0.000000e+00> : vector<32x128xf32>
    %2 = tpu.matmul %0, %1, %cst {dimension_numbers = #tpu.dot_dimension_numbers<[1], [0], [0], [1], [0, 0, 1, 1], [], []>} : vector<32x32xbf16>, vector<32x128xbf16>, vector<32x128xf32> -> vector<32x128xf32>
    %c0_3 = arith.constant 0 : index
    %c0_4 = arith.constant 0 : index
    %3 = vector.load %arg3[%c0_3, %c0_4] : memref<1x128xf32, #tpu.memory_space<vmem>>, vector<1x128xf32>
    %4 = vector.broadcast %3 : vector<1x128xf32> to vector<32x128xf32>
    %5 = arith.addf %2, %4 : vector<32x128xf32>
    %6 = arith.negf %5 : vector<32x128xf32>
    %7 = math.exp %6 : vector<32x128xf32>
    %cst_5 = arith.constant 1.000000e+00 : f32
    %8 = vector.broadcast %cst_5 : f32 to vector<32x128xf32>
    %9 = arith.addf %8, %7 : vector<32x128xf32>
    %10 = arith.divf %8, %9 : vector<32x128xf32>
    %11 = arith.mulf %5, %10 : vector<32x128xf32>
    %c0_6 = arith.constant 0 : index
    %c0_7 = arith.constant 0 : index
    %12 = vector.load %arg4[%c0_6, %c0_7] : memref<32x128xf32, #tpu.memory_space<vmem>>, vector<32x128xf32>
    tpu.vector_store %arg4[%c0_6, %c0_7], %11 {strides = array<i32>} : memref<32x128xf32, #tpu.memory_space<vmem>>, vector<32x128xf32>,
    return
  }
  func.func @transform_0(%arg0: i32) -> (i32, i32) {
    %c0_i32 = arith.constant 0 : i32
    %c0_i32_0 = arith.constant 0 : i32
    return %arg0, %c0_i32 : i32, i32
  }
  func.func @transform_1(%arg0: i32) -> (i32, i32) {
    %c0_i32 = arith.constant 0 : i32
    %c0_i32_0 = arith.constant 0 : i32
    %c0_i32_1 = arith.constant 0 : i32
    return %c0_i32, %c0_i32_0 : i32, i32
  }
  func.func @transform_2(%arg0: i32) -> (i32, i32) {
    %c0_i32 = arith.constant 0 : i32
    %c0_i32_0 = arith.constant 0 : i32
    %c0_i32_1 = arith.constant 0 : i32
    return %c0_i32, %c0_i32_0 : i32, i32
  }
  func.func @transform_3(%arg0: i32) -> (i32, i32) {
    %c0_i32 = arith.constant 0 : i32
    %c0_i32_0 = arith.constant 0 : i32
    return %arg0, %c0_i32 : i32, i32
  }
}

module attributes {stable_mosaic.version = 11 : i64} {
  func.func @_fused_matmul_kernel(%arg0: i32, %arg1: memref<32x16xbf16, #tpu.memory_space<vmem>>, %arg2: memref<16x128xbf16, #tpu.memory_space<vmem>>, %arg3: memref<1x128xf32, #tpu.memory_space<vmem>>, %arg4: memref<32x128xf32, #tpu.memory_space<vmem>>) attributes {dimension_semantics = [#tpu.dimension_semantics<parallel>], iteration_bounds = array<i64: 1>, scalar_prefetch = 0 : i64, scratch_operands = 0 : i64, tpu.core_type = #tpu.core_type<tc>, window_params = [{transform_indices = @transform_0, window_bounds = array<i64: 32, 16>}, {pipeline_mode = #tpu.pipeline_mode<synchronous>, transform_indices = @transform_1, window_bounds = array<i64: 16, 128>}, {pipeline_mode = #tpu.pipeline_mode<synchronous>, transform_indices = @transform_2, window_bounds = array<i64: 1, 128>}, {transform_indices = @transform_3, window_bounds = array<i64: 32, 128>}]} {
    %c0 = arith.constant 0 : index
    %c0_0 = arith.constant 0 : index
    %0 = vector.load %arg1[%c0, %c0_0] : memref<32x16xbf16, #tpu.memory_space<vmem>>, vector<32x16xbf16>
    %c0_1 = arith.constant 0 : index
    %c0_2 = arith.constant 0 : index
    %1 = vector.load %arg2[%c0_1, %c0_2] : memref<16x128xbf16, #tpu.memory_space<vmem>>, vector<16x128xbf16>
    %cst = arith.constant dense<0.000000e+00> : vector<32x128xf32>
    %2 = tpu.matmul %0, %1, %cst {dimension_numbers = #tpu.dot_dimension_numbers<[1], [0], [0], [1], [0, 0, 1, 1], [], []>} : vector<32x16xbf16>, vector<16x128xbf16>, vector<32x128xf32> -> vector<32x128xf32>
    %c0_3 = arith.constant 0 : index
    %c0_4 = arith.constant 0 : index
    %3 = vector.load %arg3[%c0_3, %c0_4] : memref<1x128xf32, #tpu.memory_space<vmem>>, vector<1x128xf32>
    %4 = vector.broadcast %3 : vector<1x128xf32> to vector<32x128xf32>
    %5 = arith.addf %2, %4 : vector<32x128xf32>
    %6 = arith.negf %5 : vector<32x128xf32>
    %7 = math.exp %6 : vector<32x128xf32>
    %cst_5 = arith.constant 1.000000e+00 : f32
    %8 = vector.broadcast %cst_5 : f32 to vector<32x128xf32>
    %9 = arith.addf %8, %7 : vector<32x128xf32>
    %10 = arith.divf %8, %9 : vector<32x128xf32>
    %11 = arith.mulf %5, %10 : vector<32x128xf32>
    %c0_6 = arith.constant 0 : index
    %c0_7 = arith.constant 0 : index
    %12 = vector.load %arg4[%c0_6, %c0_7] : memref<32x128xf32, #tpu.memory_space<vmem>>, vector<32x128xf32>
    tpu.vector_store %arg4[%c0_6, %c0_7], %11 {strides = array<i32>} : memref<32x128xf32, #tpu.memory_space<vmem>>, vector<32x128xf32>,
    return
  }
  func.func @transform_0(%arg0: i32) -> (i32, i32) {
    %c0_i32 = arith.constant 0 : i32
    %c0_i32_0 = arith.constant 0 : i32
    return %arg0, %c0_i32 : i32, i32
  }
  func.func @transform_1(%arg0: i32) -> (i32, i32) {
    %c0_i32 = arith.constant 0 : i32
    %c0_i32_0 = arith.constant 0 : i32
    %c0_i32_1 = arith.constant 0 : i32
    return %c0_i32, %c0_i32_0 : i32, i32
  }
  func.func @transform_2(%arg0: i32) -> (i32, i32) {
    %c0_i32 = arith.constant 0 : i32
    %c0_i32_0 = arith.constant 0 : i32
    %c0_i32_1 = arith.constant 0 : i32
    return %c0_i32, %c0_i32_0 : i32, i32
  }
  func.func @transform_3(%arg0: i32) -> (i32, i32) {
    %c0_i32 = arith.constant 0 : i32
    %c0_i32_0 = arith.constant 0 : i32
    return %arg0, %c0_i32 : i32, i32
  }
}

module attributes {stable_mosaic.version = 11 : i64} {
  func.func @_fused_matmul_kernel(%arg0: i32, %arg1: memref<16x384xbf16, #tpu.memory_space<vmem>>, %arg2: memref<384x128xbf16, #tpu.memory_space<vmem>>, %arg3: memref<1x128xf32, #tpu.memory_space<vmem>>, %arg4: memref<16x128xf32, #tpu.memory_space<vmem>>) attributes {dimension_semantics = [#tpu.dimension_semantics<parallel>], iteration_bounds = array<i64: 1>, scalar_prefetch = 0 : i64, scratch_operands = 0 : i64, tpu.core_type = #tpu.core_type<tc>, window_params = [{transform_indices = @transform_0, window_bounds = array<i64: 16, 384>}, {pipeline_mode = #tpu.pipeline_mode<synchronous>, transform_indices = @transform_1, window_bounds = array<i64: 384, 128>}, {pipeline_mode = #tpu.pipeline_mode<synchronous>, transform_indices = @transform_2, window_bounds = array<i64: 1, 128>}, {transform_indices = @transform_3, window_bounds = array<i64: 16, 128>}]} {
    %c0 = arith.constant 0 : index
    %c0_0 = arith.constant 0 : index
    %0 = vector.load %arg1[%c0, %c0_0] : memref<16x384xbf16, #tpu.memory_space<vmem>>, vector<16x384xbf16>
    %c0_1 = arith.constant 0 : index
    %c0_2 = arith.constant 0 : index
    %1 = vector.load %arg2[%c0_1, %c0_2] : memref<384x128xbf16, #tpu.memory_space<vmem>>, vector<384x128xbf16>
    %cst = arith.constant dense<0.000000e+00> : vector<16x128xf32>
    %2 = tpu.matmul %0, %1, %cst {dimension_numbers = #tpu.dot_dimension_numbers<[1], [0], [0], [1], [0, 0, 1, 1], [], []>} : vector<16x384xbf16>, vector<384x128xbf16>, vector<16x128xf32> -> vector<16x128xf32>
    %c0_3 = arith.constant 0 : index
    %c0_4 = arith.constant 0 : index
    %3 = vector.load %arg3[%c0_3, %c0_4] : memref<1x128xf32, #tpu.memory_space<vmem>>, vector<1x128xf32>
    %4 = vector.broadcast %3 : vector<1x128xf32> to vector<16x128xf32>
    %5 = arith.addf %2, %4 : vector<16x128xf32>
    %6 = arith.negf %5 : vector<16x128xf32>
    %7 = math.exp %6 : vector<16x128xf32>
    %cst_5 = arith.constant 1.000000e+00 : f32
    %8 = vector.broadcast %cst_5 : f32 to vector<16x128xf32>
    %9 = arith.addf %8, %7 : vector<16x128xf32>
    %10 = arith.divf %8, %9 : vector<16x128xf32>
    %11 = arith.mulf %5, %10 : vector<16x128xf32>
    %c0_6 = arith.constant 0 : index
    %c0_7 = arith.constant 0 : index
    %12 = vector.load %arg4[%c0_6, %c0_7] : memref<16x128xf32, #tpu.memory_space<vmem>>, vector<16x128xf32>
    tpu.vector_store %arg4[%c0_6, %c0_7], %11 {strides = array<i32>} : memref<16x128xf32, #tpu.memory_space<vmem>>, vector<16x128xf32>,
    return
  }
  func.func @transform_0(%arg0: i32) -> (i32, i32) {
    %c0_i32 = arith.constant 0 : i32
    %c0_i32_0 = arith.constant 0 : i32
    return %arg0, %c0_i32 : i32, i32
  }
  func.func @transform_1(%arg0: i32) -> (i32, i32) {
    %c0_i32 = arith.constant 0 : i32
    %c0_i32_0 = arith.constant 0 : i32
    %c0_i32_1 = arith.constant 0 : i32
    return %c0_i32, %c0_i32_0 : i32, i32
  }
  func.func @transform_2(%arg0: i32) -> (i32, i32) {
    %c0_i32 = arith.constant 0 : i32
    %c0_i32_0 = arith.constant 0 : i32
    %c0_i32_1 = arith.constant 0 : i32
    return %c0_i32, %c0_i32_0 : i32, i32
  }
  func.func @transform_3(%arg0: i32) -> (i32, i32) {
    %c0_i32 = arith.constant 0 : i32
    %c0_i32_0 = arith.constant 0 : i32
    return %arg0, %c0_i32 : i32, i32
  }
}

module attributes {stable_mosaic.version = 11 : i64} {
  func.func @_fused_matmul_kernel(%arg0: i32, %arg1: memref<16x64xbf16, #tpu.memory_space<vmem>>, %arg2: memref<64x128xbf16, #tpu.memory_space<vmem>>, %arg3: memref<1x128xf32, #tpu.memory_space<vmem>>, %arg4: memref<16x128xf32, #tpu.memory_space<vmem>>) attributes {dimension_semantics = [#tpu.dimension_semantics<parallel>], iteration_bounds = array<i64: 1>, scalar_prefetch = 0 : i64, scratch_operands = 0 : i64, tpu.core_type = #tpu.core_type<tc>, window_params = [{transform_indices = @transform_0, window_bounds = array<i64: 16, 64>}, {pipeline_mode = #tpu.pipeline_mode<synchronous>, transform_indices = @transform_1, window_bounds = array<i64: 64, 128>}, {pipeline_mode = #tpu.pipeline_mode<synchronous>, transform_indices = @transform_2, window_bounds = array<i64: 1, 128>}, {transform_indices = @transform_3, window_bounds = array<i64: 16, 128>}]} {
    %c0 = arith.constant 0 : index
    %c0_0 = arith.constant 0 : index
    %0 = vector.load %arg1[%c0, %c0_0] : memref<16x64xbf16, #tpu.memory_space<vmem>>, vector<16x64xbf16>
    %c0_1 = arith.constant 0 : index
    %c0_2 = arith.constant 0 : index
    %1 = vector.load %arg2[%c0_1, %c0_2] : memref<64x128xbf16, #tpu.memory_space<vmem>>, vector<64x128xbf16>
    %cst = arith.constant dense<0.000000e+00> : vector<16x128xf32>
    %2 = tpu.matmul %0, %1, %cst {dimension_numbers = #tpu.dot_dimension_numbers<[1], [0], [0], [1], [0, 0, 1, 1], [], []>} : vector<16x64xbf16>, vector<64x128xbf16>, vector<16x128xf32> -> vector<16x128xf32>
    %c0_3 = arith.constant 0 : index
    %c0_4 = arith.constant 0 : index
    %3 = vector.load %arg3[%c0_3, %c0_4] : memref<1x128xf32, #tpu.memory_space<vmem>>, vector<1x128xf32>
    %4 = vector.broadcast %3 : vector<1x128xf32> to vector<16x128xf32>
    %5 = arith.addf %2, %4 : vector<16x128xf32>
    %6 = arith.negf %5 : vector<16x128xf32>
    %7 = math.exp %6 : vector<16x128xf32>
    %cst_5 = arith.constant 1.000000e+00 : f32
    %8 = vector.broadcast %cst_5 : f32 to vector<16x128xf32>
    %9 = arith.addf %8, %7 : vector<16x128xf32>
    %10 = arith.divf %8, %9 : vector<16x128xf32>
    %11 = arith.mulf %5, %10 : vector<16x128xf32>
    %c0_6 = arith.constant 0 : index
    %c0_7 = arith.constant 0 : index
    %12 = vector.load %arg4[%c0_6, %c0_7] : memref<16x128xf32, #tpu.memory_space<vmem>>, vector<16x128xf32>
    tpu.vector_store %arg4[%c0_6, %c0_7], %11 {strides = array<i32>} : memref<16x128xf32, #tpu.memory_space<vmem>>, vector<16x128xf32>,
    return
  }
  func.func @transform_0(%arg0: i32) -> (i32, i32) {
    %c0_i32 = arith.constant 0 : i32
    %c0_i32_0 = arith.constant 0 : i32
    return %arg0, %c0_i32 : i32, i32
  }
  func.func @transform_1(%arg0: i32) -> (i32, i32) {
    %c0_i32 = arith.constant 0 : i32
    %c0_i32_0 = arith.constant 0 : i32
    %c0_i32_1 = arith.constant 0 : i32
    return %c0_i32, %c0_i32_0 : i32, i32
  }
  func.func @transform_2(%arg0: i32) -> (i32, i32) {
    %c0_i32 = arith.constant 0 : i32
    %c0_i32_0 = arith.constant 0 : i32
    %c0_i32_1 = arith.constant 0 : i32
    return %c0_i32, %c0_i32_0 : i32, i32
  }
  func.func @transform_3(%arg0: i32) -> (i32, i32) {
    %c0_i32 = arith.constant 0 : i32
    %c0_i32_0 = arith.constant 0 : i32
    return %arg0, %c0_i32 : i32, i32
  }
}

module attributes {stable_mosaic.version = 11 : i64} {
  func.func @_fused_matmul_kernel(%arg0: i32, %arg1: memref<16x32xbf16, #tpu.memory_space<vmem>>, %arg2: memref<32x128xbf16, #tpu.memory_space<vmem>>, %arg3: memref<1x128xf32, #tpu.memory_space<vmem>>, %arg4: memref<16x128xf32, #tpu.memory_space<vmem>>) attributes {dimension_semantics = [#tpu.dimension_semantics<parallel>], iteration_bounds = array<i64: 1>, scalar_prefetch = 0 : i64, scratch_operands = 0 : i64, tpu.core_type = #tpu.core_type<tc>, window_params = [{transform_indices = @transform_0, window_bounds = array<i64: 16, 32>}, {pipeline_mode = #tpu.pipeline_mode<synchronous>, transform_indices = @transform_1, window_bounds = array<i64: 32, 128>}, {pipeline_mode = #tpu.pipeline_mode<synchronous>, transform_indices = @transform_2, window_bounds = array<i64: 1, 128>}, {transform_indices = @transform_3, window_bounds = array<i64: 16, 128>}]} {
    %c0 = arith.constant 0 : index
    %c0_0 = arith.constant 0 : index
    %0 = vector.load %arg1[%c0, %c0_0] : memref<16x32xbf16, #tpu.memory_space<vmem>>, vector<16x32xbf16>
    %c0_1 = arith.constant 0 : index
    %c0_2 = arith.constant 0 : index
    %1 = vector.load %arg2[%c0_1, %c0_2] : memref<32x128xbf16, #tpu.memory_space<vmem>>, vector<32x128xbf16>
    %cst = arith.constant dense<0.000000e+00> : vector<16x128xf32>
    %2 = tpu.matmul %0, %1, %cst {dimension_numbers = #tpu.dot_dimension_numbers<[1], [0], [0], [1], [0, 0, 1, 1], [], []>} : vector<16x32xbf16>, vector<32x128xbf16>, vector<16x128xf32> -> vector<16x128xf32>
    %c0_3 = arith.constant 0 : index
    %c0_4 = arith.constant 0 : index
    %3 = vector.load %arg3[%c0_3, %c0_4] : memref<1x128xf32, #tpu.memory_space<vmem>>, vector<1x128xf32>
    %4 = vector.broadcast %3 : vector<1x128xf32> to vector<16x128xf32>
    %5 = arith.addf %2, %4 : vector<16x128xf32>
    %6 = arith.negf %5 : vector<16x128xf32>
    %7 = math.exp %6 : vector<16x128xf32>
    %cst_5 = arith.constant 1.000000e+00 : f32
    %8 = vector.broadcast %cst_5 : f32 to vector<16x128xf32>
    %9 = arith.addf %8, %7 : vector<16x128xf32>
    %10 = arith.divf %8, %9 : vector<16x128xf32>
    %11 = arith.mulf %5, %10 : vector<16x128xf32>
    %c0_6 = arith.constant 0 : index
    %c0_7 = arith.constant 0 : index
    %12 = vector.load %arg4[%c0_6, %c0_7] : memref<16x128xf32, #tpu.memory_space<vmem>>, vector<16x128xf32>
    tpu.vector_store %arg4[%c0_6, %c0_7], %11 {strides = array<i32>} : memref<16x128xf32, #tpu.memory_space<vmem>>, vector<16x128xf32>,
    return
  }
  func.func @transform_0(%arg0: i32) -> (i32, i32) {
    %c0_i32 = arith.constant 0 : i32
    %c0_i32_0 = arith.constant 0 : i32
    return %arg0, %c0_i32 : i32, i32
  }
  func.func @transform_1(%arg0: i32) -> (i32, i32) {
    %c0_i32 = arith.constant 0 : i32
    %c0_i32_0 = arith.constant 0 : i32
    %c0_i32_1 = arith.constant 0 : i32
    return %c0_i32, %c0_i32_0 : i32, i32
  }
  func.func @transform_2(%arg0: i32) -> (i32, i32) {
    %c0_i32 = arith.constant 0 : i32
    %c0_i32_0 = arith.constant 0 : i32
    %c0_i32_1 = arith.constant 0 : i32
    return %c0_i32, %c0_i32_0 : i32, i32
  }
  func.func @transform_3(%arg0: i32) -> (i32, i32) {
    %c0_i32 = arith.constant 0 : i32
    %c0_i32_0 = arith.constant 0 : i32
    return %arg0, %c0_i32 : i32, i32
  }
}

module attributes {stable_mosaic.version = 11 : i64} {
  func.func @_fused_matmul_kernel(%arg0: i32, %arg1: memref<16x640xbf16, #tpu.memory_space<vmem>>, %arg2: memref<640x128xbf16, #tpu.memory_space<vmem>>, %arg3: memref<1x128xf32, #tpu.memory_space<vmem>>, %arg4: memref<16x128xf32, #tpu.memory_space<vmem>>) attributes {dimension_semantics = [#tpu.dimension_semantics<parallel>], iteration_bounds = array<i64: 1>, scalar_prefetch = 0 : i64, scratch_operands = 0 : i64, tpu.core_type = #tpu.core_type<tc>, window_params = [{transform_indices = @transform_0, window_bounds = array<i64: 16, 640>}, {pipeline_mode = #tpu.pipeline_mode<synchronous>, transform_indices = @transform_1, window_bounds = array<i64: 640, 128>}, {pipeline_mode = #tpu.pipeline_mode<synchronous>, transform_indices = @transform_2, window_bounds = array<i64: 1, 128>}, {transform_indices = @transform_3, window_bounds = array<i64: 16, 128>}]} {
    %c0 = arith.constant 0 : index
    %c0_0 = arith.constant 0 : index
    %0 = vector.load %arg1[%c0, %c0_0] : memref<16x640xbf16, #tpu.memory_space<vmem>>, vector<16x640xbf16>
    %c0_1 = arith.constant 0 : index
    %c0_2 = arith.constant 0 : index
    %1 = vector.load %arg2[%c0_1, %c0_2] : memref<640x128xbf16, #tpu.memory_space<vmem>>, vector<640x128xbf16>
    %cst = arith.constant dense<0.000000e+00> : vector<16x128xf32>
    %2 = tpu.matmul %0, %1, %cst {dimension_numbers = #tpu.dot_dimension_numbers<[1], [0], [0], [1], [0, 0, 1, 1], [], []>} : vector<16x640xbf16>, vector<640x128xbf16>, vector<16x128xf32> -> vector<16x128xf32>
    %c0_3 = arith.constant 0 : index
    %c0_4 = arith.constant 0 : index
    %3 = vector.load %arg3[%c0_3, %c0_4] : memref<1x128xf32, #tpu.memory_space<vmem>>, vector<1x128xf32>
    %4 = vector.broadcast %3 : vector<1x128xf32> to vector<16x128xf32>
    %5 = arith.addf %2, %4 : vector<16x128xf32>
    %6 = arith.negf %5 : vector<16x128xf32>
    %7 = math.exp %6 : vector<16x128xf32>
    %cst_5 = arith.constant 1.000000e+00 : f32
    %8 = vector.broadcast %cst_5 : f32 to vector<16x128xf32>
    %9 = arith.addf %8, %7 : vector<16x128xf32>
    %10 = arith.divf %8, %9 : vector<16x128xf32>
    %11 = arith.mulf %5, %10 : vector<16x128xf32>
    %c0_6 = arith.constant 0 : index
    %c0_7 = arith.constant 0 : index
    %12 = vector.load %arg4[%c0_6, %c0_7] : memref<16x128xf32, #tpu.memory_space<vmem>>, vector<16x128xf32>
    tpu.vector_store %arg4[%c0_6, %c0_7], %11 {strides = array<i32>} : memref<16x128xf32, #tpu.memory_space<vmem>>, vector<16x128xf32>,
    return
  }
  func.func @transform_0(%arg0: i32) -> (i32, i32) {
    %c0_i32 = arith.constant 0 : i32
    %c0_i32_0 = arith.constant 0 : i32
    return %arg0, %c0_i32 : i32, i32
  }
  func.func @transform_1(%arg0: i32) -> (i32, i32) {
    %c0_i32 = arith.constant 0 : i32
    %c0_i32_0 = arith.constant 0 : i32
    %c0_i32_1 = arith.constant 0 : i32
    return %c0_i32, %c0_i32_0 : i32, i32
  }
  func.func @transform_2(%arg0: i32) -> (i32, i32) {
    %c0_i32 = arith.constant 0 : i32
    %c0_i32_0 = arith.constant 0 : i32
    %c0_i32_1 = arith.constant 0 : i32
    return %c0_i32, %c0_i32_0 : i32, i32
  }
  func.func @transform_3(%arg0: i32) -> (i32, i32) {
    %c0_i32 = arith.constant 0 : i32
    %c0_i32_0 = arith.constant 0 : i32
    return %arg0, %c0_i32 : i32, i32
  }
}

</mosaic_0001>

<llo_original>
// kernel: forward.24
$region0: #{forward.24}
  #allocation0 [shape = 'u32[]', space=smem, size = 0x4, offset = 0x4, fixed_abs, tag = 'smem constant byte address 0x4 - core index']
  #allocation1 [shape = 'u32[144,128]{1,0:T(1,128)}', space=vmem, size = 0x12000, scoped, tag = 'internal scratch']
  %s0 = inlined_call_operand.vmem [shape: bf16[128,16], index: 0, kind: input, shape index: {}]
  %s1 = inlined_call_operand.vmem [shape: bf16[16,128], index: 1, kind: input, shape index: {}]
  %s2 = inlined_call_operand.vmem [shape: f32[1,128], index: 2, kind: input, shape index: {}]
  %s3 = inlined_call_operand.vmem [shape: f32[128,128], index: 3, kind: output, shape index: {}]
  %s4 = sld [smem:[#allocation0]]
  $region22: #{forward.24} parent=0
    _
  %s6 = ssub.s32 1, %s4
  %s7 = scalar_select 0, %s6, %s4
  // Predicated region
  $region2: #{forward.24} parent=0 // pred_check
    _
  $region3: #{forward.24} parent=0 // pred_check_branch
    %9 = sbr.rel (0) target = $region5
  $region4: #{forward.24} parent=0 // pred_region
    _
  $region5: #{forward.24} parent=0 // pred_fallthru
    _
  // Predicated region
  $region6: #{forward.24} parent=0 // pred_check
    _
  $region7: #{forward.24} parent=0 // pred_check_branch
    %11 = sbr.rel (0) target = $region9
  $region8: #{forward.24} parent=0 // pred_region
    _
  $region9: #{forward.24} parent=0 // pred_fallthru
    _
  // Predicated region
  $region10: #{forward.24} parent=0 // pred_check
    _
  $region11: #{forward.24} parent=0 // pred_check_branch
    %13 = sbr.rel (0) target = $region13
  $region12: #{forward.24} parent=0 // pred_region
    _
  $region13: #{forward.24} parent=0 // pred_fallthru
    _
  %v15 = vld [vmem:[%s0] sm:$0xf]
  %v16 = vld [vmem:[%s0 + $0x4] sm:$0xf]
  %v17 = vld [vmem:[%s0 + $0x8] sm:$0xf]
  %v18 = vld [vmem:[%s0 + $0xc] sm:$0xf]
  %v19 = vld [vmem:[%s0 + $0x10] sm:$0xf]
  %v20 = vld [vmem:[%s0 + $0x14] sm:$0xf]
  %v21 = vld [vmem:[%s0 + $0x18] sm:$0xf]
  %v22 = vld [vmem:[%s0 + $0x1c] sm:$0xf]
  %v23 = vld [vmem:[%s0 + $0x20] sm:$0xf]
  %v24 = vld [vmem:[%s0 + $0x24] sm:$0xf]
  %v25 = vld [vmem:[%s0 + $0x28] sm:$0xf]
  %v26 = vld [vmem:[%s0 + $0x2c] sm:$0xf]
  %v27 = vld [vmem:[%s0 + $0x30] sm:$0xf]
  %v28 = vld [vmem:[%s0 + $0x34] sm:$0xf]
  %v29 = vld [vmem:[%s0 + $0x38] sm:$0xf]
  %v30 = vld [vmem:[%s0 + $0x3c] sm:$0xf]
  %v31 = vld [vmem:[%s1] sm:$0xf]
  %v32 = vld [vmem:[%s1 + $0x4] sm:$0xf]
  %v33 = vld [vmem:[%s2] sm:$0x1]
  %v35 = vlaneseq
  %v36 = vshrl.u32 %v35, 7
  %v37 = vsub.s32 0, %v36
  %v38 = vrot.slane %v33, %v37
  %v56 = vunpack.c.l.b16 %v15
  %v57 = vunpack.c.l.b16 %v16
  %v58 = vunpack.c.l.b16 %v17
  %v59 = vunpack.c.l.b16 %v18
  %v60 = vunpack.c.l.b16 %v19
  %v61 = vunpack.c.l.b16 %v20
  %v62 = vunpack.c.l.b16 %v21
  %v63 = vunpack.c.l.b16 %v22
  %v64 = vunpack.c.l.b16 %v23
  %v65 = vunpack.c.l.b16 %v24
  %v66 = vunpack.c.l.b16 %v25
  %v67 = vunpack.c.l.b16 %v26
  %v68 = vunpack.c.l.b16 %v27
  %v69 = vunpack.c.l.b16 %v28
  %v70 = vunpack.c.l.b16 %v29
  %v71 = vunpack.c.l.b16 %v30
  %v72 = vpack.c.b16 %v57, %v56
  %v73 = vpack.c.b16 %v59, %v58
  %v74 = vpack.c.b16 %v61, %v60
  %v75 = vpack.c.b16 %v63, %v62
  %v76 = vpack.c.b16 %v65, %v64
  %v77 = vpack.c.b16 %v67, %v66
  %v78 = vpack.c.b16 %v69, %v68
  %v79 = vpack.c.b16 %v71, %v70
  %v82 = vunpack.c.l.b16 %v31
  %v83 = vunpack.c.l.b16 %v32
  %v84 = vpack.c.b16 %v83, %v82
  %vm86 = vcmask 130048
  %v88 = vsel %vm86, %v72, 0
  %v91 = vsel %vm86, %v73, 0
  %v94 = vsel %vm86, %v74, 0
  %v97 = vsel %vm86, %v75, 0
  %v100 = vsel %vm86, %v76, 0
  %v103 = vsel %vm86, %v77, 0
  %v106 = vsel %vm86, %v78, 0
  %v109 = vsel %vm86, %v79, 0
  %111 = vmatprep.subr.bf16.mxu0 0
  %112 = vmatpush1.bf16.msra.mxu0 %v84
  %113 = vmatprep.subr.bf16.mxu0 0
  %114 = vmatpush1.bf16.msra.mxu0 0
  %115 = vmatprep.subr.bf16.mxu0 0
  %116 = vmatpush1.bf16.msra.mxu0 0
  %117 = vmatprep.subr.bf16.mxu0 0
  %118 = vmatpush1.bf16.msra.mxu0 0
  %119 = vmatprep.subr.bf16.mxu0 0
  %120 = vmatpush1.bf16.msra.mxu0 0
  %121 = vmatprep.subr.bf16.mxu0 0
  %122 = vmatpush1.bf16.msra.mxu0 0
  %123 = vmatprep.subr.bf16.mxu0 0
  %124 = vmatpush1.bf16.msra.mxu0 0
  %125 = vmatprep.subr.bf16.mxu0 0
  %126 = vmatpush1.bf16.msra.mxu0 0
  %127 = vmatprep.subr.bf16.mxu0 0
  %128 = vmatpush1.bf16.msra.mxu0 0
  %129 = vmatprep.subr.bf16.mxu0 0
  %130 = vmatpush1.bf16.msra.mxu0 0
  %131 = vmatprep.subr.bf16.mxu0 0
  %132 = vmatpush1.bf16.msra.mxu0 0
  %133 = vmatprep.subr.bf16.mxu0 0
  %134 = vmatpush1.bf16.msra.mxu0 0
  %135 = vmatprep.subr.bf16.mxu0 0
  %136 = vmatpush1.bf16.msra.mxu0 0
  %137 = vmatprep.subr.bf16.mxu0 0
  %138 = vmatpush1.bf16.msra.mxu0 0
  %139 = vmatprep.subr.bf16.mxu0 0
  %140 = vmatpush1.bf16.msra.mxu0 0
  %141 = vmatprep.subr.bf16.mxu0 0
  %142 = vmatpush1.bf16.msra.mxu0 0
  %143 = vmatprep.mubr.bf16.mxu0 0
  %144 = vmatmul.mubr.bf16.gmra.mrb[0].mxu0 %v88
  %v145 = vpop.f32.mrb[0].mxu0
  %v146 = vadd.f32 %v38, %v145
  %v147 = vpop.f32.mrb[0].mxu0
  %v148 = vpop.f32.mrb[0].mxu0
  %v149 = vadd.f32 %v38, %v148
  %v150 = vpop.f32.mrb[0].mxu0
  %151 = vmatprep.mubr.bf16.mxu0 0
  %152 = vmatmul.mubr.bf16.gmra.mrb[0].mxu0 %v91
  %v153 = vpop.f32.mrb[0].mxu0
  %v154 = vadd.f32 %v38, %v153
  %v155 = vpop.f32.mrb[0].mxu0
  %v156 = vpop.f32.mrb[0].mxu0
  %v157 = vadd.f32 %v38, %v156
  %v158 = vpop.f32.mrb[0].mxu0
  %159 = vmatprep.mubr.bf16.mxu0 0
  %160 = vmatmul.mubr.bf16.gmra.mrb[0].mxu0 %v94
  %v161 = vpop.f32.mrb[0].mxu0
  %v162 = vadd.f32 %v38, %v161
  %v163 = vpop.f32.mrb[0].mxu0
  %v164 = vpop.f32.mrb[0].mxu0
  %v165 = vadd.f32 %v38, %v164
  %v166 = vpop.f32.mrb[0].mxu0
  %167 = vmatprep.mubr.bf16.mxu0 0
  %168 = vmatmul.mubr.bf16.gmra.mrb[0].mxu0 %v97
  %v169 = vpop.f32.mrb[0].mxu0
  %v170 = vadd.f32 %v38, %v169
  %v171 = vpop.f32.mrb[0].mxu0
  %v172 = vpop.f32.mrb[0].mxu0
  %v173 = vadd.f32 %v38, %v172
  %v174 = vpop.f32.mrb[0].mxu0
  %175 = vmatprep.mubr.bf16.mxu0 0
  %176 = vmatmul.mubr.bf16.gmra.mrb[0].mxu0 %v100
  %v177 = vpop.f32.mrb[0].mxu0
  %v178 = vadd.f32 %v38, %v177
  %v179 = vpop.f32.mrb[0].mxu0
  %v180 = vpop.f32.mrb[0].mxu0
  %v181 = vadd.f32 %v38, %v180
  %v182 = vpop.f32.mrb[0].mxu0
  %183 = vmatprep.mubr.bf16.mxu0 0
  %184 = vmatmul.mubr.bf16.gmra.mrb[0].mxu0 %v103
  %v185 = vpop.f32.mrb[0].mxu0
  %v186 = vadd.f32 %v38, %v185
  %v187 = vpop.f32.mrb[0].mxu0
  %v188 = vpop.f32.mrb[0].mxu0
  %v189 = vadd.f32 %v38, %v188
  %v190 = vpop.f32.mrb[0].mxu0
  %191 = vmatprep.mubr.bf16.mxu0 0
  %192 = vmatmul.mubr.bf16.gmra.mrb[0].mxu0 %v106
  %v193 = vpop.f32.mrb[0].mxu0
  %v194 = vadd.f32 %v38, %v193
  %v195 = vpop.f32.mrb[0].mxu0
  %v196 = vpop.f32.mrb[0].mxu0
  %v197 = vadd.f32 %v38, %v196
  %v198 = vpop.f32.mrb[0].mxu0
  %199 = vmatprep.mubr.bf16.mxu0 0
  %200 = vmatmul.mubr.bf16.gmra.mrb[0].mxu0 %v109
  %v201 = vpop.f32.mrb[0].mxu0
  %v202 = vadd.f32 %v38, %v201
  %v203 = vpop.f32.mrb[0].mxu0
  %v204 = vpop.f32.mrb[0].mxu0
  %v205 = vadd.f32 %v38, %v204
  %v206 = vpop.f32.mrb[0].mxu0
  %207 = vdwg.mxu0
  %v208 = vxor.u32 %v146, 2147483648
  %v209 = vxor.u32 %v149, 2147483648
  %v210 = vxor.u32 %v154, 2147483648
  %v211 = vxor.u32 %v157, 2147483648
  %v212 = vxor.u32 %v162, 2147483648
  %v213 = vxor.u32 %v165, 2147483648
  %v214 = vxor.u32 %v170, 2147483648
  %v215 = vxor.u32 %v173, 2147483648
  %v216 = vxor.u32 %v178, 2147483648
  %v217 = vxor.u32 %v181, 2147483648
  %v218 = vxor.u32 %v186, 2147483648
  %v219 = vxor.u32 %v189, 2147483648
  %v220 = vxor.u32 %v194, 2147483648
  %v221 = vxor.u32 %v197, 2147483648
  %v222 = vxor.u32 %v202, 2147483648
  %v223 = vxor.u32 %v205, 2147483648
  %v224 = vmul.f32 %v208, 1.442695
  %v225 = vpow.pop %v224
  %v226 = vmul.f32 %v209, 1.442695
  %v227 = vpow.pop %v226
  %v228 = vmul.f32 %v210, 1.442695
  %v229 = vpow.pop %v228
  %v230 = vmul.f32 %v211, 1.442695
  %v231 = vpow.pop %v230
  %v232 = vmul.f32 %v212, 1.442695
  %v233 = vpow.pop %v232
  %v234 = vmul.f32 %v213, 1.442695
  %v235 = vpow.pop %v234
  %v236 = vmul.f32 %v214, 1.442695
  %v237 = vpow.pop %v236
  %v238 = vmul.f32 %v215, 1.442695
  %v239 = vpow.pop %v238
  %v240 = vmul.f32 %v216, 1.442695
  %v241 = vpow.pop %v240
  %v242 = vmul.f32 %v217, 1.442695
  %v243 = vpow.pop %v242
  %v244 = vmul.f32 %v218, 1.442695
  %v245 = vpow.pop %v244
  %v246 = vmul.f32 %v219, 1.442695
  %v247 = vpow.pop %v246
  %v248 = vmul.f32 %v220, 1.442695
  %v249 = vpow.pop %v248
  %v250 = vmul.f32 %v221, 1.442695
  %v251 = vpow.pop %v250
  %v252 = vmul.f32 %v222, 1.442695
  %v253 = vpow.pop %v252
  %v254 = vmul.f32 %v223, 1.442695
  %v255 = vpow.pop %v254
  %v256 = vadd.f32 %v225, 1.0
  %v257 = vadd.f32 %v227, 1.0
  %v258 = vadd.f32 %v229, 1.0
  %v259 = vadd.f32 %v231, 1.0
  %v260 = vadd.f32 %v233, 1.0
  %v261 = vadd.f32 %v235, 1.0
  %v262 = vadd.f32 %v237, 1.0
  %v263 = vadd.f32 %v239, 1.0
  %v264 = vadd.f32 %v241, 1.0
  %v265 = vadd.f32 %v243, 1.0
  %v266 = vadd.f32 %v245, 1.0
  %v267 = vadd.f32 %v247, 1.0
  %v268 = vadd.f32 %v249, 1.0
  %v269 = vadd.f32 %v251, 1.0
  %v270 = vadd.f32 %v253, 1.0
  %v271 = vadd.f32 %v255, 1.0
  %v272 = vrcp.pop %v256
  %v273 = vmul.f32 1.0, %v272
  %v274 = vrcp.pop %v257
  %v275 = vmul.f32 1.0, %v274
  %v276 = vrcp.pop %v258
  %v277 = vmul.f32 1.0, %v276
  %v278 = vrcp.pop %v259
  %v279 = vmul.f32 1.0, %v278
  %v280 = vrcp.pop %v260
  %v281 = vmul.f32 1.0, %v280
  %v282 = vrcp.pop %v261
  %v283 = vmul.f32 1.0, %v282
  %v284 = vrcp.pop %v262
  %v285 = vmul.f32 1.0, %v284
  %v286 = vrcp.pop %v263
  %v287 = vmul.f32 1.0, %v286
  %v288 = vrcp.pop %v264
  %v289 = vmul.f32 1.0, %v288
  %v290 = vrcp.pop %v265
  %v291 = vmul.f32 1.0, %v290
  %v292 = vrcp.pop %v266
  %v293 = vmul.f32 1.0, %v292
  %v294 = vrcp.pop %v267
  %v295 = vmul.f32 1.0, %v294
  %v296 = vrcp.pop %v268
  %v297 = vmul.f32 1.0, %v296
  %v298 = vrcp.pop %v269
  %v299 = vmul.f32 1.0, %v298
  %v300 = vrcp.pop %v270
  %v301 = vmul.f32 1.0, %v300
  %v302 = vrcp.pop %v271
  %v303 = vmul.f32 1.0, %v302
  %v304 = vmul.f32 %v146, %v273
  %v305 = vmul.f32 %v149, %v275
  %v306 = vmul.f32 %v154, %v277
  %v307 = vmul.f32 %v157, %v279
  %v308 = vmul.f32 %v162, %v281
  %v309 = vmul.f32 %v165, %v283
  %v310 = vmul.f32 %v170, %v285
  %v311 = vmul.f32 %v173, %v287
  %v312 = vmul.f32 %v178, %v289
  %v313 = vmul.f32 %v181, %v291
  %v314 = vmul.f32 %v186, %v293
  %v315 = vmul.f32 %v189, %v295
  %v316 = vmul.f32 %v194, %v297
  %v317 = vmul.f32 %v197, %v299
  %v318 = vmul.f32 %v202, %v301
  %v319 = vmul.f32 %v205, %v303
  %320 = vst [vmem:[%s3] sm:$0xff] %v304
  %321 = vst [vmem:[%s3 + $0x8] sm:$0xff] %v305
  %322 = vst [vmem:[%s3 + $0x10] sm:$0xff] %v306
  %323 = vst [vmem:[%s3 + $0x18] sm:$0xff] %v307
  %324 = vst [vmem:[%s3 + $0x20] sm:$0xff] %v308
  %325 = vst [vmem:[%s3 + $0x28] sm:$0xff] %v309
  %326 = vst [vmem:[%s3 + $0x30] sm:$0xff] %v310
  %327 = vst [vmem:[%s3 + $0x38] sm:$0xff] %v311
  %328 = vst [vmem:[%s3 + $0x40] sm:$0xff] %v312
  %329 = vst [vmem:[%s3 + $0x48] sm:$0xff] %v313
  %330 = vst [vmem:[%s3 + $0x50] sm:$0xff] %v314
  %331 = vst [vmem:[%s3 + $0x58] sm:$0xff] %v315
  %332 = vst [vmem:[%s3 + $0x60] sm:$0xff] %v316
  %333 = vst [vmem:[%s3 + $0x68] sm:$0xff] %v317
  %334 = vst [vmem:[%s3 + $0x70] sm:$0xff] %v318
  %335 = vst [vmem:[%s3 + $0x78] sm:$0xff] %v319
  // Predicated region
  $region14: #{forward.24} parent=0 // pred_check
    _
  $region15: #{forward.24} parent=0 // pred_check_branch
    %337 = sbr.rel (0) target = $region17
  $region16: #{forward.24} parent=0 // pred_region
    _
  $region17: #{forward.24} parent=0 // pred_fallthru
    _
  // Predicated region
  $region18: #{forward.24} parent=0 // pred_check
    _
  $region19: #{forward.24} parent=0 // pred_check_branch
    %339 = sbr.rel (0) target = $region21
  $region20: #{forward.24} parent=0 // pred_region
    _
  $region21: #{forward.24} parent=0 // pred_fallthru
    _

// kernel: forward.22
$region0: #{forward.22}
  #allocation0 [shape = 'u32[]', space=smem, size = 0x4, offset = 0x4, fixed_abs, tag = 'smem constant byte address 0x4 - core index']
  #allocation1 [shape = 'u32[144,128]{1,0:T(1,128)}', space=vmem, size = 0x12000, scoped, tag = 'internal scratch']
  %s0 = inlined_call_operand.vmem [shape: bf16[512,128], index: 0, kind: input, shape index: {}]
  %s1 = inlined_call_operand.vmem [shape: bf16[128,128], index: 1, kind: input, shape index: {}]
  %s2 = inlined_call_operand.vmem [shape: f32[1,128], index: 2, kind: input, shape index: {}]
  %s3 = inlined_call_operand.vmem [shape: f32[512,128], index: 3, kind: output, shape index: {}]
  %s4 = sld [smem:[#allocation0]]
  $region45: #{forward.22} parent=0
    _
  %s6 = ssub.s32 1, %s4
  %s7 = scalar_select 0, %s6, %s4
  loop: start=0, step=1, limit=6
  $region2: #{forward.22} parent=0 // loop_pre_header
    _
  $region3: #{forward.22} parent=0 // loop_header
    %s9 = sphi 0, %s13
    %p10 = scmp.ge.s32.totalorder %s9, 6
    %s19 = sphi 0, %s21
    %s22 = sphi 0, %s19
    %s23 = sphi 0, %s22
    %s39 = sphi 0, %s23
    %s43 = sphi 0, %s43
    %s45 = sphi 0, %s43
    %s46 = sphi 0, %s45
    %s60 = sphi 0, %s46
    %s64 = sphi 0, %s64
    %s66 = sphi 0, %s64
    %s67 = sphi 0, %s66
    %s81 = sphi 0, %s67
    %s87 = sphi 0, %s89
    %s90 = sphi 0, %s87
    %s91 = sphi 0, %s90
    %s107 = sphi 0, %s91
  $region4: #{forward.22} parent=0 // loop_header_branch
    %12 = sbr.rel (%p10) target = $region8
  $region5: #{forward.22} parent=0 // loop_body
    %s14 = ssub.s32 %s9, 1
    %s15 = ssub.s32 %s9, 2
    %s16 = sadd.s32 %s9, 1
    %s17 = ssub.s32 %s9, %s16
    %p18 = scmp.eq.s32.totalorder %s17, 0
    %s20 = sadd.s32 %s19, 1
    %s21 = scalar_select %p18, %s19, %s20
    %p24 = pneg %p18
    %p25 = scmp.eq.s32.totalorder %s9, 3
    %p26 = por %p24, %p25
    %p27 = scmp.ne.s32.totalorder %s19, %s22
    %p28 = scmp.eq.s32.totalorder %s9, 0
    %p29 = por %p27, %p28
    %p30 = scmp.ne.s32.totalorder %s19, %s22
    %p31 = scmp.eq.s32.totalorder %s14, 3
    %p32 = por %p30, %p31
    %p33 = scmp.ne.s32.totalorder %s22, %s23
    %p34 = scmp.eq.s32.totalorder %s14, 0
    %p35 = por %p33, %p34
    %p36 = scmp.ne.s32.totalorder %s22, %s23
    %p37 = scmp.eq.s32.totalorder %s15, 3
    %p38 = por %p36, %p37
    %p40 = scmp.ne.s32.totalorder %s23, %s39
    %p41 = scmp.eq.s32.totalorder %s15, 0
    %p42 = por %p40, %p41
    %s44 = sadd.s32 %s43, 1
    %p47 = scmp.eq.s32.totalorder %s9, 3
    %p48 = scmp.ne.s32.totalorder %s43, %s45
    %p49 = scmp.eq.s32.totalorder %s9, 0
    %p50 = por %p48, %p49
    %p51 = scmp.ne.s32.totalorder %s43, %s45
    %p52 = scmp.eq.s32.totalorder %s14, 3
    %p53 = por %p51, %p52
    %p54 = scmp.ne.s32.totalorder %s45, %s46
    %p55 = scmp.eq.s32.totalorder %s14, 0
    %p56 = por %p54, %p55
    %p57 = scmp.ne.s32.totalorder %s45, %s46
    %p58 = scmp.eq.s32.totalorder %s15, 3
    %p59 = por %p57, %p58
    %p61 = scmp.ne.s32.totalorder %s46, %s60
    %p62 = scmp.eq.s32.totalorder %s15, 0
    %p63 = por %p61, %p62
    %s65 = sadd.s32 %s64, 1
    %p68 = scmp.eq.s32.totalorder %s9, 3
    %p69 = scmp.ne.s32.totalorder %s64, %s66
    %p70 = scmp.eq.s32.totalorder %s9, 0
    %p71 = por %p69, %p70
    %p72 = scmp.ne.s32.totalorder %s64, %s66
    %p73 = scmp.eq.s32.totalorder %s14, 3
    %p74 = por %p72, %p73
    %p75 = scmp.ne.s32.totalorder %s66, %s67
    %p76 = scmp.eq.s32.totalorder %s14, 0
    %p77 = por %p75, %p76
    %p78 = scmp.ne.s32.totalorder %s66, %s67
    %p79 = scmp.eq.s32.totalorder %s15, 3
    %p80 = por %p78, %p79
    %p82 = scmp.ne.s32.totalorder %s67, %s81
    %p83 = scmp.eq.s32.totalorder %s15, 0
    %p84 = por %p82, %p83
    %s85 = ssub.s32 %s9, %s16
    %p86 = scmp.eq.s32.totalorder %s85, 0
    %s88 = sadd.s32 %s87, 1
    %s89 = scalar_select %p86, %s87, %s88
    %p92 = pneg %p86
    %p93 = scmp.eq.s32.totalorder %s9, 3
    %p94 = por %p92, %p93
    %p95 = scmp.ne.s32.totalorder %s87, %s90
    %p96 = scmp.eq.s32.totalorder %s9, 0
    %p97 = por %p95, %p96
    %p98 = scmp.ne.s32.totalorder %s87, %s90
    %p99 = scmp.eq.s32.totalorder %s14, 3
    %p100 = por %p98, %p99
    %p101 = scmp.ne.s32.totalorder %s90, %s91
    %p102 = scmp.eq.s32.totalorder %s14, 0
    %p103 = por %p101, %p102
    %p104 = scmp.ne.s32.totalorder %s90, %s91
    %p105 = scmp.eq.s32.totalorder %s15, 3
    %p106 = por %p104, %p105
    %p108 = scmp.ne.s32.totalorder %s91, %s107
    %p109 = scmp.eq.s32.totalorder %s15, 0
    %p110 = por %p108, %p109
    %p111 = scmp.le.s32.totalorder 1, %s9
    %p112 = scmp.lt.s32.totalorder %s9, 5
    %p113 = pnand %p111, %p112
    %p114 = pneg %p113
    // Predicated region
    $region9: #{forward.22} parent=5 // pred_check
      _
    $region10: #{forward.22} parent=5 // pred_check_branch
      %116 = sbr.rel (%p113) target = $region12
    $region11: #{forward.22} parent=5 // pred_region
      %s117 = ssub.s32 %s9, 1
      // Predicated region
      $region13: #{forward.22} parent=11 // pred_check
        %p118 = pneg %p56
      $region14: #{forward.22} parent=11 // pred_check_branch
        %120 = sbr.rel (%p118) target = $region16
      $region15: #{forward.22} parent=11 // pred_region
        _
      $region16: #{forward.22} parent=11 // pred_fallthru
        _
      // Predicated region
      $region17: #{forward.22} parent=11 // pred_check
        %p121 = pneg %p77
      $region18: #{forward.22} parent=11 // pred_check_branch
        %123 = sbr.rel (%p121) target = $region20
      $region19: #{forward.22} parent=11 // pred_region
        _
      $region20: #{forward.22} parent=11 // pred_fallthru
        _
    $region12: #{forward.22} parent=5 // pred_fallthru
      _
    %p124 = scmp.lt.s32.totalorder %s9, 4
    // Predicated region
    $region21: #{forward.22} parent=5 // pred_check
      %p125 = pneg %p124
    $region22: #{forward.22} parent=5 // pred_check_branch
      %127 = sbr.rel (%p125) target = $region24
    $region23: #{forward.22} parent=5 // pred_region
      // Predicated region
      $region25: #{forward.22} parent=23 // pred_check
        %p128 = pneg %p29
      $region26: #{forward.22} parent=23 // pred_check_branch
        %130 = sbr.rel (%p128) target = $region28
      $region27: #{forward.22} parent=23 // pred_region
        %s131 = smul.u32 16, %s9
        %p132 = scmp.lt.s32.totalorder %s131, 63
        %s133 = scalar_select %p132, %s131, 63
        %s134 = smul.addr %s133, 4
        %s135 = scalar_lea.vmem %s0, %s134
        %s136 = smul.u32 16, %s9
      $region28: #{forward.22} parent=23 // pred_fallthru
        _
    $region24: #{forward.22} parent=5 // pred_fallthru
      _
    %p137 = scmp.le.s32.totalorder 1, %s9
    %p138 = scmp.lt.s32.totalorder %s9, 5
    %p139 = pnand %p137, %p138
    %p140 = pneg %p139
    // Predicated region
    $region29: #{forward.22} parent=5 // pred_check
      _
    $region30: #{forward.22} parent=5 // pred_check_branch
      %142 = sbr.rel (%p139) target = $region32
    $region31: #{forward.22} parent=5 // pred_region
      %s143 = ssub.s32 %s9, 1
      %s144 = smul.u32 16, %s14
      %p145 = scmp.lt.s32.totalorder %s144, 63
      %s146 = scalar_select %p145, %s144, 63
      %s147 = smul.addr %s146, 4
      %s148 = scalar_lea.vmem %s0, %s147
      %p149 = pneg %p35
      %p150 = pneg %p32
      %p151 = pneg %p56
      %p152 = pneg %p53
      %p153 = pneg %p77
      %p154 = pneg %p74
      %p155 = pneg %p103
      %p156 = pneg %p100
      %s157 = smul.u32 16, %s14
      %p158 = scmp.lt.s32.totalorder %s157, 63
      %s159 = scalar_select %p158, %s157, 63
      %s160 = smul.addr %s159, 8
      %s161 = scalar_lea.vmem %s3, %s160
      %s162 = smul.u32 16, %s14
      %p163 = scmp.lt.s32.totalorder %s162, 63
      %s164 = scalar_select %p163, %s162, 63
      %s165 = smul.addr %s164, 4
      %s166 = scalar_lea.vmem %s0, %s165
      %s167 = smul.u32 16, %s14
      %s168 = smul.u32 16, %s14
      %p169 = scmp.lt.s32.totalorder %s168, 63
      %s170 = scalar_select %p169, %s168, 63
      %s171 = smul.addr %s170, 8
      %s172 = scalar_lea.vmem %s3, %s171
      %s173 = smul.u32 16, %s14
      %v175 = vld [vmem:[%s166] sm:$0xf]
      %v176 = vld [vmem:[%s166 + $0x4] sm:$0xf]
      %v177 = vld [vmem:[%s166 + $0x8] sm:$0xf]
      %v178 = vld [vmem:[%s166 + $0xc] sm:$0xf]
      %v179 = vld [vmem:[%s166 + $0x10] sm:$0xf]
      %v180 = vld [vmem:[%s166 + $0x14] sm:$0xf]
      %v181 = vld [vmem:[%s166 + $0x18] sm:$0xf]
      %v182 = vld [vmem:[%s166 + $0x1c] sm:$0xf]
      %v183 = vld [vmem:[%s166 + $0x20] sm:$0xf]
      %v184 = vld [vmem:[%s166 + $0x24] sm:$0xf]
      %v185 = vld [vmem:[%s166 + $0x28] sm:$0xf]
      %v186 = vld [vmem:[%s166 + $0x2c] sm:$0xf]
      %v187 = vld [vmem:[%s166 + $0x30] sm:$0xf]
      %v188 = vld [vmem:[%s166 + $0x34] sm:$0xf]
      %v189 = vld [vmem:[%s166 + $0x38] sm:$0xf]
      %v190 = vld [vmem:[%s166 + $0x3c] sm:$0xf]
      %v191 = vld [vmem:[%s1] sm:$0xf]
      %v192 = vld [vmem:[%s1 + $0x4] sm:$0xf]
      %v193 = vld [vmem:[%s1 + $0x8] sm:$0xf]
      %v194 = vld [vmem:[%s1 + $0xc] sm:$0xf]
      %v195 = vld [vmem:[%s1 + $0x10] sm:$0xf]
      %v196 = vld [vmem:[%s1 + $0x14] sm:$0xf]
      %v197 = vld [vmem:[%s1 + $0x18] sm:$0xf]
      %v198 = vld [vmem:[%s1 + $0x1c] sm:$0xf]
      %v199 = vld [vmem:[%s1 + $0x20] sm:$0xf]
      %v200 = vld [vmem:[%s1 + $0x24] sm:$0xf]
      %v201 = vld [vmem:[%s1 + $0x28] sm:$0xf]
      %v202 = vld [vmem:[%s1 + $0x2c] sm:$0xf]
      %v203 = vld [vmem:[%s1 + $0x30] sm:$0xf]
      %v204 = vld [vmem:[%s1 + $0x34] sm:$0xf]
      %v205 = vld [vmem:[%s1 + $0x38] sm:$0xf]
      %v206 = vld [vmem:[%s1 + $0x3c] sm:$0xf]
      %v207 = vld [vmem:[%s2] sm:$0x1]
      %v209 = vlaneseq
      %v210 = vshrl.u32 %v209, 7
      %v211 = vsub.s32 0, %v210
      %v212 = vrot.slane %v207, %v211
      %v230 = vunpack.c.l.b16 %v175
      %v231 = vunpack.c.l.b16 %v176
      %v232 = vunpack.c.l.b16 %v177
      %v233 = vunpack.c.l.b16 %v178
      %v234 = vunpack.c.l.b16 %v179
      %v235 = vunpack.c.l.b16 %v180
      %v236 = vunpack.c.l.b16 %v181
      %v237 = vunpack.c.l.b16 %v182
      %v238 = vunpack.c.l.b16 %v183
      %v239 = vunpack.c.l.b16 %v184
      %v240 = vunpack.c.l.b16 %v185
      %v241 = vunpack.c.l.b16 %v186
      %v242 = vunpack.c.l.b16 %v187
      %v243 = vunpack.c.l.b16 %v188
      %v244 = vunpack.c.l.b16 %v189
      %v245 = vunpack.c.l.b16 %v190
      %v246 = vpack.c.b16 %v231, %v230
      %v247 = vpack.c.b16 %v233, %v232
      %v248 = vpack.c.b16 %v235, %v234
      %v249 = vpack.c.b16 %v237, %v236
      %v250 = vpack.c.b16 %v239, %v238
      %v251 = vpack.c.b16 %v241, %v240
      %v252 = vpack.c.b16 %v243, %v242
      %v253 = vpack.c.b16 %v245, %v244
      %v278 = vunpack.c.l.b16 %v191
      %v279 = vunpack.c.l.b16 %v192
      %v280 = vunpack.c.l.b16 %v193
      %v281 = vunpack.c.l.b16 %v194
      %v282 = vunpack.c.l.b16 %v195
      %v283 = vunpack.c.l.b16 %v196
      %v284 = vunpack.c.l.b16 %v197
      %v285 = vunpack.c.l.b16 %v198
      %v286 = vunpack.c.l.b16 %v199
      %v287 = vunpack.c.l.b16 %v200
      %v288 = vunpack.c.l.b16 %v201
      %v289 = vunpack.c.l.b16 %v202
      %v290 = vunpack.c.l.b16 %v203
      %v291 = vunpack.c.l.b16 %v204
      %v292 = vunpack.c.l.b16 %v205
      %v293 = vunpack.c.l.b16 %v206
      %v294 = vpack.c.b16 %v279, %v278
      %v295 = vpack.c.b16 %v281, %v280
      %v296 = vpack.c.b16 %v283, %v282
      %v297 = vpack.c.b16 %v285, %v284
      %v298 = vpack.c.b16 %v287, %v286
      %v299 = vpack.c.b16 %v289, %v288
      %v300 = vpack.c.b16 %v291, %v290
      %v301 = vpack.c.b16 %v293, %v292
      %310 = vmatprep.subr.bf16.mxu0 0
      %311 = vmatpush1.bf16.msra.mxu0 %v294
      %312 = vmatprep.subr.bf16.mxu0 0
      %313 = vmatpush1.bf16.msra.mxu0 %v295
      %314 = vmatprep.subr.bf16.mxu0 0
      %315 = vmatpush1.bf16.msra.mxu0 %v296
      %316 = vmatprep.subr.bf16.mxu0 0
      %317 = vmatpush1.bf16.msra.mxu0 %v297
      %318 = vmatprep.subr.bf16.mxu0 0
      %319 = vmatpush1.bf16.msra.mxu0 %v298
      %320 = vmatprep.subr.bf16.mxu0 0
      %321 = vmatpush1.bf16.msra.mxu0 %v299
      %322 = vmatprep.subr.bf16.mxu0 0
      %323 = vmatpush1.bf16.msra.mxu0 %v300
      %324 = vmatprep.subr.bf16.mxu0 0
      %325 = vmatpush1.bf16.msra.mxu0 %v301
      %326 = vmatprep.subr.bf16.mxu0 0
      %327 = vmatpush1.bf16.msra.mxu0 0
      %328 = vmatprep.subr.bf16.mxu0 0
      %329 = vmatpush1.bf16.msra.mxu0 0
      %330 = vmatprep.subr.bf16.mxu0 0
      %331 = vmatpush1.bf16.msra.mxu0 0
      %332 = vmatprep.subr.bf16.mxu0 0
      %333 = vmatpush1.bf16.msra.mxu0 0
      %334 = vmatprep.subr.bf16.mxu0 0
      %335 = vmatpush1.bf16.msra.mxu0 0
      %336 = vmatprep.subr.bf16.mxu0 0
      %337 = vmatpush1.bf16.msra.mxu0 0
      %338 = vmatprep.subr.bf16.mxu0 0
      %339 = vmatpush1.bf16.msra.mxu0 0
      %340 = vmatprep.subr.bf16.mxu0 0
      %341 = vmatpush1.bf16.msra.mxu0 0
      %342 = vmatprep.mubr.bf16.mxu0 0
      %343 = vmatmul.mubr.bf16.gmra.mrb[0].mxu0 %v246
      %v344 = vpop.f32.mrb[0].mxu0
      %v345 = vadd.f32 %v212, %v344
      %v346 = vpop.f32.mrb[0].mxu0
      %v347 = vpop.f32.mrb[0].mxu0
      %v348 = vadd.f32 %v212, %v347
      %v349 = vpop.f32.mrb[0].mxu0
      %350 = vmatprep.mubr.bf16.mxu0 0
      %351 = vmatmul.mubr.bf16.gmra.mrb[0].mxu0 %v247
      %v352 = vpop.f32.mrb[0].mxu0
      %v353 = vadd.f32 %v212, %v352
      %v354 = vpop.f32.mrb[0].mxu0
      %v355 = vpop.f32.mrb[0].mxu0
      %v356 = vadd.f32 %v212, %v355
      %v357 = vpop.f32.mrb[0].mxu0
      %358 = vmatprep.mubr.bf16.mxu0 0
      %359 = vmatmul.mubr.bf16.gmra.mrb[0].mxu0 %v248
      %v360 = vpop.f32.mrb[0].mxu0
      %v361 = vadd.f32 %v212, %v360
      %v362 = vpop.f32.mrb[0].mxu0
      %v363 = vpop.f32.mrb[0].mxu0
      %v364 = vadd.f32 %v212, %v363
      %v365 = vpop.f32.mrb[0].mxu0
      %366 = vmatprep.mubr.bf16.mxu0 0
      %367 = vmatmul.mubr.bf16.gmra.mrb[0].mxu0 %v249
      %v368 = vpop.f32.mrb[0].mxu0
      %v369 = vadd.f32 %v212, %v368
      %v370 = vpop.f32.mrb[0].mxu0
      %v371 = vpop.f32.mrb[0].mxu0
      %v372 = vadd.f32 %v212, %v371
      %v373 = vpop.f32.mrb[0].mxu0
      %374 = vmatprep.mubr.bf16.mxu0 0
      %375 = vmatmul.mubr.bf16.gmra.mrb[0].mxu0 %v250
      %v376 = vpop.f32.mrb[0].mxu0
      %v377 = vadd.f32 %v212, %v376
      %v378 = vpop.f32.mrb[0].mxu0
      %v379 = vpop.f32.mrb[0].mxu0
      %v380 = vadd.f32 %v212, %v379
      %v381 = vpop.f32.mrb[0].mxu0
      %382 = vmatprep.mubr.bf16.mxu0 0
      %383 = vmatmul.mubr.bf16.gmra.mrb[0].mxu0 %v251
      %v384 = vpop.f32.mrb[0].mxu0
      %v385 = vadd.f32 %v212, %v384
      %v386 = vpop.f32.mrb[0].mxu0
      %v387 = vpop.f32.mrb[0].mxu0
      %v388 = vadd.f32 %v212, %v387
      %v389 = vpop.f32.mrb[0].mxu0
      %390 = vmatprep.mubr.bf16.mxu0 0
      %391 = vmatmul.mubr.bf16.gmra.mrb[0].mxu0 %v252
      %v392 = vpop.f32.mrb[0].mxu0
      %v393 = vadd.f32 %v212, %v392
      %v394 = vpop.f32.mrb[0].mxu0
      %v395 = vpop.f32.mrb[0].mxu0
      %v396 = vadd.f32 %v212, %v395
      %v397 = vpop.f32.mrb[0].mxu0
      %398 = vmatprep.mubr.bf16.mxu0 0
      %399 = vmatmul.mubr.bf16.gmra.mrb[0].mxu0 %v253
      %v400 = vpop.f32.mrb[0].mxu0
      %v401 = vadd.f32 %v212, %v400
      %v402 = vpop.f32.mrb[0].mxu0
      %v403 = vpop.f32.mrb[0].mxu0
      %v404 = vadd.f32 %v212, %v403
      %v405 = vpop.f32.mrb[0].mxu0
      %406 = vdwg.mxu0
      %v407 = vxor.u32 %v345, 2147483648
      %v408 = vxor.u32 %v348, 2147483648
      %v409 = vxor.u32 %v353, 2147483648
      %v410 = vxor.u32 %v356, 2147483648
      %v411 = vxor.u32 %v361, 2147483648
      %v412 = vxor.u32 %v364, 2147483648
      %v413 = vxor.u32 %v369, 2147483648
      %v414 = vxor.u32 %v372, 2147483648
      %v415 = vxor.u32 %v377, 2147483648
      %v416 = vxor.u32 %v380, 2147483648
      %v417 = vxor.u32 %v385, 2147483648
      %v418 = vxor.u32 %v388, 2147483648
      %v419 = vxor.u32 %v393, 2147483648
      %v420 = vxor.u32 %v396, 2147483648
      %v421 = vxor.u32 %v401, 2147483648
      %v422 = vxor.u32 %v404, 2147483648
      %v423 = vmul.f32 %v407, 1.442695
      %v424 = vpow.pop %v423
      %v425 = vmul.f32 %v408, 1.442695
      %v426 = vpow.pop %v425
      %v427 = vmul.f32 %v409, 1.442695
      %v428 = vpow.pop %v427
      %v429 = vmul.f32 %v410, 1.442695
      %v430 = vpow.pop %v429
      %v431 = vmul.f32 %v411, 1.442695
      %v432 = vpow.pop %v431
      %v433 = vmul.f32 %v412, 1.442695
      %v434 = vpow.pop %v433
      %v435 = vmul.f32 %v413, 1.442695
      %v436 = vpow.pop %v435
      %v437 = vmul.f32 %v414, 1.442695
      %v438 = vpow.pop %v437
      %v439 = vmul.f32 %v415, 1.442695
      %v440 = vpow.pop %v439
      %v441 = vmul.f32 %v416, 1.442695
      %v442 = vpow.pop %v441
      %v443 = vmul.f32 %v417, 1.442695
      %v444 = vpow.pop %v443
      %v445 = vmul.f32 %v418, 1.442695
      %v446 = vpow.pop %v445
      %v447 = vmul.f32 %v419, 1.442695
      %v448 = vpow.pop %v447
      %v449 = vmul.f32 %v420, 1.442695
      %v450 = vpow.pop %v449
      %v451 = vmul.f32 %v421, 1.442695
      %v452 = vpow.pop %v451
      %v453 = vmul.f32 %v422, 1.442695
      %v454 = vpow.pop %v453
      %v455 = vadd.f32 %v424, 1.0
      %v456 = vadd.f32 %v426, 1.0
      %v457 = vadd.f32 %v428, 1.0
      %v458 = vadd.f32 %v430, 1.0
      %v459 = vadd.f32 %v432, 1.0
      %v460 = vadd.f32 %v434, 1.0
      %v461 = vadd.f32 %v436, 1.0
      %v462 = vadd.f32 %v438, 1.0
      %v463 = vadd.f32 %v440, 1.0
      %v464 = vadd.f32 %v442, 1.0
      %v465 = vadd.f32 %v444, 1.0
      %v466 = vadd.f32 %v446, 1.0
      %v467 = vadd.f32 %v448, 1.0
      %v468 = vadd.f32 %v450, 1.0
      %v469 = vadd.f32 %v452, 1.0
      %v470 = vadd.f32 %v454, 1.0
      %v471 = vrcp.pop %v455
      %v472 = vmul.f32 1.0, %v471
      %v473 = vrcp.pop %v456
      %v474 = vmul.f32 1.0, %v473
      %v475 = vrcp.pop %v457
      %v476 = vmul.f32 1.0, %v475
      %v477 = vrcp.pop %v458
      %v478 = vmul.f32 1.0, %v477
      %v479 = vrcp.pop %v459
      %v480 = vmul.f32 1.0, %v479
      %v481 = vrcp.pop %v460
      %v482 = vmul.f32 1.0, %v481
      %v483 = vrcp.pop %v461
      %v484 = vmul.f32 1.0, %v483
      %v485 = vrcp.pop %v462
      %v486 = vmul.f32 1.0, %v485
      %v487 = vrcp.pop %v463
      %v488 = vmul.f32 1.0, %v487
      %v489 = vrcp.pop %v464
      %v490 = vmul.f32 1.0, %v489
      %v491 = vrcp.pop %v465
      %v492 = vmul.f32 1.0, %v491
      %v493 = vrcp.pop %v466
      %v494 = vmul.f32 1.0, %v493
      %v495 = vrcp.pop %v467
      %v496 = vmul.f32 1.0, %v495
      %v497 = vrcp.pop %v468
      %v498 = vmul.f32 1.0, %v497
      %v499 = vrcp.pop %v469
      %v500 = vmul.f32 1.0, %v499
      %v501 = vrcp.pop %v470
      %v502 = vmul.f32 1.0, %v501
      %v503 = vmul.f32 %v345, %v472
      %v504 = vmul.f32 %v348, %v474
      %v505 = vmul.f32 %v353, %v476
      %v506 = vmul.f32 %v356, %v478
      %v507 = vmul.f32 %v361, %v480
      %v508 = vmul.f32 %v364, %v482
      %v509 = vmul.f32 %v369, %v484
      %v510 = vmul.f32 %v372, %v486
      %v511 = vmul.f32 %v377, %v488
      %v512 = vmul.f32 %v380, %v490
      %v513 = vmul.f32 %v385, %v492
      %v514 = vmul.f32 %v388, %v494
      %v515 = vmul.f32 %v393, %v496
      %v516 = vmul.f32 %v396, %v498
      %v517 = vmul.f32 %v401, %v500
      %v518 = vmul.f32 %v404, %v502
      %519 = vst [vmem:[%s172] sm:$0xff] %v503
      %520 = vst [vmem:[%s172 + $0x8] sm:$0xff] %v504
      %521 = vst [vmem:[%s172 + $0x10] sm:$0xff] %v505
      %522 = vst [vmem:[%s172 + $0x18] sm:$0xff] %v506
      %523 = vst [vmem:[%s172 + $0x20] sm:$0xff] %v507
      %524 = vst [vmem:[%s172 + $0x28] sm:$0xff] %v508
      %525 = vst [vmem:[%s172 + $0x30] sm:$0xff] %v509
      %526 = vst [vmem:[%s172 + $0x38] sm:$0xff] %v510
      %527 = vst [vmem:[%s172 + $0x40] sm:$0xff] %v511
      %528 = vst [vmem:[%s172 + $0x48] sm:$0xff] %v512
      %529 = vst [vmem:[%s172 + $0x50] sm:$0xff] %v513
      %530 = vst [vmem:[%s172 + $0x58] sm:$0xff] %v514
      %531 = vst [vmem:[%s172 + $0x60] sm:$0xff] %v515
      %532 = vst [vmem:[%s172 + $0x68] sm:$0xff] %v516
      %533 = vst [vmem:[%s172 + $0x70] sm:$0xff] %v517
      %534 = vst [vmem:[%s172 + $0x78] sm:$0xff] %v518
      %s535 = smul.u32 16, %s14
      %p536 = scmp.lt.s32.totalorder %s535, 63
      %s537 = scalar_select %p536, %s535, 63
      %s538 = smul.addr %s537, 8
      %s539 = scalar_lea.vmem %s3, %s538
      // Predicated region
      $region33: #{forward.22} parent=31 // pred_check
        %p540 = pneg %p100
      $region34: #{forward.22} parent=31 // pred_check_branch
        %542 = sbr.rel (%p540) target = $region36
      $region35: #{forward.22} parent=31 // pred_region
        %s543 = smul.u32 16, %s14
      $region36: #{forward.22} parent=31 // pred_fallthru
        _
    $region32: #{forward.22} parent=5 // pred_fallthru
      _
    %p544 = scmp.le.s32.totalorder 2, %s9
    // Predicated region
    $region37: #{forward.22} parent=5 // pred_check
      %p545 = pneg %p544
    $region38: #{forward.22} parent=5 // pred_check_branch
      %547 = sbr.rel (%p545) target = $region40
    $region39: #{forward.22} parent=5 // pred_region
      %s548 = ssub.s32 %s9, 2
      // Predicated region
      $region41: #{forward.22} parent=39 // pred_check
        %p549 = pneg %p106
      $region42: #{forward.22} parent=39 // pred_check_branch
        %551 = sbr.rel (%p549) target = $region44
      $region43: #{forward.22} parent=39 // pred_region
        %s552 = smul.u32 16, %s15
        %p553 = scmp.lt.s32.totalorder %s552, 63
        %s554 = scalar_select %p553, %s552, 63
        %s555 = smul.addr %s554, 8
        %s556 = scalar_lea.vmem %s3, %s555
      $region44: #{forward.22} parent=39 // pred_fallthru
        _
    $region40: #{forward.22} parent=5 // pred_fallthru
      _
  $region6: #{forward.22} parent=0 // loop_footer
    %s13 = sadd.s32 1, %s9
  $region7: #{forward.22} parent=0 // loop_footer_branch
    %8 = sbr.rel target = $region3
  $region8: #{forward.22} parent=0 // loop_exit
    _

// kernel: forward.23
$region0: #{forward.23}
  #allocation0 [shape = 'u32[]', space=smem, size = 0x4, offset = 0x4, fixed_abs, tag = 'smem constant byte address 0x4 - core index']
  #allocation1 [shape = 'u32[144,128]{1,0:T(1,128)}', space=vmem, size = 0x12000, scoped, tag = 'internal scratch']
  %s0 = inlined_call_operand.vmem [shape: bf16[128,128], index: 0, kind: input, shape index: {}]
  %s1 = inlined_call_operand.vmem [shape: bf16[128,128], index: 1, kind: input, shape index: {}]
  %s2 = inlined_call_operand.vmem [shape: f32[1,128], index: 2, kind: input, shape index: {}]
  %s3 = inlined_call_operand.vmem [shape: f32[128,128], index: 3, kind: output, shape index: {}]
  %s4 = sld [smem:[#allocation0]]
  $region22: #{forward.23} parent=0
    _
  %s6 = ssub.s32 1, %s4
  %s7 = scalar_select 0, %s6, %s4
  // Predicated region
  $region2: #{forward.23} parent=0 // pred_check
    _
  $region3: #{forward.23} parent=0 // pred_check_branch
    %9 = sbr.rel (0) target = $region5
  $region4: #{forward.23} parent=0 // pred_region
    _
  $region5: #{forward.23} parent=0 // pred_fallthru
    _
  // Predicated region
  $region6: #{forward.23} parent=0 // pred_check
    _
  $region7: #{forward.23} parent=0 // pred_check_branch
    %11 = sbr.rel (0) target = $region9
  $region8: #{forward.23} parent=0 // pred_region
    _
  $region9: #{forward.23} parent=0 // pred_fallthru
    _
  // Predicated region
  $region10: #{forward.23} parent=0 // pred_check
    _
  $region11: #{forward.23} parent=0 // pred_check_branch
    %13 = sbr.rel (0) target = $region13
  $region12: #{forward.23} parent=0 // pred_region
    _
  $region13: #{forward.23} parent=0 // pred_fallthru
    _
  %v15 = vld [vmem:[%s0] sm:$0xf]
  %v16 = vld [vmem:[%s0 + $0x4] sm:$0xf]
  %v17 = vld [vmem:[%s0 + $0x8] sm:$0xf]
  %v18 = vld [vmem:[%s0 + $0xc] sm:$0xf]
  %v19 = vld [vmem:[%s0 + $0x10] sm:$0xf]
  %v20 = vld [vmem:[%s0 + $0x14] sm:$0xf]
  %v21 = vld [vmem:[%s0 + $0x18] sm:$0xf]
  %v22 = vld [vmem:[%s0 + $0x1c] sm:$0xf]
  %v23 = vld [vmem:[%s0 + $0x20] sm:$0xf]
  %v24 = vld [vmem:[%s0 + $0x24] sm:$0xf]
  %v25 = vld [vmem:[%s0 + $0x28] sm:$0xf]
  %v26 = vld [vmem:[%s0 + $0x2c] sm:$0xf]
  %v27 = vld [vmem:[%s0 + $0x30] sm:$0xf]
  %v28 = vld [vmem:[%s0 + $0x34] sm:$0xf]
  %v29 = vld [vmem:[%s0 + $0x38] sm:$0xf]
  %v30 = vld [vmem:[%s0 + $0x3c] sm:$0xf]
  %v31 = vld [vmem:[%s1] sm:$0xf]
  %v32 = vld [vmem:[%s1 + $0x4] sm:$0xf]
  %v33 = vld [vmem:[%s1 + $0x8] sm:$0xf]
  %v34 = vld [vmem:[%s1 + $0xc] sm:$0xf]
  %v35 = vld [vmem:[%s1 + $0x10] sm:$0xf]
  %v36 = vld [vmem:[%s1 + $0x14] sm:$0xf]
  %v37 = vld [vmem:[%s1 + $0x18] sm:$0xf]
  %v38 = vld [vmem:[%s1 + $0x1c] sm:$0xf]
  %v39 = vld [vmem:[%s1 + $0x20] sm:$0xf]
  %v40 = vld [vmem:[%s1 + $0x24] sm:$0xf]
  %v41 = vld [vmem:[%s1 + $0x28] sm:$0xf]
  %v42 = vld [vmem:[%s1 + $0x2c] sm:$0xf]
  %v43 = vld [vmem:[%s1 + $0x30] sm:$0xf]
  %v44 = vld [vmem:[%s1 + $0x34] sm:$0xf]
  %v45 = vld [vmem:[%s1 + $0x38] sm:$0xf]
  %v46 = vld [vmem:[%s1 + $0x3c] sm:$0xf]
  %v47 = vld [vmem:[%s2] sm:$0x1]
  %v49 = vlaneseq
  %v50 = vshrl.u32 %v49, 7
  %v51 = vsub.s32 0, %v50
  %v52 = vrot.slane %v47, %v51
  %v70 = vunpack.c.l.b16 %v15
  %v71 = vunpack.c.l.b16 %v16
  %v72 = vunpack.c.l.b16 %v17
  %v73 = vunpack.c.l.b16 %v18
  %v74 = vunpack.c.l.b16 %v19
  %v75 = vunpack.c.l.b16 %v20
  %v76 = vunpack.c.l.b16 %v21
  %v77 = vunpack.c.l.b16 %v22
  %v78 = vunpack.c.l.b16 %v23
  %v79 = vunpack.c.l.b16 %v24
  %v80 = vunpack.c.l.b16 %v25
  %v81 = vunpack.c.l.b16 %v26
  %v82 = vunpack.c.l.b16 %v27
  %v83 = vunpack.c.l.b16 %v28
  %v84 = vunpack.c.l.b16 %v29
  %v85 = vunpack.c.l.b16 %v30
  %v86 = vpack.c.b16 %v71, %v70
  %v87 = vpack.c.b16 %v73, %v72
  %v88 = vpack.c.b16 %v75, %v74
  %v89 = vpack.c.b16 %v77, %v76
  %v90 = vpack.c.b16 %v79, %v78
  %v91 = vpack.c.b16 %v81, %v80
  %v92 = vpack.c.b16 %v83, %v82
  %v93 = vpack.c.b16 %v85, %v84
  %v118 = vunpack.c.l.b16 %v31
  %v119 = vunpack.c.l.b16 %v32
  %v120 = vunpack.c.l.b16 %v33
  %v121 = vunpack.c.l.b16 %v34
  %v122 = vunpack.c.l.b16 %v35
  %v123 = vunpack.c.l.b16 %v36
  %v124 = vunpack.c.l.b16 %v37
  %v125 = vunpack.c.l.b16 %v38
  %v126 = vunpack.c.l.b16 %v39
  %v127 = vunpack.c.l.b16 %v40
  %v128 = vunpack.c.l.b16 %v41
  %v129 = vunpack.c.l.b16 %v42
  %v130 = vunpack.c.l.b16 %v43
  %v131 = vunpack.c.l.b16 %v44
  %v132 = vunpack.c.l.b16 %v45
  %v133 = vunpack.c.l.b16 %v46
  %v134 = vpack.c.b16 %v119, %v118
  %v135 = vpack.c.b16 %v121, %v120
  %v136 = vpack.c.b16 %v123, %v122
  %v137 = vpack.c.b16 %v125, %v124
  %v138 = vpack.c.b16 %v127, %v126
  %v139 = vpack.c.b16 %v129, %v128
  %v140 = vpack.c.b16 %v131, %v130
  %v141 = vpack.c.b16 %v133, %v132
  %150 = vmatprep.subr.bf16.mxu0 0
  %151 = vmatpush1.bf16.msra.mxu0 %v134
  %152 = vmatprep.subr.bf16.mxu0 0
  %153 = vmatpush1.bf16.msra.mxu0 %v135
  %154 = vmatprep.subr.bf16.mxu0 0
  %155 = vmatpush1.bf16.msra.mxu0 %v136
  %156 = vmatprep.subr.bf16.mxu0 0
  %157 = vmatpush1.bf16.msra.mxu0 %v137
  %158 = vmatprep.subr.bf16.mxu0 0
  %159 = vmatpush1.bf16.msra.mxu0 %v138
  %160 = vmatprep.subr.bf16.mxu0 0
  %161 = vmatpush1.bf16.msra.mxu0 %v139
  %162 = vmatprep.subr.bf16.mxu0 0
  %163 = vmatpush1.bf16.msra.mxu0 %v140
  %164 = vmatprep.subr.bf16.mxu0 0
  %165 = vmatpush1.bf16.msra.mxu0 %v141
  %166 = vmatprep.subr.bf16.mxu0 0
  %167 = vmatpush1.bf16.msra.mxu0 0
  %168 = vmatprep.subr.bf16.mxu0 0
  %169 = vmatpush1.bf16.msra.mxu0 0
  %170 = vmatprep.subr.bf16.mxu0 0
  %171 = vmatpush1.bf16.msra.mxu0 0
  %172 = vmatprep.subr.bf16.mxu0 0
  %173 = vmatpush1.bf16.msra.mxu0 0
  %174 = vmatprep.subr.bf16.mxu0 0
  %175 = vmatpush1.bf16.msra.mxu0 0
  %176 = vmatprep.subr.bf16.mxu0 0
  %177 = vmatpush1.bf16.msra.mxu0 0
  %178 = vmatprep.subr.bf16.mxu0 0
  %179 = vmatpush1.bf16.msra.mxu0 0
  %180 = vmatprep.subr.bf16.mxu0 0
  %181 = vmatpush1.bf16.msra.mxu0 0
  %182 = vmatprep.mubr.bf16.mxu0 0
  %183 = vmatmul.mubr.bf16.gmra.mrb[0].mxu0 %v86
  %v184 = vpop.f32.mrb[0].mxu0
  %v185 = vadd.f32 %v52, %v184
  %v186 = vpop.f32.mrb[0].mxu0
  %v187 = vpop.f32.mrb[0].mxu0
  %v188 = vadd.f32 %v52, %v187
  %v189 = vpop.f32.mrb[0].mxu0
  %190 = vmatprep.mubr.bf16.mxu0 0
  %191 = vmatmul.mubr.bf16.gmra.mrb[0].mxu0 %v87
  %v192 = vpop.f32.mrb[0].mxu0
  %v193 = vadd.f32 %v52, %v192
  %v194 = vpop.f32.mrb[0].mxu0
  %v195 = vpop.f32.mrb[0].mxu0
  %v196 = vadd.f32 %v52, %v195
  %v197 = vpop.f32.mrb[0].mxu0
  %198 = vmatprep.mubr.bf16.mxu0 0
  %199 = vmatmul.mubr.bf16.gmra.mrb[0].mxu0 %v88
  %v200 = vpop.f32.mrb[0].mxu0
  %v201 = vadd.f32 %v52, %v200
  %v202 = vpop.f32.mrb[0].mxu0
  %v203 = vpop.f32.mrb[0].mxu0
  %v204 = vadd.f32 %v52, %v203
  %v205 = vpop.f32.mrb[0].mxu0
  %206 = vmatprep.mubr.bf16.mxu0 0
  %207 = vmatmul.mubr.bf16.gmra.mrb[0].mxu0 %v89
  %v208 = vpop.f32.mrb[0].mxu0
  %v209 = vadd.f32 %v52, %v208
  %v210 = vpop.f32.mrb[0].mxu0
  %v211 = vpop.f32.mrb[0].mxu0
  %v212 = vadd.f32 %v52, %v211
  %v213 = vpop.f32.mrb[0].mxu0
  %214 = vmatprep.mubr.bf16.mxu0 0
  %215 = vmatmul.mubr.bf16.gmra.mrb[0].mxu0 %v90
  %v216 = vpop.f32.mrb[0].mxu0
  %v217 = vadd.f32 %v52, %v216
  %v218 = vpop.f32.mrb[0].mxu0
  %v219 = vpop.f32.mrb[0].mxu0
  %v220 = vadd.f32 %v52, %v219
  %v221 = vpop.f32.mrb[0].mxu0
  %222 = vmatprep.mubr.bf16.mxu0 0
  %223 = vmatmul.mubr.bf16.gmra.mrb[0].mxu0 %v91
  %v224 = vpop.f32.mrb[0].mxu0
  %v225 = vadd.f32 %v52, %v224
  %v226 = vpop.f32.mrb[0].mxu0
  %v227 = vpop.f32.mrb[0].mxu0
  %v228 = vadd.f32 %v52, %v227
  %v229 = vpop.f32.mrb[0].mxu0
  %230 = vmatprep.mubr.bf16.mxu0 0
  %231 = vmatmul.mubr.bf16.gmra.mrb[0].mxu0 %v92
  %v232 = vpop.f32.mrb[0].mxu0
  %v233 = vadd.f32 %v52, %v232
  %v234 = vpop.f32.mrb[0].mxu0
  %v235 = vpop.f32.mrb[0].mxu0
  %v236 = vadd.f32 %v52, %v235
  %v237 = vpop.f32.mrb[0].mxu0
  %238 = vmatprep.mubr.bf16.mxu0 0
  %239 = vmatmul.mubr.bf16.gmra.mrb[0].mxu0 %v93
  %v240 = vpop.f32.mrb[0].mxu0
  %v241 = vadd.f32 %v52, %v240
  %v242 = vpop.f32.mrb[0].mxu0
  %v243 = vpop.f32.mrb[0].mxu0
  %v244 = vadd.f32 %v52, %v243
  %v245 = vpop.f32.mrb[0].mxu0
  %246 = vdwg.mxu0
  %v247 = vxor.u32 %v185, 2147483648
  %v248 = vxor.u32 %v188, 2147483648
  %v249 = vxor.u32 %v193, 2147483648
  %v250 = vxor.u32 %v196, 2147483648
  %v251 = vxor.u32 %v201, 2147483648
  %v252 = vxor.u32 %v204, 2147483648
  %v253 = vxor.u32 %v209, 2147483648
  %v254 = vxor.u32 %v212, 2147483648
  %v255 = vxor.u32 %v217, 2147483648
  %v256 = vxor.u32 %v220, 2147483648
  %v257 = vxor.u32 %v225, 2147483648
  %v258 = vxor.u32 %v228, 2147483648
  %v259 = vxor.u32 %v233, 2147483648
  %v260 = vxor.u32 %v236, 2147483648
  %v261 = vxor.u32 %v241, 2147483648
  %v262 = vxor.u32 %v244, 2147483648
  %v263 = vmul.f32 %v247, 1.442695
  %v264 = vpow.pop %v263
  %v265 = vmul.f32 %v248, 1.442695
  %v266 = vpow.pop %v265
  %v267 = vmul.f32 %v249, 1.442695
  %v268 = vpow.pop %v267
  %v269 = vmul.f32 %v250, 1.442695
  %v270 = vpow.pop %v269
  %v271 = vmul.f32 %v251, 1.442695
  %v272 = vpow.pop %v271
  %v273 = vmul.f32 %v252, 1.442695
  %v274 = vpow.pop %v273
  %v275 = vmul.f32 %v253, 1.442695
  %v276 = vpow.pop %v275
  %v277 = vmul.f32 %v254, 1.442695
  %v278 = vpow.pop %v277
  %v279 = vmul.f32 %v255, 1.442695
  %v280 = vpow.pop %v279
  %v281 = vmul.f32 %v256, 1.442695
  %v282 = vpow.pop %v281
  %v283 = vmul.f32 %v257, 1.442695
  %v284 = vpow.pop %v283
  %v285 = vmul.f32 %v258, 1.442695
  %v286 = vpow.pop %v285
  %v287 = vmul.f32 %v259, 1.442695
  %v288 = vpow.pop %v287
  %v289 = vmul.f32 %v260, 1.442695
  %v290 = vpow.pop %v289
  %v291 = vmul.f32 %v261, 1.442695
  %v292 = vpow.pop %v291
  %v293 = vmul.f32 %v262, 1.442695
  %v294 = vpow.pop %v293
  %v295 = vadd.f32 %v264, 1.0
  %v296 = vadd.f32 %v266, 1.0
  %v297 = vadd.f32 %v268, 1.0
  %v298 = vadd.f32 %v270, 1.0
  %v299 = vadd.f32 %v272, 1.0
  %v300 = vadd.f32 %v274, 1.0
  %v301 = vadd.f32 %v276, 1.0
  %v302 = vadd.f32 %v278, 1.0
  %v303 = vadd.f32 %v280, 1.0
  %v304 = vadd.f32 %v282, 1.0
  %v305 = vadd.f32 %v284, 1.0
  %v306 = vadd.f32 %v286, 1.0
  %v307 = vadd.f32 %v288, 1.0
  %v308 = vadd.f32 %v290, 1.0
  %v309 = vadd.f32 %v292, 1.0
  %v310 = vadd.f32 %v294, 1.0
  %v311 = vrcp.pop %v295
  %v312 = vmul.f32 1.0, %v311
  %v313 = vrcp.pop %v296
  %v314 = vmul.f32 1.0, %v313
  %v315 = vrcp.pop %v297
  %v316 = vmul.f32 1.0, %v315
  %v317 = vrcp.pop %v298
  %v318 = vmul.f32 1.0, %v317
  %v319 = vrcp.pop %v299
  %v320 = vmul.f32 1.0, %v319
  %v321 = vrcp.pop %v300
  %v322 = vmul.f32 1.0, %v321
  %v323 = vrcp.pop %v301
  %v324 = vmul.f32 1.0, %v323
  %v325 = vrcp.pop %v302
  %v326 = vmul.f32 1.0, %v325
  %v327 = vrcp.pop %v303
  %v328 = vmul.f32 1.0, %v327
  %v329 = vrcp.pop %v304
  %v330 = vmul.f32 1.0, %v329
  %v331 = vrcp.pop %v305
  %v332 = vmul.f32 1.0, %v331
  %v333 = vrcp.pop %v306
  %v334 = vmul.f32 1.0, %v333
  %v335 = vrcp.pop %v307
  %v336 = vmul.f32 1.0, %v335
  %v337 = vrcp.pop %v308
  %v338 = vmul.f32 1.0, %v337
  %v339 = vrcp.pop %v309
  %v340 = vmul.f32 1.0, %v339
  %v341 = vrcp.pop %v310
  %v342 = vmul.f32 1.0, %v341
  %v343 = vmul.f32 %v185, %v312
  %v344 = vmul.f32 %v188, %v314
  %v345 = vmul.f32 %v193, %v316
  %v346 = vmul.f32 %v196, %v318
  %v347 = vmul.f32 %v201, %v320
  %v348 = vmul.f32 %v204, %v322
  %v349 = vmul.f32 %v209, %v324
  %v350 = vmul.f32 %v212, %v326
  %v351 = vmul.f32 %v217, %v328
  %v352 = vmul.f32 %v220, %v330
  %v353 = vmul.f32 %v225, %v332
  %v354 = vmul.f32 %v228, %v334
  %v355 = vmul.f32 %v233, %v336
  %v356 = vmul.f32 %v236, %v338
  %v357 = vmul.f32 %v241, %v340
  %v358 = vmul.f32 %v244, %v342
  %359 = vst [vmem:[%s3] sm:$0xff] %v343
  %360 = vst [vmem:[%s3 + $0x8] sm:$0xff] %v344
  %361 = vst [vmem:[%s3 + $0x10] sm:$0xff] %v345
  %362 = vst [vmem:[%s3 + $0x18] sm:$0xff] %v346
  %363 = vst [vmem:[%s3 + $0x20] sm:$0xff] %v347
  %364 = vst [vmem:[%s3 + $0x28] sm:$0xff] %v348
  %365 = vst [vmem:[%s3 + $0x30] sm:$0xff] %v349
  %366 = vst [vmem:[%s3 + $0x38] sm:$0xff] %v350
  %367 = vst [vmem:[%s3 + $0x40] sm:$0xff] %v351
  %368 = vst [vmem:[%s3 + $0x48] sm:$0xff] %v352
  %369 = vst [vmem:[%s3 + $0x50] sm:$0xff] %v353
  %370 = vst [vmem:[%s3 + $0x58] sm:$0xff] %v354
  %371 = vst [vmem:[%s3 + $0x60] sm:$0xff] %v355
  %372 = vst [vmem:[%s3 + $0x68] sm:$0xff] %v356
  %373 = vst [vmem:[%s3 + $0x70] sm:$0xff] %v357
  %374 = vst [vmem:[%s3 + $0x78] sm:$0xff] %v358
  // Predicated region
  $region14: #{forward.23} parent=0 // pred_check
    _
  $region15: #{forward.23} parent=0 // pred_check_branch
    %376 = sbr.rel (0) target = $region17
  $region16: #{forward.23} parent=0 // pred_region
    _
  $region17: #{forward.23} parent=0 // pred_fallthru
    _
  // Predicated region
  $region18: #{forward.23} parent=0 // pred_check
    _
  $region19: #{forward.23} parent=0 // pred_check_branch
    %378 = sbr.rel (0) target = $region21
  $region20: #{forward.23} parent=0 // pred_region
    _
  $region21: #{forward.23} parent=0 // pred_fallthru
    _

// kernel: forward.25
$region0: #{forward.25}
  #allocation0 [shape = 'u32[]', space=smem, size = 0x4, offset = 0x4, fixed_abs, tag = 'smem constant byte address 0x4 - core index']
  #allocation1 [shape = 'u32[144,128]{1,0:T(1,128)}', space=vmem, size = 0x12000, scoped, tag = 'internal scratch']
  %s0 = inlined_call_operand.vmem [shape: bf16[128,8], index: 0, kind: input, shape index: {}]
  %s1 = inlined_call_operand.vmem [shape: bf16[8,128], index: 1, kind: input, shape index: {}]
  %s2 = inlined_call_operand.vmem [shape: f32[1,128], index: 2, kind: input, shape index: {}]
  %s3 = inlined_call_operand.vmem [shape: f32[128,128], index: 3, kind: output, shape index: {}]
  %s4 = sld [smem:[#allocation0]]
  $region22: #{forward.25} parent=0
    _
  %s6 = ssub.s32 1, %s4
  %s7 = scalar_select 0, %s6, %s4
  // Predicated region
  $region2: #{forward.25} parent=0 // pred_check
    _
  $region3: #{forward.25} parent=0 // pred_check_branch
    %9 = sbr.rel (0) target = $region5
  $region4: #{forward.25} parent=0 // pred_region
    _
  $region5: #{forward.25} parent=0 // pred_fallthru
    _
  // Predicated region
  $region6: #{forward.25} parent=0 // pred_check
    _
  $region7: #{forward.25} parent=0 // pred_check_branch
    %11 = sbr.rel (0) target = $region9
  $region8: #{forward.25} parent=0 // pred_region
    _
  $region9: #{forward.25} parent=0 // pred_fallthru
    _
  // Predicated region
  $region10: #{forward.25} parent=0 // pred_check
    _
  $region11: #{forward.25} parent=0 // pred_check_branch
    %13 = sbr.rel (0) target = $region13
  $region12: #{forward.25} parent=0 // pred_region
    _
  $region13: #{forward.25} parent=0 // pred_fallthru
    _
  %v15 = vld [vmem:[%s0] sm:$0xf]
  %v16 = vld [vmem:[%s0 + $0x4] sm:$0xf]
  %v17 = vld [vmem:[%s0 + $0x8] sm:$0xf]
  %v18 = vld [vmem:[%s0 + $0xc] sm:$0xf]
  %v19 = vld [vmem:[%s0 + $0x10] sm:$0xf]
  %v20 = vld [vmem:[%s0 + $0x14] sm:$0xf]
  %v21 = vld [vmem:[%s0 + $0x18] sm:$0xf]
  %v22 = vld [vmem:[%s0 + $0x1c] sm:$0xf]
  %v23 = vld [vmem:[%s0 + $0x20] sm:$0xf]
  %v24 = vld [vmem:[%s0 + $0x24] sm:$0xf]
  %v25 = vld [vmem:[%s0 + $0x28] sm:$0xf]
  %v26 = vld [vmem:[%s0 + $0x2c] sm:$0xf]
  %v27 = vld [vmem:[%s0 + $0x30] sm:$0xf]
  %v28 = vld [vmem:[%s0 + $0x34] sm:$0xf]
  %v29 = vld [vmem:[%s0 + $0x38] sm:$0xf]
  %v30 = vld [vmem:[%s0 + $0x3c] sm:$0xf]
  %v31 = vld [vmem:[%s1] sm:$0xf]
  %v32 = vld [vmem:[%s2] sm:$0x1]
  %v34 = vlaneseq
  %v35 = vshrl.u32 %v34, 7
  %v36 = vsub.s32 0, %v35
  %v37 = vrot.slane %v32, %v36
  %v55 = vunpack.c.l.b16 %v15
  %v56 = vunpack.c.l.b16 %v16
  %v57 = vunpack.c.l.b16 %v17
  %v58 = vunpack.c.l.b16 %v18
  %v59 = vunpack.c.l.b16 %v19
  %v60 = vunpack.c.l.b16 %v20
  %v61 = vunpack.c.l.b16 %v21
  %v62 = vunpack.c.l.b16 %v22
  %v63 = vunpack.c.l.b16 %v23
  %v64 = vunpack.c.l.b16 %v24
  %v65 = vunpack.c.l.b16 %v25
  %v66 = vunpack.c.l.b16 %v26
  %v67 = vunpack.c.l.b16 %v27
  %v68 = vunpack.c.l.b16 %v28
  %v69 = vunpack.c.l.b16 %v29
  %v70 = vunpack.c.l.b16 %v30
  %v71 = vpack.c.b16 %v56, %v55
  %v72 = vpack.c.b16 %v58, %v57
  %v73 = vpack.c.b16 %v60, %v59
  %v74 = vpack.c.b16 %v62, %v61
  %v75 = vpack.c.b16 %v64, %v63
  %v76 = vpack.c.b16 %v66, %v65
  %v77 = vpack.c.b16 %v68, %v67
  %v78 = vpack.c.b16 %v70, %v69
  %vm79 = vcmask 64512
  %v81 = vsel %vm79, %v71, 0
  %v84 = vsel %vm79, %v72, 0
  %v87 = vsel %vm79, %v73, 0
  %v90 = vsel %vm79, %v74, 0
  %v93 = vsel %vm79, %v75, 0
  %v96 = vsel %vm79, %v76, 0
  %v99 = vsel %vm79, %v77, 0
  %v102 = vsel %vm79, %v78, 0
  %vm104 = vcmask 1043456
  %v106 = vsel %vm104, %v31, 0
  %108 = vmatprep.subr.bf16.mxu0 0
  %109 = vmatpush1.bf16.msra.mxu0 %v106
  %110 = vmatprep.subr.bf16.mxu0 0
  %111 = vmatpush1.bf16.msra.mxu0 0
  %112 = vmatprep.subr.bf16.mxu0 0
  %113 = vmatpush1.bf16.msra.mxu0 0
  %114 = vmatprep.subr.bf16.mxu0 0
  %115 = vmatpush1.bf16.msra.mxu0 0
  %116 = vmatprep.subr.bf16.mxu0 0
  %117 = vmatpush1.bf16.msra.mxu0 0
  %118 = vmatprep.subr.bf16.mxu0 0
  %119 = vmatpush1.bf16.msra.mxu0 0
  %120 = vmatprep.subr.bf16.mxu0 0
  %121 = vmatpush1.bf16.msra.mxu0 0
  %122 = vmatprep.subr.bf16.mxu0 0
  %123 = vmatpush1.bf16.msra.mxu0 0
  %124 = vmatprep.subr.bf16.mxu0 0
  %125 = vmatpush1.bf16.msra.mxu0 0
  %126 = vmatprep.subr.bf16.mxu0 0
  %127 = vmatpush1.bf16.msra.mxu0 0
  %128 = vmatprep.subr.bf16.mxu0 0
  %129 = vmatpush1.bf16.msra.mxu0 0
  %130 = vmatprep.subr.bf16.mxu0 0
  %131 = vmatpush1.bf16.msra.mxu0 0
  %132 = vmatprep.subr.bf16.mxu0 0
  %133 = vmatpush1.bf16.msra.mxu0 0
  %134 = vmatprep.subr.bf16.mxu0 0
  %135 = vmatpush1.bf16.msra.mxu0 0
  %136 = vmatprep.subr.bf16.mxu0 0
  %137 = vmatpush1.bf16.msra.mxu0 0
  %138 = vmatprep.subr.bf16.mxu0 0
  %139 = vmatpush1.bf16.msra.mxu0 0
  %140 = vmatprep.mubr.bf16.mxu0 0
  %141 = vmatmul.mubr.bf16.gmra.mrb[0].mxu0 %v81
  %v142 = vpop.f32.mrb[0].mxu0
  %v143 = vadd.f32 %v37, %v142
  %v144 = vpop.f32.mrb[0].mxu0
  %v145 = vpop.f32.mrb[0].mxu0
  %v146 = vadd.f32 %v37, %v145
  %v147 = vpop.f32.mrb[0].mxu0
  %148 = vmatprep.mubr.bf16.mxu0 0
  %149 = vmatmul.mubr.bf16.gmra.mrb[0].mxu0 %v84
  %v150 = vpop.f32.mrb[0].mxu0
  %v151 = vadd.f32 %v37, %v150
  %v152 = vpop.f32.mrb[0].mxu0
  %v153 = vpop.f32.mrb[0].mxu0
  %v154 = vadd.f32 %v37, %v153
  %v155 = vpop.f32.mrb[0].mxu0
  %156 = vmatprep.mubr.bf16.mxu0 0
  %157 = vmatmul.mubr.bf16.gmra.mrb[0].mxu0 %v87
  %v158 = vpop.f32.mrb[0].mxu0
  %v159 = vadd.f32 %v37, %v158
  %v160 = vpop.f32.mrb[0].mxu0
  %v161 = vpop.f32.mrb[0].mxu0
  %v162 = vadd.f32 %v37, %v161
  %v163 = vpop.f32.mrb[0].mxu0
  %164 = vmatprep.mubr.bf16.mxu0 0
  %165 = vmatmul.mubr.bf16.gmra.mrb[0].mxu0 %v90
  %v166 = vpop.f32.mrb[0].mxu0
  %v167 = vadd.f32 %v37, %v166
  %v168 = vpop.f32.mrb[0].mxu0
  %v169 = vpop.f32.mrb[0].mxu0
  %v170 = vadd.f32 %v37, %v169
  %v171 = vpop.f32.mrb[0].mxu0
  %172 = vmatprep.mubr.bf16.mxu0 0
  %173 = vmatmul.mubr.bf16.gmra.mrb[0].mxu0 %v93
  %v174 = vpop.f32.mrb[0].mxu0
  %v175 = vadd.f32 %v37, %v174
  %v176 = vpop.f32.mrb[0].mxu0
  %v177 = vpop.f32.mrb[0].mxu0
  %v178 = vadd.f32 %v37, %v177
  %v179 = vpop.f32.mrb[0].mxu0
  %180 = vmatprep.mubr.bf16.mxu0 0
  %181 = vmatmul.mubr.bf16.gmra.mrb[0].mxu0 %v96
  %v182 = vpop.f32.mrb[0].mxu0
  %v183 = vadd.f32 %v37, %v182
  %v184 = vpop.f32.mrb[0].mxu0
  %v185 = vpop.f32.mrb[0].mxu0
  %v186 = vadd.f32 %v37, %v185
  %v187 = vpop.f32.mrb[0].mxu0
  %188 = vmatprep.mubr.bf16.mxu0 0
  %189 = vmatmul.mubr.bf16.gmra.mrb[0].mxu0 %v99
  %v190 = vpop.f32.mrb[0].mxu0
  %v191 = vadd.f32 %v37, %v190
  %v192 = vpop.f32.mrb[0].mxu0
  %v193 = vpop.f32.mrb[0].mxu0
  %v194 = vadd.f32 %v37, %v193
  %v195 = vpop.f32.mrb[0].mxu0
  %196 = vmatprep.mubr.bf16.mxu0 0
  %197 = vmatmul.mubr.bf16.gmra.mrb[0].mxu0 %v102
  %v198 = vpop.f32.mrb[0].mxu0
  %v199 = vadd.f32 %v37, %v198
  %v200 = vpop.f32.mrb[0].mxu0
  %v201 = vpop.f32.mrb[0].mxu0
  %v202 = vadd.f32 %v37, %v201
  %v203 = vpop.f32.mrb[0].mxu0
  %204 = vdwg.mxu0
  %v205 = vxor.u32 %v143, 2147483648
  %v206 = vxor.u32 %v146, 2147483648
  %v207 = vxor.u32 %v151, 2147483648
  %v208 = vxor.u32 %v154, 2147483648
  %v209 = vxor.u32 %v159, 2147483648
  %v210 = vxor.u32 %v162, 2147483648
  %v211 = vxor.u32 %v167, 2147483648
  %v212 = vxor.u32 %v170, 2147483648
  %v213 = vxor.u32 %v175, 2147483648
  %v214 = vxor.u32 %v178, 2147483648
  %v215 = vxor.u32 %v183, 2147483648
  %v216 = vxor.u32 %v186, 2147483648
  %v217 = vxor.u32 %v191, 2147483648
  %v218 = vxor.u32 %v194, 2147483648
  %v219 = vxor.u32 %v199, 2147483648
  %v220 = vxor.u32 %v202, 2147483648
  %v221 = vmul.f32 %v205, 1.442695
  %v222 = vpow.pop %v221
  %v223 = vmul.f32 %v206, 1.442695
  %v224 = vpow.pop %v223
  %v225 = vmul.f32 %v207, 1.442695
  %v226 = vpow.pop %v225
  %v227 = vmul.f32 %v208, 1.442695
  %v228 = vpow.pop %v227
  %v229 = vmul.f32 %v209, 1.442695
  %v230 = vpow.pop %v229
  %v231 = vmul.f32 %v210, 1.442695
  %v232 = vpow.pop %v231
  %v233 = vmul.f32 %v211, 1.442695
  %v234 = vpow.pop %v233
  %v235 = vmul.f32 %v212, 1.442695
  %v236 = vpow.pop %v235
  %v237 = vmul.f32 %v213, 1.442695
  %v238 = vpow.pop %v237
  %v239 = vmul.f32 %v214, 1.442695
  %v240 = vpow.pop %v239
  %v241 = vmul.f32 %v215, 1.442695
  %v242 = vpow.pop %v241
  %v243 = vmul.f32 %v216, 1.442695
  %v244 = vpow.pop %v243
  %v245 = vmul.f32 %v217, 1.442695
  %v246 = vpow.pop %v245
  %v247 = vmul.f32 %v218, 1.442695
  %v248 = vpow.pop %v247
  %v249 = vmul.f32 %v219, 1.442695
  %v250 = vpow.pop %v249
  %v251 = vmul.f32 %v220, 1.442695
  %v252 = vpow.pop %v251
  %v253 = vadd.f32 %v222, 1.0
  %v254 = vadd.f32 %v224, 1.0
  %v255 = vadd.f32 %v226, 1.0
  %v256 = vadd.f32 %v228, 1.0
  %v257 = vadd.f32 %v230, 1.0
  %v258 = vadd.f32 %v232, 1.0
  %v259 = vadd.f32 %v234, 1.0
  %v260 = vadd.f32 %v236, 1.0
  %v261 = vadd.f32 %v238, 1.0
  %v262 = vadd.f32 %v240, 1.0
  %v263 = vadd.f32 %v242, 1.0
  %v264 = vadd.f32 %v244, 1.0
  %v265 = vadd.f32 %v246, 1.0
  %v266 = vadd.f32 %v248, 1.0
  %v267 = vadd.f32 %v250, 1.0
  %v268 = vadd.f32 %v252, 1.0
  %v269 = vrcp.pop %v253
  %v270 = vmul.f32 1.0, %v269
  %v271 = vrcp.pop %v254
  %v272 = vmul.f32 1.0, %v271
  %v273 = vrcp.pop %v255
  %v274 = vmul.f32 1.0, %v273
  %v275 = vrcp.pop %v256
  %v276 = vmul.f32 1.0, %v275
  %v277 = vrcp.pop %v257
  %v278 = vmul.f32 1.0, %v277
  %v279 = vrcp.pop %v258
  %v280 = vmul.f32 1.0, %v279
  %v281 = vrcp.pop %v259
  %v282 = vmul.f32 1.0, %v281
  %v283 = vrcp.pop %v260
  %v284 = vmul.f32 1.0, %v283
  %v285 = vrcp.pop %v261
  %v286 = vmul.f32 1.0, %v285
  %v287 = vrcp.pop %v262
  %v288 = vmul.f32 1.0, %v287
  %v289 = vrcp.pop %v263
  %v290 = vmul.f32 1.0, %v289
  %v291 = vrcp.pop %v264
  %v292 = vmul.f32 1.0, %v291
  %v293 = vrcp.pop %v265
  %v294 = vmul.f32 1.0, %v293
  %v295 = vrcp.pop %v266
  %v296 = vmul.f32 1.0, %v295
  %v297 = vrcp.pop %v267
  %v298 = vmul.f32 1.0, %v297
  %v299 = vrcp.pop %v268
  %v300 = vmul.f32 1.0, %v299
  %v301 = vmul.f32 %v143, %v270
  %v302 = vmul.f32 %v146, %v272
  %v303 = vmul.f32 %v151, %v274
  %v304 = vmul.f32 %v154, %v276
  %v305 = vmul.f32 %v159, %v278
  %v306 = vmul.f32 %v162, %v280
  %v307 = vmul.f32 %v167, %v282
  %v308 = vmul.f32 %v170, %v284
  %v309 = vmul.f32 %v175, %v286
  %v310 = vmul.f32 %v178, %v288
  %v311 = vmul.f32 %v183, %v290
  %v312 = vmul.f32 %v186, %v292
  %v313 = vmul.f32 %v191, %v294
  %v314 = vmul.f32 %v194, %v296
  %v315 = vmul.f32 %v199, %v298
  %v316 = vmul.f32 %v202, %v300
  %317 = vst [vmem:[%s3] sm:$0xff] %v301
  %318 = vst [vmem:[%s3 + $0x8] sm:$0xff] %v302
  %319 = vst [vmem:[%s3 + $0x10] sm:$0xff] %v303
  %320 = vst [vmem:[%s3 + $0x18] sm:$0xff] %v304
  %321 = vst [vmem:[%s3 + $0x20] sm:$0xff] %v305
  %322 = vst [vmem:[%s3 + $0x28] sm:$0xff] %v306
  %323 = vst [vmem:[%s3 + $0x30] sm:$0xff] %v307
  %324 = vst [vmem:[%s3 + $0x38] sm:$0xff] %v308
  %325 = vst [vmem:[%s3 + $0x40] sm:$0xff] %v309
  %326 = vst [vmem:[%s3 + $0x48] sm:$0xff] %v310
  %327 = vst [vmem:[%s3 + $0x50] sm:$0xff] %v311
  %328 = vst [vmem:[%s3 + $0x58] sm:$0xff] %v312
  %329 = vst [vmem:[%s3 + $0x60] sm:$0xff] %v313
  %330 = vst [vmem:[%s3 + $0x68] sm:$0xff] %v314
  %331 = vst [vmem:[%s3 + $0x70] sm:$0xff] %v315
  %332 = vst [vmem:[%s3 + $0x78] sm:$0xff] %v316
  // Predicated region
  $region14: #{forward.25} parent=0 // pred_check
    _
  $region15: #{forward.25} parent=0 // pred_check_branch
    %334 = sbr.rel (0) target = $region17
  $region16: #{forward.25} parent=0 // pred_region
    _
  $region17: #{forward.25} parent=0 // pred_fallthru
    _
  // Predicated region
  $region18: #{forward.25} parent=0 // pred_check
    _
  $region19: #{forward.25} parent=0 // pred_check_branch
    %336 = sbr.rel (0) target = $region21
  $region20: #{forward.25} parent=0 // pred_region
    _
  $region21: #{forward.25} parent=0 // pred_fallthru
    _

// kernel: forward.28
$region0: #{forward.28}
  #allocation0 [shape = 'u32[]', space=smem, size = 0x4, offset = 0x4, fixed_abs, tag = 'smem constant byte address 0x4 - core index']
  #allocation1 [shape = 'u32[144,128]{1,0:T(1,128)}', space=vmem, size = 0x12000, scoped, tag = 'internal scratch']
  %s0 = inlined_call_operand.vmem [shape: bf16[32,256], index: 0, kind: input, shape index: {}]
  %s1 = inlined_call_operand.vmem [shape: bf16[256,128], index: 1, kind: input, shape index: {}]
  %s2 = inlined_call_operand.vmem [shape: f32[1,128], index: 2, kind: input, shape index: {}]
  %s3 = inlined_call_operand.vmem [shape: f32[32,128], index: 3, kind: output, shape index: {}]
  %s4 = sld [smem:[#allocation0]]
  $region22: #{forward.28} parent=0
    _
  %s6 = ssub.s32 1, %s4
  %s7 = scalar_select 0, %s6, %s4
  // Predicated region
  $region2: #{forward.28} parent=0 // pred_check
    _
  $region3: #{forward.28} parent=0 // pred_check_branch
    %9 = sbr.rel (0) target = $region5
  $region4: #{forward.28} parent=0 // pred_region
    _
  $region5: #{forward.28} parent=0 // pred_fallthru
    _
  // Predicated region
  $region6: #{forward.28} parent=0 // pred_check
    _
  $region7: #{forward.28} parent=0 // pred_check_branch
    %11 = sbr.rel (0) target = $region9
  $region8: #{forward.28} parent=0 // pred_region
    _
  $region9: #{forward.28} parent=0 // pred_fallthru
    _
  // Predicated region
  $region10: #{forward.28} parent=0 // pred_check
    _
  $region11: #{forward.28} parent=0 // pred_check_branch
    %13 = sbr.rel (0) target = $region13
  $region12: #{forward.28} parent=0 // pred_region
    _
  $region13: #{forward.28} parent=0 // pred_fallthru
    _
  %v15 = vld [vmem:[%s0] sm:$0xff]
  %v16 = vld [vmem:[%s0 + $0x8] sm:$0xff]
  %v17 = vld [vmem:[%s0 + $0x10] sm:$0xff]
  %v18 = vld [vmem:[%s0 + $0x18] sm:$0xff]
  %v19 = vld [vmem:[%s1] sm:$0xf]
  %v20 = vld [vmem:[%s1 + $0x4] sm:$0xf]
  %v21 = vld [vmem:[%s1 + $0x8] sm:$0xf]
  %v22 = vld [vmem:[%s1 + $0xc] sm:$0xf]
  %v23 = vld [vmem:[%s1 + $0x10] sm:$0xf]
  %v24 = vld [vmem:[%s1 + $0x14] sm:$0xf]
  %v25 = vld [vmem:[%s1 + $0x18] sm:$0xf]
  %v26 = vld [vmem:[%s1 + $0x1c] sm:$0xf]
  %v27 = vld [vmem:[%s1 + $0x20] sm:$0xf]
  %v28 = vld [vmem:[%s1 + $0x24] sm:$0xf]
  %v29 = vld [vmem:[%s1 + $0x28] sm:$0xf]
  %v30 = vld [vmem:[%s1 + $0x2c] sm:$0xf]
  %v31 = vld [vmem:[%s1 + $0x30] sm:$0xf]
  %v32 = vld [vmem:[%s1 + $0x34] sm:$0xf]
  %v33 = vld [vmem:[%s1 + $0x38] sm:$0xf]
  %v34 = vld [vmem:[%s1 + $0x3c] sm:$0xf]
  %v35 = vld [vmem:[%s1 + $0x40] sm:$0xf]
  %v36 = vld [vmem:[%s1 + $0x44] sm:$0xf]
  %v37 = vld [vmem:[%s1 + $0x48] sm:$0xf]
  %v38 = vld [vmem:[%s1 + $0x4c] sm:$0xf]
  %v39 = vld [vmem:[%s1 + $0x50] sm:$0xf]
  %v40 = vld [vmem:[%s1 + $0x54] sm:$0xf]
  %v41 = vld [vmem:[%s1 + $0x58] sm:$0xf]
  %v42 = vld [vmem:[%s1 + $0x5c] sm:$0xf]
  %v43 = vld [vmem:[%s1 + $0x60] sm:$0xf]
  %v44 = vld [vmem:[%s1 + $0x64] sm:$0xf]
  %v45 = vld [vmem:[%s1 + $0x68] sm:$0xf]
  %v46 = vld [vmem:[%s1 + $0x6c] sm:$0xf]
  %v47 = vld [vmem:[%s1 + $0x70] sm:$0xf]
  %v48 = vld [vmem:[%s1 + $0x74] sm:$0xf]
  %v49 = vld [vmem:[%s1 + $0x78] sm:$0xf]
  %v50 = vld [vmem:[%s1 + $0x7c] sm:$0xf]
  %v51 = vld [vmem:[%s2] sm:$0x1]
  %v53 = vlaneseq
  %v54 = vshrl.u32 %v53, 7
  %v55 = vsub.s32 0, %v54
  %v56 = vrot.slane %v51, %v55
  %v62 = vunpack.c.l.b16 %v15
  %v63 = vunpack.c.h.b16 %v15
  %v64 = vunpack.c.l.b16 %v16
  %v65 = vunpack.c.h.b16 %v16
  %v66 = vunpack.c.l.b16 %v17
  %v67 = vunpack.c.h.b16 %v17
  %v68 = vunpack.c.l.b16 %v18
  %v69 = vunpack.c.h.b16 %v18
  %v70 = vpack.c.b16 %v64, %v62
  %v71 = vpack.c.b16 %v65, %v63
  %v72 = vpack.c.b16 %v68, %v66
  %v73 = vpack.c.b16 %v69, %v67
  %v110 = vunpack.c.l.b16 %v19
  %v111 = vunpack.c.l.b16 %v20
  %v112 = vunpack.c.l.b16 %v21
  %v113 = vunpack.c.l.b16 %v22
  %v114 = vunpack.c.l.b16 %v23
  %v115 = vunpack.c.l.b16 %v24
  %v116 = vunpack.c.l.b16 %v25
  %v117 = vunpack.c.l.b16 %v26
  %v118 = vunpack.c.l.b16 %v27
  %v119 = vunpack.c.l.b16 %v28
  %v120 = vunpack.c.l.b16 %v29
  %v121 = vunpack.c.l.b16 %v30
  %v122 = vunpack.c.l.b16 %v31
  %v123 = vunpack.c.l.b16 %v32
  %v124 = vunpack.c.l.b16 %v33
  %v125 = vunpack.c.l.b16 %v34
  %v126 = vunpack.c.l.b16 %v35
  %v127 = vunpack.c.l.b16 %v36
  %v128 = vunpack.c.l.b16 %v37
  %v129 = vunpack.c.l.b16 %v38
  %v130 = vunpack.c.l.b16 %v39
  %v131 = vunpack.c.l.b16 %v40
  %v132 = vunpack.c.l.b16 %v41
  %v133 = vunpack.c.l.b16 %v42
  %v134 = vunpack.c.l.b16 %v43
  %v135 = vunpack.c.l.b16 %v44
  %v136 = vunpack.c.l.b16 %v45
  %v137 = vunpack.c.l.b16 %v46
  %v138 = vunpack.c.l.b16 %v47
  %v139 = vunpack.c.l.b16 %v48
  %v140 = vunpack.c.l.b16 %v49
  %v141 = vunpack.c.l.b16 %v50
  %v142 = vpack.c.b16 %v111, %v110
  %v143 = vpack.c.b16 %v113, %v112
  %v144 = vpack.c.b16 %v115, %v114
  %v145 = vpack.c.b16 %v117, %v116
  %v146 = vpack.c.b16 %v119, %v118
  %v147 = vpack.c.b16 %v121, %v120
  %v148 = vpack.c.b16 %v123, %v122
  %v149 = vpack.c.b16 %v125, %v124
  %v150 = vpack.c.b16 %v127, %v126
  %v151 = vpack.c.b16 %v129, %v128
  %v152 = vpack.c.b16 %v131, %v130
  %v153 = vpack.c.b16 %v133, %v132
  %v154 = vpack.c.b16 %v135, %v134
  %v155 = vpack.c.b16 %v137, %v136
  %v156 = vpack.c.b16 %v139, %v138
  %v157 = vpack.c.b16 %v141, %v140
  %174 = vmatprep.subr.bf16.mxu0 0
  %175 = vmatpush1.bf16.msra.mxu0 %v142
  %176 = vmatprep.subr.bf16.mxu0 0
  %177 = vmatpush1.bf16.msra.mxu0 %v143
  %178 = vmatprep.subr.bf16.mxu0 0
  %179 = vmatpush1.bf16.msra.mxu0 %v144
  %180 = vmatprep.subr.bf16.mxu0 0
  %181 = vmatpush1.bf16.msra.mxu0 %v145
  %182 = vmatprep.subr.bf16.mxu0 0
  %183 = vmatpush1.bf16.msra.mxu0 %v146
  %184 = vmatprep.subr.bf16.mxu0 0
  %185 = vmatpush1.bf16.msra.mxu0 %v147
  %186 = vmatprep.subr.bf16.mxu0 0
  %187 = vmatpush1.bf16.msra.mxu0 %v148
  %188 = vmatprep.subr.bf16.mxu0 0
  %189 = vmatpush1.bf16.msra.mxu0 %v149
  %190 = vmatprep.subr.bf16.mxu0 0
  %191 = vmatpush1.bf16.msra.mxu0 %v150
  %192 = vmatprep.subr.bf16.mxu0 0
  %193 = vmatpush1.bf16.msra.mxu0 %v151
  %194 = vmatprep.subr.bf16.mxu0 0
  %195 = vmatpush1.bf16.msra.mxu0 %v152
  %196 = vmatprep.subr.bf16.mxu0 0
  %197 = vmatpush1.bf16.msra.mxu0 %v153
  %198 = vmatprep.subr.bf16.mxu0 0
  %199 = vmatpush1.bf16.msra.mxu0 %v154
  %200 = vmatprep.subr.bf16.mxu0 0
  %201 = vmatpush1.bf16.msra.mxu0 %v155
  %202 = vmatprep.subr.bf16.mxu0 0
  %203 = vmatpush1.bf16.msra.mxu0 %v156
  %204 = vmatprep.subr.bf16.mxu0 0
  %205 = vmatpush1.bf16.msra.mxu0 %v157
  %206 = vmatprep.mubr.bf16.mxu0 %v71
  %207 = vmatmul.mubr.bf16.gmra.mrb[0].mxu0 %v70
  %v208 = vpop.f32.mrb[0].mxu0
  %v209 = vadd.f32 %v56, %v208
  %v210 = vpop.f32.mrb[0].mxu0
  %v211 = vpop.f32.mrb[0].mxu0
  %v212 = vadd.f32 %v56, %v211
  %v213 = vpop.f32.mrb[0].mxu0
  %214 = vmatprep.mubr.bf16.mxu0 %v73
  %215 = vmatmul.mubr.bf16.gmra.mrb[0].mxu0 %v72
  %v216 = vpop.f32.mrb[0].mxu0
  %v217 = vadd.f32 %v56, %v216
  %v218 = vpop.f32.mrb[0].mxu0
  %v219 = vpop.f32.mrb[0].mxu0
  %v220 = vadd.f32 %v56, %v219
  %v221 = vpop.f32.mrb[0].mxu0
  %222 = vdwg.mxu0
  %v223 = vxor.u32 %v209, 2147483648
  %v224 = vxor.u32 %v212, 2147483648
  %v225 = vxor.u32 %v217, 2147483648
  %v226 = vxor.u32 %v220, 2147483648
  %v227 = vmul.f32 %v223, 1.442695
  %v228 = vpow.pop %v227
  %v229 = vmul.f32 %v224, 1.442695
  %v230 = vpow.pop %v229
  %v231 = vmul.f32 %v225, 1.442695
  %v232 = vpow.pop %v231
  %v233 = vmul.f32 %v226, 1.442695
  %v234 = vpow.pop %v233
  %v235 = vadd.f32 %v228, 1.0
  %v236 = vadd.f32 %v230, 1.0
  %v237 = vadd.f32 %v232, 1.0
  %v238 = vadd.f32 %v234, 1.0
  %v239 = vrcp.pop %v235
  %v240 = vmul.f32 1.0, %v239
  %v241 = vrcp.pop %v236
  %v242 = vmul.f32 1.0, %v241
  %v243 = vrcp.pop %v237
  %v244 = vmul.f32 1.0, %v243
  %v245 = vrcp.pop %v238
  %v246 = vmul.f32 1.0, %v245
  %v247 = vmul.f32 %v209, %v240
  %v248 = vmul.f32 %v212, %v242
  %v249 = vmul.f32 %v217, %v244
  %v250 = vmul.f32 %v220, %v246
  %251 = vst [vmem:[%s3] sm:$0xff] %v247
  %252 = vst [vmem:[%s3 + $0x8] sm:$0xff] %v248
  %253 = vst [vmem:[%s3 + $0x10] sm:$0xff] %v249
  %254 = vst [vmem:[%s3 + $0x18] sm:$0xff] %v250
  // Predicated region
  $region14: #{forward.28} parent=0 // pred_check
    _
  $region15: #{forward.28} parent=0 // pred_check_branch
    %256 = sbr.rel (0) target = $region17
  $region16: #{forward.28} parent=0 // pred_region
    _
  $region17: #{forward.28} parent=0 // pred_fallthru
    _
  // Predicated region
  $region18: #{forward.28} parent=0 // pred_check
    _
  $region19: #{forward.28} parent=0 // pred_check_branch
    %258 = sbr.rel (0) target = $region21
  $region20: #{forward.28} parent=0 // pred_region
    _
  $region21: #{forward.28} parent=0 // pred_fallthru
    _

// kernel: forward.29
$region0: #{forward.29}
  #allocation0 [shape = 'u32[]', space=smem, size = 0x4, offset = 0x4, fixed_abs, tag = 'smem constant byte address 0x4 - core index']
  #allocation1 [shape = 'u32[144,128]{1,0:T(1,128)}', space=vmem, size = 0x12000, scoped, tag = 'internal scratch']
  %s0 = inlined_call_operand.vmem [shape: bf16[32,32], index: 0, kind: input, shape index: {}]
  %s1 = inlined_call_operand.vmem [shape: bf16[32,128], index: 1, kind: input, shape index: {}]
  %s2 = inlined_call_operand.vmem [shape: f32[1,128], index: 2, kind: input, shape index: {}]
  %s3 = inlined_call_operand.vmem [shape: f32[32,128], index: 3, kind: output, shape index: {}]
  %s4 = sld [smem:[#allocation0]]
  $region22: #{forward.29} parent=0
    _
  %s6 = ssub.s32 1, %s4
  %s7 = scalar_select 0, %s6, %s4
  // Predicated region
  $region2: #{forward.29} parent=0 // pred_check
    _
  $region3: #{forward.29} parent=0 // pred_check_branch
    %9 = sbr.rel (0) target = $region5
  $region4: #{forward.29} parent=0 // pred_region
    _
  $region5: #{forward.29} parent=0 // pred_fallthru
    _
  // Predicated region
  $region6: #{forward.29} parent=0 // pred_check
    _
  $region7: #{forward.29} parent=0 // pred_check_branch
    %11 = sbr.rel (0) target = $region9
  $region8: #{forward.29} parent=0 // pred_region
    _
  $region9: #{forward.29} parent=0 // pred_fallthru
    _
  // Predicated region
  $region10: #{forward.29} parent=0 // pred_check
    _
  $region11: #{forward.29} parent=0 // pred_check_branch
    %13 = sbr.rel (0) target = $region13
  $region12: #{forward.29} parent=0 // pred_region
    _
  $region13: #{forward.29} parent=0 // pred_fallthru
    _
  %v15 = vld [vmem:[%s0] sm:$0xf]
  %v16 = vld [vmem:[%s0 + $0x4] sm:$0xf]
  %v17 = vld [vmem:[%s0 + $0x8] sm:$0xf]
  %v18 = vld [vmem:[%s0 + $0xc] sm:$0xf]
  %v19 = vld [vmem:[%s1] sm:$0xf]
  %v20 = vld [vmem:[%s1 + $0x4] sm:$0xf]
  %v21 = vld [vmem:[%s1 + $0x8] sm:$0xf]
  %v22 = vld [vmem:[%s1 + $0xc] sm:$0xf]
  %v23 = vld [vmem:[%s2] sm:$0x1]
  %v25 = vlaneseq
  %v26 = vshrl.u32 %v25, 7
  %v27 = vsub.s32 0, %v26
  %v28 = vrot.slane %v23, %v27
  %v34 = vunpack.c.l.b16 %v15
  %v35 = vunpack.c.l.b16 %v16
  %v36 = vunpack.c.l.b16 %v17
  %v37 = vunpack.c.l.b16 %v18
  %v38 = vpack.c.b16 %v35, %v34
  %v39 = vpack.c.b16 %v37, %v36
  %v44 = vunpack.c.l.b16 %v19
  %v45 = vunpack.c.l.b16 %v20
  %v46 = vunpack.c.l.b16 %v21
  %v47 = vunpack.c.l.b16 %v22
  %v48 = vpack.c.b16 %v45, %v44
  %v49 = vpack.c.b16 %v47, %v46
  %vm52 = vcmask 261120
  %v54 = vsel %vm52, %v38, 0
  %v57 = vsel %vm52, %v39, 0
  %59 = vmatprep.subr.bf16.mxu0 0
  %60 = vmatpush1.bf16.msra.mxu0 %v48
  %61 = vmatprep.subr.bf16.mxu0 0
  %62 = vmatpush1.bf16.msra.mxu0 %v49
  %63 = vmatprep.subr.bf16.mxu0 0
  %64 = vmatpush1.bf16.msra.mxu0 0
  %65 = vmatprep.subr.bf16.mxu0 0
  %66 = vmatpush1.bf16.msra.mxu0 0
  %67 = vmatprep.subr.bf16.mxu0 0
  %68 = vmatpush1.bf16.msra.mxu0 0
  %69 = vmatprep.subr.bf16.mxu0 0
  %70 = vmatpush1.bf16.msra.mxu0 0
  %71 = vmatprep.subr.bf16.mxu0 0
  %72 = vmatpush1.bf16.msra.mxu0 0
  %73 = vmatprep.subr.bf16.mxu0 0
  %74 = vmatpush1.bf16.msra.mxu0 0
  %75 = vmatprep.subr.bf16.mxu0 0
  %76 = vmatpush1.bf16.msra.mxu0 0
  %77 = vmatprep.subr.bf16.mxu0 0
  %78 = vmatpush1.bf16.msra.mxu0 0
  %79 = vmatprep.subr.bf16.mxu0 0
  %80 = vmatpush1.bf16.msra.mxu0 0
  %81 = vmatprep.subr.bf16.mxu0 0
  %82 = vmatpush1.bf16.msra.mxu0 0
  %83 = vmatprep.subr.bf16.mxu0 0
  %84 = vmatpush1.bf16.msra.mxu0 0
  %85 = vmatprep.subr.bf16.mxu0 0
  %86 = vmatpush1.bf16.msra.mxu0 0
  %87 = vmatprep.subr.bf16.mxu0 0
  %88 = vmatpush1.bf16.msra.mxu0 0
  %89 = vmatprep.subr.bf16.mxu0 0
  %90 = vmatpush1.bf16.msra.mxu0 0
  %91 = vmatprep.mubr.bf16.mxu0 0
  %92 = vmatmul.mubr.bf16.gmra.mrb[0].mxu0 %v54
  %v93 = vpop.f32.mrb[0].mxu0
  %v94 = vadd.f32 %v28, %v93
  %v95 = vpop.f32.mrb[0].mxu0
  %v96 = vpop.f32.mrb[0].mxu0
  %v97 = vadd.f32 %v28, %v96
  %v98 = vpop.f32.mrb[0].mxu0
  %99 = vmatprep.mubr.bf16.mxu0 0
  %100 = vmatmul.mubr.bf16.gmra.mrb[0].mxu0 %v57
  %v101 = vpop.f32.mrb[0].mxu0
  %v102 = vadd.f32 %v28, %v101
  %v103 = vpop.f32.mrb[0].mxu0
  %v104 = vpop.f32.mrb[0].mxu0
  %v105 = vadd.f32 %v28, %v104
  %v106 = vpop.f32.mrb[0].mxu0
  %107 = vdwg.mxu0
  %v108 = vxor.u32 %v94, 2147483648
  %v109 = vxor.u32 %v97, 2147483648
  %v110 = vxor.u32 %v102, 2147483648
  %v111 = vxor.u32 %v105, 2147483648
  %v112 = vmul.f32 %v108, 1.442695
  %v113 = vpow.pop %v112
  %v114 = vmul.f32 %v109, 1.442695
  %v115 = vpow.pop %v114
  %v116 = vmul.f32 %v110, 1.442695
  %v117 = vpow.pop %v116
  %v118 = vmul.f32 %v111, 1.442695
  %v119 = vpow.pop %v118
  %v120 = vadd.f32 %v113, 1.0
  %v121 = vadd.f32 %v115, 1.0
  %v122 = vadd.f32 %v117, 1.0
  %v123 = vadd.f32 %v119, 1.0
  %v124 = vrcp.pop %v120
  %v125 = vmul.f32 1.0, %v124
  %v126 = vrcp.pop %v121
  %v127 = vmul.f32 1.0, %v126
  %v128 = vrcp.pop %v122
  %v129 = vmul.f32 1.0, %v128
  %v130 = vrcp.pop %v123
  %v131 = vmul.f32 1.0, %v130
  %v132 = vmul.f32 %v94, %v125
  %v133 = vmul.f32 %v97, %v127
  %v134 = vmul.f32 %v102, %v129
  %v135 = vmul.f32 %v105, %v131
  %136 = vst [vmem:[%s3] sm:$0xff] %v132
  %137 = vst [vmem:[%s3 + $0x8] sm:$0xff] %v133
  %138 = vst [vmem:[%s3 + $0x10] sm:$0xff] %v134
  %139 = vst [vmem:[%s3 + $0x18] sm:$0xff] %v135
  // Predicated region
  $region14: #{forward.29} parent=0 // pred_check
    _
  $region15: #{forward.29} parent=0 // pred_check_branch
    %141 = sbr.rel (0) target = $region17
  $region16: #{forward.29} parent=0 // pred_region
    _
  $region17: #{forward.29} parent=0 // pred_fallthru
    _
  // Predicated region
  $region18: #{forward.29} parent=0 // pred_check
    _
  $region19: #{forward.29} parent=0 // pred_check_branch
    %143 = sbr.rel (0) target = $region21
  $region20: #{forward.29} parent=0 // pred_region
    _
  $region21: #{forward.29} parent=0 // pred_fallthru
    _

// kernel: forward.30
$region0: #{forward.30}
  #allocation0 [shape = 'u32[]', space=smem, size = 0x4, offset = 0x4, fixed_abs, tag = 'smem constant byte address 0x4 - core index']
  #allocation1 [shape = 'u32[144,128]{1,0:T(1,128)}', space=vmem, size = 0x12000, scoped, tag = 'internal scratch']
  %s0 = inlined_call_operand.vmem [shape: bf16[32,16], index: 0, kind: input, shape index: {}]
  %s1 = inlined_call_operand.vmem [shape: bf16[16,128], index: 1, kind: input, shape index: {}]
  %s2 = inlined_call_operand.vmem [shape: f32[1,128], index: 2, kind: input, shape index: {}]
  %s3 = inlined_call_operand.vmem [shape: f32[32,128], index: 3, kind: output, shape index: {}]
  %s4 = sld [smem:[#allocation0]]
  $region22: #{forward.30} parent=0
    _
  %s6 = ssub.s32 1, %s4
  %s7 = scalar_select 0, %s6, %s4
  // Predicated region
  $region2: #{forward.30} parent=0 // pred_check
    _
  $region3: #{forward.30} parent=0 // pred_check_branch
    %9 = sbr.rel (0) target = $region5
  $region4: #{forward.30} parent=0 // pred_region
    _
  $region5: #{forward.30} parent=0 // pred_fallthru
    _
  // Predicated region
  $region6: #{forward.30} parent=0 // pred_check
    _
  $region7: #{forward.30} parent=0 // pred_check_branch
    %11 = sbr.rel (0) target = $region9
  $region8: #{forward.30} parent=0 // pred_region
    _
  $region9: #{forward.30} parent=0 // pred_fallthru
    _
  // Predicated region
  $region10: #{forward.30} parent=0 // pred_check
    _
  $region11: #{forward.30} parent=0 // pred_check_branch
    %13 = sbr.rel (0) target = $region13
  $region12: #{forward.30} parent=0 // pred_region
    _
  $region13: #{forward.30} parent=0 // pred_fallthru
    _
  %v15 = vld [vmem:[%s0] sm:$0xf]
  %v16 = vld [vmem:[%s0 + $0x4] sm:$0xf]
  %v17 = vld [vmem:[%s0 + $0x8] sm:$0xf]
  %v18 = vld [vmem:[%s0 + $0xc] sm:$0xf]
  %v19 = vld [vmem:[%s1] sm:$0xf]
  %v20 = vld [vmem:[%s1 + $0x4] sm:$0xf]
  %v21 = vld [vmem:[%s2] sm:$0x1]
  %v23 = vlaneseq
  %v24 = vshrl.u32 %v23, 7
  %v25 = vsub.s32 0, %v24
  %v26 = vrot.slane %v21, %v25
  %v32 = vunpack.c.l.b16 %v15
  %v33 = vunpack.c.l.b16 %v16
  %v34 = vunpack.c.l.b16 %v17
  %v35 = vunpack.c.l.b16 %v18
  %v36 = vpack.c.b16 %v33, %v32
  %v37 = vpack.c.b16 %v35, %v34
  %v40 = vunpack.c.l.b16 %v19
  %v41 = vunpack.c.l.b16 %v20
  %v42 = vpack.c.b16 %v41, %v40
  %vm44 = vcmask 130048
  %v46 = vsel %vm44, %v36, 0
  %v49 = vsel %vm44, %v37, 0
  %51 = vmatprep.subr.bf16.mxu0 0
  %52 = vmatpush1.bf16.msra.mxu0 %v42
  %53 = vmatprep.subr.bf16.mxu0 0
  %54 = vmatpush1.bf16.msra.mxu0 0
  %55 = vmatprep.subr.bf16.mxu0 0
  %56 = vmatpush1.bf16.msra.mxu0 0
  %57 = vmatprep.subr.bf16.mxu0 0
  %58 = vmatpush1.bf16.msra.mxu0 0
  %59 = vmatprep.subr.bf16.mxu0 0
  %60 = vmatpush1.bf16.msra.mxu0 0
  %61 = vmatprep.subr.bf16.mxu0 0
  %62 = vmatpush1.bf16.msra.mxu0 0
  %63 = vmatprep.subr.bf16.mxu0 0
  %64 = vmatpush1.bf16.msra.mxu0 0
  %65 = vmatprep.subr.bf16.mxu0 0
  %66 = vmatpush1.bf16.msra.mxu0 0
  %67 = vmatprep.subr.bf16.mxu0 0
  %68 = vmatpush1.bf16.msra.mxu0 0
  %69 = vmatprep.subr.bf16.mxu0 0
  %70 = vmatpush1.bf16.msra.mxu0 0
  %71 = vmatprep.subr.bf16.mxu0 0
  %72 = vmatpush1.bf16.msra.mxu0 0
  %73 = vmatprep.subr.bf16.mxu0 0
  %74 = vmatpush1.bf16.msra.mxu0 0
  %75 = vmatprep.subr.bf16.mxu0 0
  %76 = vmatpush1.bf16.msra.mxu0 0
  %77 = vmatprep.subr.bf16.mxu0 0
  %78 = vmatpush1.bf16.msra.mxu0 0
  %79 = vmatprep.subr.bf16.mxu0 0
  %80 = vmatpush1.bf16.msra.mxu0 0
  %81 = vmatprep.subr.bf16.mxu0 0
  %82 = vmatpush1.bf16.msra.mxu0 0
  %83 = vmatprep.mubr.bf16.mxu0 0
  %84 = vmatmul.mubr.bf16.gmra.mrb[0].mxu0 %v46
  %v85 = vpop.f32.mrb[0].mxu0
  %v86 = vadd.f32 %v26, %v85
  %v87 = vpop.f32.mrb[0].mxu0
  %v88 = vpop.f32.mrb[0].mxu0
  %v89 = vadd.f32 %v26, %v88
  %v90 = vpop.f32.mrb[0].mxu0
  %91 = vmatprep.mubr.bf16.mxu0 0
  %92 = vmatmul.mubr.bf16.gmra.mrb[0].mxu0 %v49
  %v93 = vpop.f32.mrb[0].mxu0
  %v94 = vadd.f32 %v26, %v93
  %v95 = vpop.f32.mrb[0].mxu0
  %v96 = vpop.f32.mrb[0].mxu0
  %v97 = vadd.f32 %v26, %v96
  %v98 = vpop.f32.mrb[0].mxu0
  %99 = vdwg.mxu0
  %v100 = vxor.u32 %v86, 2147483648
  %v101 = vxor.u32 %v89, 2147483648
  %v102 = vxor.u32 %v94, 2147483648
  %v103 = vxor.u32 %v97, 2147483648
  %v104 = vmul.f32 %v100, 1.442695
  %v105 = vpow.pop %v104
  %v106 = vmul.f32 %v101, 1.442695
  %v107 = vpow.pop %v106
  %v108 = vmul.f32 %v102, 1.442695
  %v109 = vpow.pop %v108
  %v110 = vmul.f32 %v103, 1.442695
  %v111 = vpow.pop %v110
  %v112 = vadd.f32 %v105, 1.0
  %v113 = vadd.f32 %v107, 1.0
  %v114 = vadd.f32 %v109, 1.0
  %v115 = vadd.f32 %v111, 1.0
  %v116 = vrcp.pop %v112
  %v117 = vmul.f32 1.0, %v116
  %v118 = vrcp.pop %v113
  %v119 = vmul.f32 1.0, %v118
  %v120 = vrcp.pop %v114
  %v121 = vmul.f32 1.0, %v120
  %v122 = vrcp.pop %v115
  %v123 = vmul.f32 1.0, %v122
  %v124 = vmul.f32 %v86, %v117
  %v125 = vmul.f32 %v89, %v119
  %v126 = vmul.f32 %v94, %v121
  %v127 = vmul.f32 %v97, %v123
  %128 = vst [vmem:[%s3] sm:$0xff] %v124
  %129 = vst [vmem:[%s3 + $0x8] sm:$0xff] %v125
  %130 = vst [vmem:[%s3 + $0x10] sm:$0xff] %v126
  %131 = vst [vmem:[%s3 + $0x18] sm:$0xff] %v127
  // Predicated region
  $region14: #{forward.30} parent=0 // pred_check
    _
  $region15: #{forward.30} parent=0 // pred_check_branch
    %133 = sbr.rel (0) target = $region17
  $region16: #{forward.30} parent=0 // pred_region
    _
  $region17: #{forward.30} parent=0 // pred_fallthru
    _
  // Predicated region
  $region18: #{forward.30} parent=0 // pred_check
    _
  $region19: #{forward.30} parent=0 // pred_check_branch
    %135 = sbr.rel (0) target = $region21
  $region20: #{forward.30} parent=0 // pred_region
    _
  $region21: #{forward.30} parent=0 // pred_fallthru
    _

// kernel: forward.34
$region0: #{forward.34}
  #allocation0 [shape = 'u32[]', space=smem, size = 0x4, offset = 0x4, fixed_abs, tag = 'smem constant byte address 0x4 - core index']
  #allocation1 [shape = 'u32[144,128]{1,0:T(1,128)}', space=vmem, size = 0x12000, scoped, tag = 'internal scratch']
  %s0 = inlined_call_operand.vmem [shape: bf16[16,64], index: 0, kind: input, shape index: {}]
  %s1 = inlined_call_operand.vmem [shape: bf16[64,128], index: 1, kind: input, shape index: {}]
  %s2 = inlined_call_operand.vmem [shape: f32[1,128], index: 2, kind: input, shape index: {}]
  %s3 = inlined_call_operand.vmem [shape: f32[16,128], index: 3, kind: output, shape index: {}]
  %s4 = sld [smem:[#allocation0]]
  $region22: #{forward.34} parent=0
    _
  %s6 = ssub.s32 1, %s4
  %s7 = scalar_select 0, %s6, %s4
  // Predicated region
  $region2: #{forward.34} parent=0 // pred_check
    _
  $region3: #{forward.34} parent=0 // pred_check_branch
    %9 = sbr.rel (0) target = $region5
  $region4: #{forward.34} parent=0 // pred_region
    _
  $region5: #{forward.34} parent=0 // pred_fallthru
    _
  // Predicated region
  $region6: #{forward.34} parent=0 // pred_check
    _
  $region7: #{forward.34} parent=0 // pred_check_branch
    %11 = sbr.rel (0) target = $region9
  $region8: #{forward.34} parent=0 // pred_region
    _
  $region9: #{forward.34} parent=0 // pred_fallthru
    _
  // Predicated region
  $region10: #{forward.34} parent=0 // pred_check
    _
  $region11: #{forward.34} parent=0 // pred_check_branch
    %13 = sbr.rel (0) target = $region13
  $region12: #{forward.34} parent=0 // pred_region
    _
  $region13: #{forward.34} parent=0 // pred_fallthru
    _
  %v15 = vld [vmem:[%s0] sm:$0xf]
  %v16 = vld [vmem:[%s0 + $0x4] sm:$0xf]
  %v17 = vld [vmem:[%s1] sm:$0xf]
  %v18 = vld [vmem:[%s1 + $0x4] sm:$0xf]
  %v19 = vld [vmem:[%s1 + $0x8] sm:$0xf]
  %v20 = vld [vmem:[%s1 + $0xc] sm:$0xf]
  %v21 = vld [vmem:[%s1 + $0x10] sm:$0xf]
  %v22 = vld [vmem:[%s1 + $0x14] sm:$0xf]
  %v23 = vld [vmem:[%s1 + $0x18] sm:$0xf]
  %v24 = vld [vmem:[%s1 + $0x1c] sm:$0xf]
  %v25 = vld [vmem:[%s2] sm:$0x1]
  %v27 = vlaneseq
  %v28 = vshrl.u32 %v27, 7
  %v29 = vsub.s32 0, %v28
  %v30 = vrot.slane %v25, %v29
  %v34 = vunpack.c.l.b16 %v15
  %v35 = vunpack.c.l.b16 %v16
  %v36 = vpack.c.b16 %v35, %v34
  %v45 = vunpack.c.l.b16 %v17
  %v46 = vunpack.c.l.b16 %v18
  %v47 = vunpack.c.l.b16 %v19
  %v48 = vunpack.c.l.b16 %v20
  %v49 = vunpack.c.l.b16 %v21
  %v50 = vunpack.c.l.b16 %v22
  %v51 = vunpack.c.l.b16 %v23
  %v52 = vunpack.c.l.b16 %v24
  %v53 = vpack.c.b16 %v46, %v45
  %v54 = vpack.c.b16 %v48, %v47
  %v55 = vpack.c.b16 %v50, %v49
  %v56 = vpack.c.b16 %v52, %v51
  %vm61 = vcmask 523264
  %v63 = vsel %vm61, %v36, 0
  %65 = vmatprep.subr.bf16.mxu0 0
  %66 = vmatpush1.bf16.msra.mxu0 %v53
  %67 = vmatprep.subr.bf16.mxu0 0
  %68 = vmatpush1.bf16.msra.mxu0 %v54
  %69 = vmatprep.subr.bf16.mxu0 0
  %70 = vmatpush1.bf16.msra.mxu0 %v55
  %71 = vmatprep.subr.bf16.mxu0 0
  %72 = vmatpush1.bf16.msra.mxu0 %v56
  %73 = vmatprep.subr.bf16.mxu0 0
  %74 = vmatpush1.bf16.msra.mxu0 0
  %75 = vmatprep.subr.bf16.mxu0 0
  %76 = vmatpush1.bf16.msra.mxu0 0
  %77 = vmatprep.subr.bf16.mxu0 0
  %78 = vmatpush1.bf16.msra.mxu0 0
  %79 = vmatprep.subr.bf16.mxu0 0
  %80 = vmatpush1.bf16.msra.mxu0 0
  %81 = vmatprep.subr.bf16.mxu0 0
  %82 = vmatpush1.bf16.msra.mxu0 0
  %83 = vmatprep.subr.bf16.mxu0 0
  %84 = vmatpush1.bf16.msra.mxu0 0
  %85 = vmatprep.subr.bf16.mxu0 0
  %86 = vmatpush1.bf16.msra.mxu0 0
  %87 = vmatprep.subr.bf16.mxu0 0
  %88 = vmatpush1.bf16.msra.mxu0 0
  %89 = vmatprep.subr.bf16.mxu0 0
  %90 = vmatpush1.bf16.msra.mxu0 0
  %91 = vmatprep.subr.bf16.mxu0 0
  %92 = vmatpush1.bf16.msra.mxu0 0
  %93 = vmatprep.subr.bf16.mxu0 0
  %94 = vmatpush1.bf16.msra.mxu0 0
  %95 = vmatprep.subr.bf16.mxu0 0
  %96 = vmatpush1.bf16.msra.mxu0 0
  %97 = vmatprep.mubr.bf16.mxu0 0
  %98 = vmatmul.mubr.bf16.gmra.mrb[0].mxu0 %v63
  %v99 = vpop.f32.mrb[0].mxu0
  %v100 = vadd.f32 %v30, %v99
  %v101 = vpop.f32.mrb[0].mxu0
  %v102 = vpop.f32.mrb[0].mxu0
  %v103 = vadd.f32 %v30, %v102
  %v104 = vpop.f32.mrb[0].mxu0
  %105 = vdwg.mxu0
  %v106 = vxor.u32 %v100, 2147483648
  %v107 = vxor.u32 %v103, 2147483648
  %v108 = vmul.f32 %v106, 1.442695
  %v109 = vpow.pop %v108
  %v110 = vmul.f32 %v107, 1.442695
  %v111 = vpow.pop %v110
  %v112 = vadd.f32 %v109, 1.0
  %v113 = vadd.f32 %v111, 1.0
  %v114 = vrcp.pop %v112
  %v115 = vmul.f32 1.0, %v114
  %v116 = vrcp.pop %v113
  %v117 = vmul.f32 1.0, %v116
  %v118 = vmul.f32 %v100, %v115
  %v119 = vmul.f32 %v103, %v117
  %120 = vst [vmem:[%s3] sm:$0xff] %v118
  %121 = vst [vmem:[%s3 + $0x8] sm:$0xff] %v119
  // Predicated region
  $region14: #{forward.34} parent=0 // pred_check
    _
  $region15: #{forward.34} parent=0 // pred_check_branch
    %123 = sbr.rel (0) target = $region17
  $region16: #{forward.34} parent=0 // pred_region
    _
  $region17: #{forward.34} parent=0 // pred_fallthru
    _
  // Predicated region
  $region18: #{forward.34} parent=0 // pred_check
    _
  $region19: #{forward.34} parent=0 // pred_check_branch
    %125 = sbr.rel (0) target = $region21
  $region20: #{forward.34} parent=0 // pred_region
    _
  $region21: #{forward.34} parent=0 // pred_fallthru
    _

// kernel: forward.33
$region0: #{forward.33}
  #allocation0 [shape = 'u32[]', space=smem, size = 0x4, offset = 0x4, fixed_abs, tag = 'smem constant byte address 0x4 - core index']
  #allocation1 [shape = 'u32[144,128]{1,0:T(1,128)}', space=vmem, size = 0x12000, scoped, tag = 'internal scratch']
  %s0 = inlined_call_operand.vmem [shape: bf16[16,384], index: 0, kind: input, shape index: {}]
  %s1 = inlined_call_operand.vmem [shape: bf16[384,128], index: 1, kind: input, shape index: {}]
  %s2 = inlined_call_operand.vmem [shape: f32[1,128], index: 2, kind: input, shape index: {}]
  %s3 = inlined_call_operand.vmem [shape: f32[16,128], index: 3, kind: output, shape index: {}]
  %s4 = sld [smem:[#allocation0]]
  $region22: #{forward.33} parent=0
    _
  %s6 = ssub.s32 1, %s4
  %s7 = scalar_select 0, %s6, %s4
  // Predicated region
  $region2: #{forward.33} parent=0 // pred_check
    _
  $region3: #{forward.33} parent=0 // pred_check_branch
    %9 = sbr.rel (0) target = $region5
  $region4: #{forward.33} parent=0 // pred_region
    _
  $region5: #{forward.33} parent=0 // pred_fallthru
    _
  // Predicated region
  $region6: #{forward.33} parent=0 // pred_check
    _
  $region7: #{forward.33} parent=0 // pred_check_branch
    %11 = sbr.rel (0) target = $region9
  $region8: #{forward.33} parent=0 // pred_region
    _
  $region9: #{forward.33} parent=0 // pred_fallthru
    _
  // Predicated region
  $region10: #{forward.33} parent=0 // pred_check
    _
  $region11: #{forward.33} parent=0 // pred_check_branch
    %13 = sbr.rel (0) target = $region13
  $region12: #{forward.33} parent=0 // pred_region
    _
  $region13: #{forward.33} parent=0 // pred_fallthru
    _
  %v15 = vld [vmem:[%s0] sm:$0xff]
  %v16 = vld [vmem:[%s0 + $0x8] sm:$0xf]
  %v17 = vld [vmem:[%s0 + $0xc] sm:$0xff]
  %v18 = vld [vmem:[%s0 + $0x14] sm:$0xf]
  %v19 = vld [vmem:[%s1] sm:$0xf]
  %v20 = vld [vmem:[%s1 + $0x4] sm:$0xf]
  %v21 = vld [vmem:[%s1 + $0x8] sm:$0xf]
  %v22 = vld [vmem:[%s1 + $0xc] sm:$0xf]
  %v23 = vld [vmem:[%s1 + $0x10] sm:$0xf]
  %v24 = vld [vmem:[%s1 + $0x14] sm:$0xf]
  %v25 = vld [vmem:[%s1 + $0x18] sm:$0xf]
  %v26 = vld [vmem:[%s1 + $0x1c] sm:$0xf]
  %v27 = vld [vmem:[%s1 + $0x20] sm:$0xf]
  %v28 = vld [vmem:[%s1 + $0x24] sm:$0xf]
  %v29 = vld [vmem:[%s1 + $0x28] sm:$0xf]
  %v30 = vld [vmem:[%s1 + $0x2c] sm:$0xf]
  %v31 = vld [vmem:[%s1 + $0x30] sm:$0xf]
  %v32 = vld [vmem:[%s1 + $0x34] sm:$0xf]
  %v33 = vld [vmem:[%s1 + $0x38] sm:$0xf]
  %v34 = vld [vmem:[%s1 + $0x3c] sm:$0xf]
  %v35 = vld [vmem:[%s1 + $0x40] sm:$0xf]
  %v36 = vld [vmem:[%s1 + $0x44] sm:$0xf]
  %v37 = vld [vmem:[%s1 + $0x48] sm:$0xf]
  %v38 = vld [vmem:[%s1 + $0x4c] sm:$0xf]
  %v39 = vld [vmem:[%s1 + $0x50] sm:$0xf]
  %v40 = vld [vmem:[%s1 + $0x54] sm:$0xf]
  %v41 = vld [vmem:[%s1 + $0x58] sm:$0xf]
  %v42 = vld [vmem:[%s1 + $0x5c] sm:$0xf]
  %v43 = vld [vmem:[%s1 + $0x60] sm:$0xf]
  %v44 = vld [vmem:[%s1 + $0x64] sm:$0xf]
  %v45 = vld [vmem:[%s1 + $0x68] sm:$0xf]
  %v46 = vld [vmem:[%s1 + $0x6c] sm:$0xf]
  %v47 = vld [vmem:[%s1 + $0x70] sm:$0xf]
  %v48 = vld [vmem:[%s1 + $0x74] sm:$0xf]
  %v49 = vld [vmem:[%s1 + $0x78] sm:$0xf]
  %v50 = vld [vmem:[%s1 + $0x7c] sm:$0xf]
  %v51 = vld [vmem:[%s1 + $0x80] sm:$0xf]
  %v52 = vld [vmem:[%s1 + $0x84] sm:$0xf]
  %v53 = vld [vmem:[%s1 + $0x88] sm:$0xf]
  %v54 = vld [vmem:[%s1 + $0x8c] sm:$0xf]
  %v55 = vld [vmem:[%s1 + $0x90] sm:$0xf]
  %v56 = vld [vmem:[%s1 + $0x94] sm:$0xf]
  %v57 = vld [vmem:[%s1 + $0x98] sm:$0xf]
  %v58 = vld [vmem:[%s1 + $0x9c] sm:$0xf]
  %v59 = vld [vmem:[%s1 + $0xa0] sm:$0xf]
  %v60 = vld [vmem:[%s1 + $0xa4] sm:$0xf]
  %v61 = vld [vmem:[%s1 + $0xa8] sm:$0xf]
  %v62 = vld [vmem:[%s1 + $0xac] sm:$0xf]
  %v63 = vld [vmem:[%s1 + $0xb0] sm:$0xf]
  %v64 = vld [vmem:[%s1 + $0xb4] sm:$0xf]
  %v65 = vld [vmem:[%s1 + $0xb8] sm:$0xf]
  %v66 = vld [vmem:[%s1 + $0xbc] sm:$0xf]
  %v67 = vld [vmem:[%s2] sm:$0x1]
  %v69 = vlaneseq
  %v70 = vshrl.u32 %v69, 7
  %v71 = vsub.s32 0, %v70
  %v72 = vrot.slane %v67, %v71
  %v78 = vunpack.c.l.b16 %v15
  %v79 = vunpack.c.h.b16 %v15
  %v80 = vunpack.c.l.b16 %v16
  %v81 = vunpack.c.l.b16 %v17
  %v82 = vunpack.c.h.b16 %v17
  %v83 = vunpack.c.l.b16 %v18
  %v84 = vpack.c.b16 %v81, %v78
  %v85 = vpack.c.b16 %v82, %v79
  %v86 = vpack.c.b16 %v83, %v80
  %v138 = vunpack.c.l.b16 %v19
  %v139 = vunpack.c.l.b16 %v20
  %v140 = vunpack.c.l.b16 %v21
  %v141 = vunpack.c.l.b16 %v22
  %v142 = vunpack.c.l.b16 %v23
  %v143 = vunpack.c.l.b16 %v24
  %v144 = vunpack.c.l.b16 %v25
  %v145 = vunpack.c.l.b16 %v26
  %v146 = vunpack.c.l.b16 %v27
  %v147 = vunpack.c.l.b16 %v28
  %v148 = vunpack.c.l.b16 %v29
  %v149 = vunpack.c.l.b16 %v30
  %v150 = vunpack.c.l.b16 %v31
  %v151 = vunpack.c.l.b16 %v32
  %v152 = vunpack.c.l.b16 %v33
  %v153 = vunpack.c.l.b16 %v34
  %v154 = vunpack.c.l.b16 %v35
  %v155 = vunpack.c.l.b16 %v36
  %v156 = vunpack.c.l.b16 %v37
  %v157 = vunpack.c.l.b16 %v38
  %v158 = vunpack.c.l.b16 %v39
  %v159 = vunpack.c.l.b16 %v40
  %v160 = vunpack.c.l.b16 %v41
  %v161 = vunpack.c.l.b16 %v42
  %v162 = vunpack.c.l.b16 %v43
  %v163 = vunpack.c.l.b16 %v44
  %v164 = vunpack.c.l.b16 %v45
  %v165 = vunpack.c.l.b16 %v46
  %v166 = vunpack.c.l.b16 %v47
  %v167 = vunpack.c.l.b16 %v48
  %v168 = vunpack.c.l.b16 %v49
  %v169 = vunpack.c.l.b16 %v50
  %v170 = vunpack.c.l.b16 %v51
  %v171 = vunpack.c.l.b16 %v52
  %v172 = vunpack.c.l.b16 %v53
  %v173 = vunpack.c.l.b16 %v54
  %v174 = vunpack.c.l.b16 %v55
  %v175 = vunpack.c.l.b16 %v56
  %v176 = vunpack.c.l.b16 %v57
  %v177 = vunpack.c.l.b16 %v58
  %v178 = vunpack.c.l.b16 %v59
  %v179 = vunpack.c.l.b16 %v60
  %v180 = vunpack.c.l.b16 %v61
  %v181 = vunpack.c.l.b16 %v62
  %v182 = vunpack.c.l.b16 %v63
  %v183 = vunpack.c.l.b16 %v64
  %v184 = vunpack.c.l.b16 %v65
  %v185 = vunpack.c.l.b16 %v66
  %v186 = vpack.c.b16 %v139, %v138
  %v187 = vpack.c.b16 %v141, %v140
  %v188 = vpack.c.b16 %v143, %v142
  %v189 = vpack.c.b16 %v145, %v144
  %v190 = vpack.c.b16 %v147, %v146
  %v191 = vpack.c.b16 %v149, %v148
  %v192 = vpack.c.b16 %v151, %v150
  %v193 = vpack.c.b16 %v153, %v152
  %v194 = vpack.c.b16 %v155, %v154
  %v195 = vpack.c.b16 %v157, %v156
  %v196 = vpack.c.b16 %v159, %v158
  %v197 = vpack.c.b16 %v161, %v160
  %v198 = vpack.c.b16 %v163, %v162
  %v199 = vpack.c.b16 %v165, %v164
  %v200 = vpack.c.b16 %v167, %v166
  %v201 = vpack.c.b16 %v169, %v168
  %v202 = vpack.c.b16 %v171, %v170
  %v203 = vpack.c.b16 %v173, %v172
  %v204 = vpack.c.b16 %v175, %v174
  %v205 = vpack.c.b16 %v177, %v176
  %v206 = vpack.c.b16 %v179, %v178
  %v207 = vpack.c.b16 %v181, %v180
  %v208 = vpack.c.b16 %v183, %v182
  %v209 = vpack.c.b16 %v185, %v184
  %234 = vmatprep.subr.bf16.mxu0 0
  %235 = vmatpush1.bf16.msra.mxu0 %v186
  %236 = vmatprep.subr.bf16.mxu0 0
  %237 = vmatpush1.bf16.msra.mxu0 %v187
  %238 = vmatprep.subr.bf16.mxu0 0
  %239 = vmatpush1.bf16.msra.mxu0 %v188
  %240 = vmatprep.subr.bf16.mxu0 0
  %241 = vmatpush1.bf16.msra.mxu0 %v189
  %242 = vmatprep.subr.bf16.mxu0 0
  %243 = vmatpush1.bf16.msra.mxu0 %v190
  %244 = vmatprep.subr.bf16.mxu0 0
  %245 = vmatpush1.bf16.msra.mxu0 %v191
  %246 = vmatprep.subr.bf16.mxu0 0
  %247 = vmatpush1.bf16.msra.mxu0 %v192
  %248 = vmatprep.subr.bf16.mxu0 0
  %249 = vmatpush1.bf16.msra.mxu0 %v193
  %250 = vmatprep.subr.bf16.mxu0 0
  %251 = vmatpush1.bf16.msra.mxu0 %v194
  %252 = vmatprep.subr.bf16.mxu0 0
  %253 = vmatpush1.bf16.msra.mxu0 %v195
  %254 = vmatprep.subr.bf16.mxu0 0
  %255 = vmatpush1.bf16.msra.mxu0 %v196
  %256 = vmatprep.subr.bf16.mxu0 0
  %257 = vmatpush1.bf16.msra.mxu0 %v197
  %258 = vmatprep.subr.bf16.mxu0 0
  %259 = vmatpush1.bf16.msra.mxu0 %v198
  %260 = vmatprep.subr.bf16.mxu0 0
  %261 = vmatpush1.bf16.msra.mxu0 %v199
  %262 = vmatprep.subr.bf16.mxu0 0
  %263 = vmatpush1.bf16.msra.mxu0 %v200
  %264 = vmatprep.subr.bf16.mxu0 0
  %265 = vmatpush1.bf16.msra.mxu0 %v201
  %266 = vmatprep.mubr.bf16.mxu0 %v85
  %267 = vmatmul.mubr.bf16.gmra.mrb[0].mxu0 %v84
  %v268 = vpop.f32.mrb[0].mxu0
  %v269 = vadd.f32 %v72, %v268
  %v270 = vpop.f32.mrb[0].mxu0
  %v271 = vpop.f32.mrb[0].mxu0
  %v272 = vadd.f32 %v72, %v271
  %v273 = vpop.f32.mrb[0].mxu0
  %274 = vdwg.mxu0
  %275 = vmatprep.subr.bf16.mxu0 0
  %276 = vmatpush1.bf16.msra.mxu0 %v202
  %277 = vmatprep.subr.bf16.mxu0 0
  %278 = vmatpush1.bf16.msra.mxu0 %v203
  %279 = vmatprep.subr.bf16.mxu0 0
  %280 = vmatpush1.bf16.msra.mxu0 %v204
  %281 = vmatprep.subr.bf16.mxu0 0
  %282 = vmatpush1.bf16.msra.mxu0 %v205
  %283 = vmatprep.subr.bf16.mxu0 0
  %284 = vmatpush1.bf16.msra.mxu0 %v206
  %285 = vmatprep.subr.bf16.mxu0 0
  %286 = vmatpush1.bf16.msra.mxu0 %v207
  %287 = vmatprep.subr.bf16.mxu0 0
  %288 = vmatpush1.bf16.msra.mxu0 %v208
  %289 = vmatprep.subr.bf16.mxu0 0
  %290 = vmatpush1.bf16.msra.mxu0 %v209
  %291 = vmatprep.subr.bf16.mxu0 0
  %292 = vmatpush1.bf16.msra.mxu0 0
  %293 = vmatprep.subr.bf16.mxu0 0
  %294 = vmatpush1.bf16.msra.mxu0 0
  %295 = vmatprep.subr.bf16.mxu0 0
  %296 = vmatpush1.bf16.msra.mxu0 0
  %297 = vmatprep.subr.bf16.mxu0 0
  %298 = vmatpush1.bf16.msra.mxu0 0
  %299 = vmatprep.subr.bf16.mxu0 0
  %300 = vmatpush1.bf16.msra.mxu0 0
  %301 = vmatprep.subr.bf16.mxu0 0
  %302 = vmatpush1.bf16.msra.mxu0 0
  %303 = vmatprep.subr.bf16.mxu0 0
  %304 = vmatpush1.bf16.msra.mxu0 0
  %305 = vmatprep.subr.bf16.mxu0 0
  %306 = vmatpush1.bf16.msra.mxu0 0
  %307 = vmatprep.mubr.bf16.mxu0 0
  %308 = vmatmul.mubr.bf16.gmra.mrb[0].mxu0 %v86
  %v309 = vpop.f32.mrb[0].mxu0
  %v310 = vadd.f32 %v269, %v309
  %v311 = vpop.f32.mrb[0].mxu0
  %v312 = vpop.f32.mrb[0].mxu0
  %v313 = vadd.f32 %v272, %v312
  %v314 = vpop.f32.mrb[0].mxu0
  %315 = vdwg.mxu0
  %v316 = vxor.u32 %v310, 2147483648
  %v317 = vxor.u32 %v313, 2147483648
  %v318 = vmul.f32 %v316, 1.442695
  %v319 = vpow.pop %v318
  %v320 = vmul.f32 %v317, 1.442695
  %v321 = vpow.pop %v320
  %v322 = vadd.f32 %v319, 1.0
  %v323 = vadd.f32 %v321, 1.0
  %v324 = vrcp.pop %v322
  %v325 = vmul.f32 1.0, %v324
  %v326 = vrcp.pop %v323
  %v327 = vmul.f32 1.0, %v326
  %v328 = vmul.f32 %v310, %v325
  %v329 = vmul.f32 %v313, %v327
  %330 = vst [vmem:[%s3] sm:$0xff] %v328
  %331 = vst [vmem:[%s3 + $0x8] sm:$0xff] %v329
  // Predicated region
  $region14: #{forward.33} parent=0 // pred_check
    _
  $region15: #{forward.33} parent=0 // pred_check_branch
    %333 = sbr.rel (0) target = $region17
  $region16: #{forward.33} parent=0 // pred_region
    _
  $region17: #{forward.33} parent=0 // pred_fallthru
    _
  // Predicated region
  $region18: #{forward.33} parent=0 // pred_check
    _
  $region19: #{forward.33} parent=0 // pred_check_branch
    %335 = sbr.rel (0) target = $region21
  $region20: #{forward.33} parent=0 // pred_region
    _
  $region21: #{forward.33} parent=0 // pred_fallthru
    _

// kernel: forward.35
$region0: #{forward.35}
  #allocation0 [shape = 'u32[]', space=smem, size = 0x4, offset = 0x4, fixed_abs, tag = 'smem constant byte address 0x4 - core index']
  #allocation1 [shape = 'u32[144,128]{1,0:T(1,128)}', space=vmem, size = 0x12000, scoped, tag = 'internal scratch']
  %s0 = inlined_call_operand.vmem [shape: bf16[16,32], index: 0, kind: input, shape index: {}]
  %s1 = inlined_call_operand.vmem [shape: bf16[32,128], index: 1, kind: input, shape index: {}]
  %s2 = inlined_call_operand.vmem [shape: f32[1,128], index: 2, kind: input, shape index: {}]
  %s3 = inlined_call_operand.vmem [shape: f32[16,128], index: 3, kind: output, shape index: {}]
  %s4 = sld [smem:[#allocation0]]
  $region22: #{forward.35} parent=0
    _
  %s6 = ssub.s32 1, %s4
  %s7 = scalar_select 0, %s6, %s4
  // Predicated region
  $region2: #{forward.35} parent=0 // pred_check
    _
  $region3: #{forward.35} parent=0 // pred_check_branch
    %9 = sbr.rel (0) target = $region5
  $region4: #{forward.35} parent=0 // pred_region
    _
  $region5: #{forward.35} parent=0 // pred_fallthru
    _
  // Predicated region
  $region6: #{forward.35} parent=0 // pred_check
    _
  $region7: #{forward.35} parent=0 // pred_check_branch
    %11 = sbr.rel (0) target = $region9
  $region8: #{forward.35} parent=0 // pred_region
    _
  $region9: #{forward.35} parent=0 // pred_fallthru
    _
  // Predicated region
  $region10: #{forward.35} parent=0 // pred_check
    _
  $region11: #{forward.35} parent=0 // pred_check_branch
    %13 = sbr.rel (0) target = $region13
  $region12: #{forward.35} parent=0 // pred_region
    _
  $region13: #{forward.35} parent=0 // pred_fallthru
    _
  %v15 = vld [vmem:[%s0] sm:$0xf]
  %v16 = vld [vmem:[%s0 + $0x4] sm:$0xf]
  %v17 = vld [vmem:[%s1] sm:$0xf]
  %v18 = vld [vmem:[%s1 + $0x4] sm:$0xf]
  %v19 = vld [vmem:[%s1 + $0x8] sm:$0xf]
  %v20 = vld [vmem:[%s1 + $0xc] sm:$0xf]
  %v21 = vld [vmem:[%s2] sm:$0x1]
  %v23 = vlaneseq
  %v24 = vshrl.u32 %v23, 7
  %v25 = vsub.s32 0, %v24
  %v26 = vrot.slane %v21, %v25
  %v30 = vunpack.c.l.b16 %v15
  %v31 = vunpack.c.l.b16 %v16
  %v32 = vpack.c.b16 %v31, %v30
  %v37 = vunpack.c.l.b16 %v17
  %v38 = vunpack.c.l.b16 %v18
  %v39 = vunpack.c.l.b16 %v19
  %v40 = vunpack.c.l.b16 %v20
  %v41 = vpack.c.b16 %v38, %v37
  %v42 = vpack.c.b16 %v40, %v39
  %vm45 = vcmask 261120
  %v47 = vsel %vm45, %v32, 0
  %49 = vmatprep.subr.bf16.mxu0 0
  %50 = vmatpush1.bf16.msra.mxu0 %v41
  %51 = vmatprep.subr.bf16.mxu0 0
  %52 = vmatpush1.bf16.msra.mxu0 %v42
  %53 = vmatprep.subr.bf16.mxu0 0
  %54 = vmatpush1.bf16.msra.mxu0 0
  %55 = vmatprep.subr.bf16.mxu0 0
  %56 = vmatpush1.bf16.msra.mxu0 0
  %57 = vmatprep.subr.bf16.mxu0 0
  %58 = vmatpush1.bf16.msra.mxu0 0
  %59 = vmatprep.subr.bf16.mxu0 0
  %60 = vmatpush1.bf16.msra.mxu0 0
  %61 = vmatprep.subr.bf16.mxu0 0
  %62 = vmatpush1.bf16.msra.mxu0 0
  %63 = vmatprep.subr.bf16.mxu0 0
  %64 = vmatpush1.bf16.msra.mxu0 0
  %65 = vmatprep.subr.bf16.mxu0 0
  %66 = vmatpush1.bf16.msra.mxu0 0
  %67 = vmatprep.subr.bf16.mxu0 0
  %68 = vmatpush1.bf16.msra.mxu0 0
  %69 = vmatprep.subr.bf16.mxu0 0
  %70 = vmatpush1.bf16.msra.mxu0 0
  %71 = vmatprep.subr.bf16.mxu0 0
  %72 = vmatpush1.bf16.msra.mxu0 0
  %73 = vmatprep.subr.bf16.mxu0 0
  %74 = vmatpush1.bf16.msra.mxu0 0
  %75 = vmatprep.subr.bf16.mxu0 0
  %76 = vmatpush1.bf16.msra.mxu0 0
  %77 = vmatprep.subr.bf16.mxu0 0
  %78 = vmatpush1.bf16.msra.mxu0 0
  %79 = vmatprep.subr.bf16.mxu0 0
  %80 = vmatpush1.bf16.msra.mxu0 0
  %81 = vmatprep.mubr.bf16.mxu0 0
  %82 = vmatmul.mubr.bf16.gmra.mrb[0].mxu0 %v47
  %v83 = vpop.f32.mrb[0].mxu0
  %v84 = vadd.f32 %v26, %v83
  %v85 = vpop.f32.mrb[0].mxu0
  %v86 = vpop.f32.mrb[0].mxu0
  %v87 = vadd.f32 %v26, %v86
  %v88 = vpop.f32.mrb[0].mxu0
  %89 = vdwg.mxu0
  %v90 = vxor.u32 %v84, 2147483648
  %v91 = vxor.u32 %v87, 2147483648
  %v92 = vmul.f32 %v90, 1.442695
  %v93 = vpow.pop %v92
  %v94 = vmul.f32 %v91, 1.442695
  %v95 = vpow.pop %v94
  %v96 = vadd.f32 %v93, 1.0
  %v97 = vadd.f32 %v95, 1.0
  %v98 = vrcp.pop %v96
  %v99 = vmul.f32 1.0, %v98
  %v100 = vrcp.pop %v97
  %v101 = vmul.f32 1.0, %v100
  %v102 = vmul.f32 %v84, %v99
  %v103 = vmul.f32 %v87, %v101
  %104 = vst [vmem:[%s3] sm:$0xff] %v102
  %105 = vst [vmem:[%s3 + $0x8] sm:$0xff] %v103
  // Predicated region
  $region14: #{forward.35} parent=0 // pred_check
    _
  $region15: #{forward.35} parent=0 // pred_check_branch
    %107 = sbr.rel (0) target = $region17
  $region16: #{forward.35} parent=0 // pred_region
    _
  $region17: #{forward.35} parent=0 // pred_fallthru
    _
  // Predicated region
  $region18: #{forward.35} parent=0 // pred_check
    _
  $region19: #{forward.35} parent=0 // pred_check_branch
    %109 = sbr.rel (0) target = $region21
  $region20: #{forward.35} parent=0 // pred_region
    _
  $region21: #{forward.35} parent=0 // pred_fallthru
    _

// kernel: forward.38
$region0: #{forward.38}
  #allocation0 [shape = 'u32[]', space=smem, size = 0x4, offset = 0x4, fixed_abs, tag = 'smem constant byte address 0x4 - core index']
  #allocation1 [shape = 'u32[144,128]{1,0:T(1,128)}', space=vmem, size = 0x12000, scoped, tag = 'internal scratch']
  %s0 = inlined_call_operand.vmem [shape: bf16[16,640], index: 0, kind: input, shape index: {}]
  %s1 = inlined_call_operand.vmem [shape: bf16[640,128], index: 1, kind: input, shape index: {}]
  %s2 = inlined_call_operand.vmem [shape: f32[1,128], index: 2, kind: input, shape index: {}]
  %s3 = inlined_call_operand.vmem [shape: f32[16,128], index: 3, kind: output, shape index: {}]
  %s4 = sld [smem:[#allocation0]]
  $region22: #{forward.38} parent=0
    _
  %s6 = ssub.s32 1, %s4
  %s7 = scalar_select 0, %s6, %s4
  // Predicated region
  $region2: #{forward.38} parent=0 // pred_check
    _
  $region3: #{forward.38} parent=0 // pred_check_branch
    %9 = sbr.rel (0) target = $region5
  $region4: #{forward.38} parent=0 // pred_region
    _
  $region5: #{forward.38} parent=0 // pred_fallthru
    _
  // Predicated region
  $region6: #{forward.38} parent=0 // pred_check
    _
  $region7: #{forward.38} parent=0 // pred_check_branch
    %11 = sbr.rel (0) target = $region9
  $region8: #{forward.38} parent=0 // pred_region
    _
  $region9: #{forward.38} parent=0 // pred_fallthru
    _
  // Predicated region
  $region10: #{forward.38} parent=0 // pred_check
    _
  $region11: #{forward.38} parent=0 // pred_check_branch
    %13 = sbr.rel (0) target = $region13
  $region12: #{forward.38} parent=0 // pred_region
    _
  $region13: #{forward.38} parent=0 // pred_fallthru
    _
  %v15 = vld [vmem:[%s0] sm:$0xff]
  %v16 = vld [vmem:[%s0 + $0x8] sm:$0xff]
  %v17 = vld [vmem:[%s0 + $0x10] sm:$0xf]
  %v18 = vld [vmem:[%s0 + $0x14] sm:$0xff]
  %v19 = vld [vmem:[%s0 + $0x1c] sm:$0xff]
  %v20 = vld [vmem:[%s0 + $0x24] sm:$0xf]
  %v21 = vld [vmem:[%s1] sm:$0xf]
  %v22 = vld [vmem:[%s1 + $0x4] sm:$0xf]
  %v23 = vld [vmem:[%s1 + $0x8] sm:$0xf]
  %v24 = vld [vmem:[%s1 + $0xc] sm:$0xf]
  %v25 = vld [vmem:[%s1 + $0x10] sm:$0xf]
  %v26 = vld [vmem:[%s1 + $0x14] sm:$0xf]
  %v27 = vld [vmem:[%s1 + $0x18] sm:$0xf]
  %v28 = vld [vmem:[%s1 + $0x1c] sm:$0xf]
  %v29 = vld [vmem:[%s1 + $0x20] sm:$0xf]
  %v30 = vld [vmem:[%s1 + $0x24] sm:$0xf]
  %v31 = vld [vmem:[%s1 + $0x28] sm:$0xf]
  %v32 = vld [vmem:[%s1 + $0x2c] sm:$0xf]
  %v33 = vld [vmem:[%s1 + $0x30] sm:$0xf]
  %v34 = vld [vmem:[%s1 + $0x34] sm:$0xf]
  %v35 = vld [vmem:[%s1 + $0x38] sm:$0xf]
  %v36 = vld [vmem:[%s1 + $0x3c] sm:$0xf]
  %v37 = vld [vmem:[%s1 + $0x40] sm:$0xf]
  %v38 = vld [vmem:[%s1 + $0x44] sm:$0xf]
  %v39 = vld [vmem:[%s1 + $0x48] sm:$0xf]
  %v40 = vld [vmem:[%s1 + $0x4c] sm:$0xf]
  %v41 = vld [vmem:[%s1 + $0x50] sm:$0xf]
  %v42 = vld [vmem:[%s1 + $0x54] sm:$0xf]
  %v43 = vld [vmem:[%s1 + $0x58] sm:$0xf]
  %v44 = vld [vmem:[%s1 + $0x5c] sm:$0xf]
  %v45 = vld [vmem:[%s1 + $0x60] sm:$0xf]
  %v46 = vld [vmem:[%s1 + $0x64] sm:$0xf]
  %v47 = vld [vmem:[%s1 + $0x68] sm:$0xf]
  %v48 = vld [vmem:[%s1 + $0x6c] sm:$0xf]
  %v49 = vld [vmem:[%s1 + $0x70] sm:$0xf]
  %v50 = vld [vmem:[%s1 + $0x74] sm:$0xf]
  %v51 = vld [vmem:[%s1 + $0x78] sm:$0xf]
  %v52 = vld [vmem:[%s1 + $0x7c] sm:$0xf]
  %v53 = vld [vmem:[%s1 + $0x80] sm:$0xf]
  %v54 = vld [vmem:[%s1 + $0x84] sm:$0xf]
  %v55 = vld [vmem:[%s1 + $0x88] sm:$0xf]
  %v56 = vld [vmem:[%s1 + $0x8c] sm:$0xf]
  %v57 = vld [vmem:[%s1 + $0x90] sm:$0xf]
  %v58 = vld [vmem:[%s1 + $0x94] sm:$0xf]
  %v59 = vld [vmem:[%s1 + $0x98] sm:$0xf]
  %v60 = vld [vmem:[%s1 + $0x9c] sm:$0xf]
  %v61 = vld [vmem:[%s1 + $0xa0] sm:$0xf]
  %v62 = vld [vmem:[%s1 + $0xa4] sm:$0xf]
  %v63 = vld [vmem:[%s1 + $0xa8] sm:$0xf]
  %v64 = vld [vmem:[%s1 + $0xac] sm:$0xf]
  %v65 = vld [vmem:[%s1 + $0xb0] sm:$0xf]
  %v66 = vld [vmem:[%s1 + $0xb4] sm:$0xf]
  %v67 = vld [vmem:[%s1 + $0xb8] sm:$0xf]
  %v68 = vld [vmem:[%s1 + $0xbc] sm:$0xf]
  %v69 = vld [vmem:[%s1 + $0xc0] sm:$0xf]
  %v70 = vld [vmem:[%s1 + $0xc4] sm:$0xf]
  %v71 = vld [vmem:[%s1 + $0xc8] sm:$0xf]
  %v72 = vld [vmem:[%s1 + $0xcc] sm:$0xf]
  %v73 = vld [vmem:[%s1 + $0xd0] sm:$0xf]
  %v74 = vld [vmem:[%s1 + $0xd4] sm:$0xf]
  %v75 = vld [vmem:[%s1 + $0xd8] sm:$0xf]
  %v76 = vld [vmem:[%s1 + $0xdc] sm:$0xf]
  %v77 = vld [vmem:[%s1 + $0xe0] sm:$0xf]
  %v78 = vld [vmem:[%s1 + $0xe4] sm:$0xf]
  %v79 = vld [vmem:[%s1 + $0xe8] sm:$0xf]
  %v80 = vld [vmem:[%s1 + $0xec] sm:$0xf]
  %v81 = vld [vmem:[%s1 + $0xf0] sm:$0xf]
  %v82 = vld [vmem:[%s1 + $0xf4] sm:$0xf]
  %v83 = vld [vmem:[%s1 + $0xf8] sm:$0xf]
  %v84 = vld [vmem:[%s1 + $0xfc] sm:$0xf]
  %v85 = vld [vmem:[%s1 + $0x100] sm:$0xf]
  %v86 = vld [vmem:[%s1 + $0x104] sm:$0xf]
  %v87 = vld [vmem:[%s1 + $0x108] sm:$0xf]
  %v88 = vld [vmem:[%s1 + $0x10c] sm:$0xf]
  %v89 = vld [vmem:[%s1 + $0x110] sm:$0xf]
  %v90 = vld [vmem:[%s1 + $0x114] sm:$0xf]
  %v91 = vld [vmem:[%s1 + $0x118] sm:$0xf]
  %v92 = vld [vmem:[%s1 + $0x11c] sm:$0xf]
  %v93 = vld [vmem:[%s1 + $0x120] sm:$0xf]
  %v94 = vld [vmem:[%s1 + $0x124] sm:$0xf]
  %v95 = vld [vmem:[%s1 + $0x128] sm:$0xf]
  %v96 = vld [vmem:[%s1 + $0x12c] sm:$0xf]
  %v97 = vld [vmem:[%s1 + $0x130] sm:$0xf]
  %v98 = vld [vmem:[%s1 + $0x134] sm:$0xf]
  %v99 = vld [vmem:[%s1 + $0x138] sm:$0xf]
  %v100 = vld [vmem:[%s1 + $0x13c] sm:$0xf]
  %v101 = vld [vmem:[%s2] sm:$0x1]
  %v103 = vlaneseq
  %v104 = vshrl.u32 %v103, 7
  %v105 = vsub.s32 0, %v104
  %v106 = vrot.slane %v101, %v105
  %v114 = vunpack.c.l.b16 %v15
  %v115 = vunpack.c.h.b16 %v15
  %v116 = vunpack.c.l.b16 %v16
  %v117 = vunpack.c.h.b16 %v16
  %v118 = vunpack.c.l.b16 %v17
  %v119 = vunpack.c.l.b16 %v18
  %v120 = vunpack.c.h.b16 %v18
  %v121 = vunpack.c.l.b16 %v19
  %v122 = vunpack.c.h.b16 %v19
  %v123 = vunpack.c.l.b16 %v20
  %v124 = vpack.c.b16 %v119, %v114
  %v125 = vpack.c.b16 %v120, %v115
  %v126 = vpack.c.b16 %v121, %v116
  %v127 = vpack.c.b16 %v122, %v117
  %v128 = vpack.c.b16 %v123, %v118
  %v214 = vunpack.c.l.b16 %v21
  %v215 = vunpack.c.l.b16 %v22
  %v216 = vunpack.c.l.b16 %v23
  %v217 = vunpack.c.l.b16 %v24
  %v218 = vunpack.c.l.b16 %v25
  %v219 = vunpack.c.l.b16 %v26
  %v220 = vunpack.c.l.b16 %v27
  %v221 = vunpack.c.l.b16 %v28
  %v222 = vunpack.c.l.b16 %v29
  %v223 = vunpack.c.l.b16 %v30
  %v224 = vunpack.c.l.b16 %v31
  %v225 = vunpack.c.l.b16 %v32
  %v226 = vunpack.c.l.b16 %v33
  %v227 = vunpack.c.l.b16 %v34
  %v228 = vunpack.c.l.b16 %v35
  %v229 = vunpack.c.l.b16 %v36
  %v230 = vunpack.c.l.b16 %v37
  %v231 = vunpack.c.l.b16 %v38
  %v232 = vunpack.c.l.b16 %v39
  %v233 = vunpack.c.l.b16 %v40
  %v234 = vunpack.c.l.b16 %v41
  %v235 = vunpack.c.l.b16 %v42
  %v236 = vunpack.c.l.b16 %v43
  %v237 = vunpack.c.l.b16 %v44
  %v238 = vunpack.c.l.b16 %v45
  %v239 = vunpack.c.l.b16 %v46
  %v240 = vunpack.c.l.b16 %v47
  %v241 = vunpack.c.l.b16 %v48
  %v242 = vunpack.c.l.b16 %v49
  %v243 = vunpack.c.l.b16 %v50
  %v244 = vunpack.c.l.b16 %v51
  %v245 = vunpack.c.l.b16 %v52
  %v246 = vunpack.c.l.b16 %v53
  %v247 = vunpack.c.l.b16 %v54
  %v248 = vunpack.c.l.b16 %v55
  %v249 = vunpack.c.l.b16 %v56
  %v250 = vunpack.c.l.b16 %v57
  %v251 = vunpack.c.l.b16 %v58
  %v252 = vunpack.c.l.b16 %v59
  %v253 = vunpack.c.l.b16 %v60
  %v254 = vunpack.c.l.b16 %v61
  %v255 = vunpack.c.l.b16 %v62
  %v256 = vunpack.c.l.b16 %v63
  %v257 = vunpack.c.l.b16 %v64
  %v258 = vunpack.c.l.b16 %v65
  %v259 = vunpack.c.l.b16 %v66
  %v260 = vunpack.c.l.b16 %v67
  %v261 = vunpack.c.l.b16 %v68
  %v262 = vunpack.c.l.b16 %v69
  %v263 = vunpack.c.l.b16 %v70
  %v264 = vunpack.c.l.b16 %v71
  %v265 = vunpack.c.l.b16 %v72
  %v266 = vunpack.c.l.b16 %v73
  %v267 = vunpack.c.l.b16 %v74
  %v268 = vunpack.c.l.b16 %v75
  %v269 = vunpack.c.l.b16 %v76
  %v270 = vunpack.c.l.b16 %v77
  %v271 = vunpack.c.l.b16 %v78
  %v272 = vunpack.c.l.b16 %v79
  %v273 = vunpack.c.l.b16 %v80
  %v274 = vunpack.c.l.b16 %v81
  %v275 = vunpack.c.l.b16 %v82
  %v276 = vunpack.c.l.b16 %v83
  %v277 = vunpack.c.l.b16 %v84
  %v278 = vunpack.c.l.b16 %v85
  %v279 = vunpack.c.l.b16 %v86
  %v280 = vunpack.c.l.b16 %v87
  %v281 = vunpack.c.l.b16 %v88
  %v282 = vunpack.c.l.b16 %v89
  %v283 = vunpack.c.l.b16 %v90
  %v284 = vunpack.c.l.b16 %v91
  %v285 = vunpack.c.l.b16 %v92
  %v286 = vunpack.c.l.b16 %v93
  %v287 = vunpack.c.l.b16 %v94
  %v288 = vunpack.c.l.b16 %v95
  %v289 = vunpack.c.l.b16 %v96
  %v290 = vunpack.c.l.b16 %v97
  %v291 = vunpack.c.l.b16 %v98
  %v292 = vunpack.c.l.b16 %v99
  %v293 = vunpack.c.l.b16 %v100
  %v294 = vpack.c.b16 %v215, %v214
  %v295 = vpack.c.b16 %v217, %v216
  %v296 = vpack.c.b16 %v219, %v218
  %v297 = vpack.c.b16 %v221, %v220
  %v298 = vpack.c.b16 %v223, %v222
  %v299 = vpack.c.b16 %v225, %v224
  %v300 = vpack.c.b16 %v227, %v226
  %v301 = vpack.c.b16 %v229, %v228
  %v302 = vpack.c.b16 %v231, %v230
  %v303 = vpack.c.b16 %v233, %v232
  %v304 = vpack.c.b16 %v235, %v234
  %v305 = vpack.c.b16 %v237, %v236
  %v306 = vpack.c.b16 %v239, %v238
  %v307 = vpack.c.b16 %v241, %v240
  %v308 = vpack.c.b16 %v243, %v242
  %v309 = vpack.c.b16 %v245, %v244
  %v310 = vpack.c.b16 %v247, %v246
  %v311 = vpack.c.b16 %v249, %v248
  %v312 = vpack.c.b16 %v251, %v250
  %v313 = vpack.c.b16 %v253, %v252
  %v314 = vpack.c.b16 %v255, %v254
  %v315 = vpack.c.b16 %v257, %v256
  %v316 = vpack.c.b16 %v259, %v258
  %v317 = vpack.c.b16 %v261, %v260
  %v318 = vpack.c.b16 %v263, %v262
  %v319 = vpack.c.b16 %v265, %v264
  %v320 = vpack.c.b16 %v267, %v266
  %v321 = vpack.c.b16 %v269, %v268
  %v322 = vpack.c.b16 %v271, %v270
  %v323 = vpack.c.b16 %v273, %v272
  %v324 = vpack.c.b16 %v275, %v274
  %v325 = vpack.c.b16 %v277, %v276
  %v326 = vpack.c.b16 %v279, %v278
  %v327 = vpack.c.b16 %v281, %v280
  %v328 = vpack.c.b16 %v283, %v282
  %v329 = vpack.c.b16 %v285, %v284
  %v330 = vpack.c.b16 %v287, %v286
  %v331 = vpack.c.b16 %v289, %v288
  %v332 = vpack.c.b16 %v291, %v290
  %v333 = vpack.c.b16 %v293, %v292
  %374 = vmatprep.subr.bf16.mxu0 0
  %375 = vmatpush1.bf16.msra.mxu0 %v294
  %376 = vmatprep.subr.bf16.mxu0 0
  %377 = vmatpush1.bf16.msra.mxu0 %v295
  %378 = vmatprep.subr.bf16.mxu0 0
  %379 = vmatpush1.bf16.msra.mxu0 %v296
  %380 = vmatprep.subr.bf16.mxu0 0
  %381 = vmatpush1.bf16.msra.mxu0 %v297
  %382 = vmatprep.subr.bf16.mxu0 0
  %383 = vmatpush1.bf16.msra.mxu0 %v298
  %384 = vmatprep.subr.bf16.mxu0 0
  %385 = vmatpush1.bf16.msra.mxu0 %v299
  %386 = vmatprep.subr.bf16.mxu0 0
  %387 = vmatpush1.bf16.msra.mxu0 %v300
  %388 = vmatprep.subr.bf16.mxu0 0
  %389 = vmatpush1.bf16.msra.mxu0 %v301
  %390 = vmatprep.subr.bf16.mxu0 0
  %391 = vmatpush1.bf16.msra.mxu0 %v302
  %392 = vmatprep.subr.bf16.mxu0 0
  %393 = vmatpush1.bf16.msra.mxu0 %v303
  %394 = vmatprep.subr.bf16.mxu0 0
  %395 = vmatpush1.bf16.msra.mxu0 %v304
  %396 = vmatprep.subr.bf16.mxu0 0
  %397 = vmatpush1.bf16.msra.mxu0 %v305
  %398 = vmatprep.subr.bf16.mxu0 0
  %399 = vmatpush1.bf16.msra.mxu0 %v306
  %400 = vmatprep.subr.bf16.mxu0 0
  %401 = vmatpush1.bf16.msra.mxu0 %v307
  %402 = vmatprep.subr.bf16.mxu0 0
  %403 = vmatpush1.bf16.msra.mxu0 %v308
  %404 = vmatprep.subr.bf16.mxu0 0
  %405 = vmatpush1.bf16.msra.mxu0 %v309
  %406 = vmatprep.mubr.bf16.mxu0 %v125
  %407 = vmatmul.mubr.bf16.gmra.mrb[0].mxu0 %v124
  %v408 = vpop.f32.mrb[0].mxu0
  %v409 = vadd.f32 %v106, %v408
  %v410 = vpop.f32.mrb[0].mxu0
  %v411 = vpop.f32.mrb[0].mxu0
  %v412 = vadd.f32 %v106, %v411
  %v413 = vpop.f32.mrb[0].mxu0
  %414 = vdwg.mxu0
  %415 = vmatprep.subr.bf16.mxu0 0
  %416 = vmatpush1.bf16.msra.mxu0 %v310
  %417 = vmatprep.subr.bf16.mxu0 0
  %418 = vmatpush1.bf16.msra.mxu0 %v311
  %419 = vmatprep.subr.bf16.mxu0 0
  %420 = vmatpush1.bf16.msra.mxu0 %v312
  %421 = vmatprep.subr.bf16.mxu0 0
  %422 = vmatpush1.bf16.msra.mxu0 %v313
  %423 = vmatprep.subr.bf16.mxu0 0
  %424 = vmatpush1.bf16.msra.mxu0 %v314
  %425 = vmatprep.subr.bf16.mxu0 0
  %426 = vmatpush1.bf16.msra.mxu0 %v315
  %427 = vmatprep.subr.bf16.mxu0 0
  %428 = vmatpush1.bf16.msra.mxu0 %v316
  %429 = vmatprep.subr.bf16.mxu0 0
  %430 = vmatpush1.bf16.msra.mxu0 %v317
  %431 = vmatprep.subr.bf16.mxu0 0
  %432 = vmatpush1.bf16.msra.mxu0 %v318
  %433 = vmatprep.subr.bf16.mxu0 0
  %434 = vmatpush1.bf16.msra.mxu0 %v319
  %435 = vmatprep.subr.bf16.mxu0 0
  %436 = vmatpush1.bf16.msra.mxu0 %v320
  %437 = vmatprep.subr.bf16.mxu0 0
  %438 = vmatpush1.bf16.msra.mxu0 %v321
  %439 = vmatprep.subr.bf16.mxu0 0
  %440 = vmatpush1.bf16.msra.mxu0 %v322
  %441 = vmatprep.subr.bf16.mxu0 0
  %442 = vmatpush1.bf16.msra.mxu0 %v323
  %443 = vmatprep.subr.bf16.mxu0 0
  %444 = vmatpush1.bf16.msra.mxu0 %v324
  %445 = vmatprep.subr.bf16.mxu0 0
  %446 = vmatpush1.bf16.msra.mxu0 %v325
  %447 = vmatprep.mubr.bf16.mxu0 %v127
  %448 = vmatmul.mubr.bf16.gmra.mrb[0].mxu0 %v126
  %v449 = vpop.f32.mrb[0].mxu0
  %v450 = vadd.f32 %v409, %v449
  %v451 = vpop.f32.mrb[0].mxu0
  %v452 = vpop.f32.mrb[0].mxu0
  %v453 = vadd.f32 %v412, %v452
  %v454 = vpop.f32.mrb[0].mxu0
  %455 = vdwg.mxu0
  %456 = vmatprep.subr.bf16.mxu0 0
  %457 = vmatpush1.bf16.msra.mxu0 %v326
  %458 = vmatprep.subr.bf16.mxu0 0
  %459 = vmatpush1.bf16.msra.mxu0 %v327
  %460 = vmatprep.subr.bf16.mxu0 0
  %461 = vmatpush1.bf16.msra.mxu0 %v328
  %462 = vmatprep.subr.bf16.mxu0 0
  %463 = vmatpush1.bf16.msra.mxu0 %v329
  %464 = vmatprep.subr.bf16.mxu0 0
  %465 = vmatpush1.bf16.msra.mxu0 %v330
  %466 = vmatprep.subr.bf16.mxu0 0
  %467 = vmatpush1.bf16.msra.mxu0 %v331
  %468 = vmatprep.subr.bf16.mxu0 0
  %469 = vmatpush1.bf16.msra.mxu0 %v332
  %470 = vmatprep.subr.bf16.mxu0 0
  %471 = vmatpush1.bf16.msra.mxu0 %v333
  %472 = vmatprep.subr.bf16.mxu0 0
  %473 = vmatpush1.bf16.msra.mxu0 0
  %474 = vmatprep.subr.bf16.mxu0 0
  %475 = vmatpush1.bf16.msra.mxu0 0
  %476 = vmatprep.subr.bf16.mxu0 0
  %477 = vmatpush1.bf16.msra.mxu0 0
  %478 = vmatprep.subr.bf16.mxu0 0
  %479 = vmatpush1.bf16.msra.mxu0 0
  %480 = vmatprep.subr.bf16.mxu0 0
  %481 = vmatpush1.bf16.msra.mxu0 0
  %482 = vmatprep.subr.bf16.mxu0 0
  %483 = vmatpush1.bf16.msra.mxu0 0
  %484 = vmatprep.subr.bf16.mxu0 0
  %485 = vmatpush1.bf16.msra.mxu0 0
  %486 = vmatprep.subr.bf16.mxu0 0
  %487 = vmatpush1.bf16.msra.mxu0 0
  %488 = vmatprep.mubr.bf16.mxu0 0
  %489 = vmatmul.mubr.bf16.gmra.mrb[0].mxu0 %v128
  %v490 = vpop.f32.mrb[0].mxu0
  %v491 = vadd.f32 %v450, %v490
  %v492 = vpop.f32.mrb[0].mxu0
  %v493 = vpop.f32.mrb[0].mxu0
  %v494 = vadd.f32 %v453, %v493
  %v495 = vpop.f32.mrb[0].mxu0
  %496 = vdwg.mxu0
  %v497 = vxor.u32 %v491, 2147483648
  %v498 = vxor.u32 %v494, 2147483648
  %v499 = vmul.f32 %v497, 1.442695
  %v500 = vpow.pop %v499
  %v501 = vmul.f32 %v498, 1.442695
  %v502 = vpow.pop %v501
  %v503 = vadd.f32 %v500, 1.0
  %v504 = vadd.f32 %v502, 1.0
  %v505 = vrcp.pop %v503
  %v506 = vmul.f32 1.0, %v505
  %v507 = vrcp.pop %v504
  %v508 = vmul.f32 1.0, %v507
  %v509 = vmul.f32 %v491, %v506
  %v510 = vmul.f32 %v494, %v508
  %511 = vst [vmem:[%s3] sm:$0xff] %v509
  %512 = vst [vmem:[%s3 + $0x8] sm:$0xff] %v510
  // Predicated region
  $region14: #{forward.38} parent=0 // pred_check
    _
  $region15: #{forward.38} parent=0 // pred_check_branch
    %514 = sbr.rel (0) target = $region17
  $region16: #{forward.38} parent=0 // pred_region
    _
  $region17: #{forward.38} parent=0 // pred_fallthru
    _
  // Predicated region
  $region18: #{forward.38} parent=0 // pred_check
    _
  $region19: #{forward.38} parent=0 // pred_check_branch
    %516 = sbr.rel (0) target = $region21
  $region20: #{forward.38} parent=0 // pred_region
    _
  $region21: #{forward.38} parent=0 // pred_fallthru
    _

</llo_original>
